<compile_context>
chip_gen: v5e
topology: v5e:2x2
jax: 0.10.0
libtpu: 0.0.40
codegen_flags: <defaults>
</compile_context>

<pallas_src>
import functools

import jax
import jax.numpy as jnp
from jax import lax
from jax.experimental import pallas as pl
from jax.experimental.pallas import tpu as pltpu


def _leaky_relu(v, slope=0.01):
    return jnp.where(v >= 0, v, slope * v)


def _lstm_net_kernel(x_ref, w1_ref, b1_ref, wih_ref, whh_ref, bg_ref,
                     w2_ref, b2_ref, h0_ref, c0_ref,
                     y_ref, hn_ref, cn_ref,
                     seq_ref, xw_ref):
    """Whole forward pass; all operands resident in VMEM (KB-scale problem).

    x_ref   : (T, D_in)
    w1_ref  : (D_in, nodes)        b1_ref : (1, nodes)
    wih_ref : (L, nodes, 4*nodes)  whh_ref: (L, nodes, 4*nodes)
    bg_ref  : (L, 1, 4*nodes)      (bias_ih + bias_hh, gate order i,f,g,o)
    w2_ref  : (nodes, n_out)       b2_ref : (1, n_out)
    h0_ref  : (L, 1, nodes)        c0_ref : (L, 1, nodes)
    y_ref   : (T, n_out)           hn_ref/cn_ref: (L, 1, nodes)
    seq_ref : (T, nodes)   VMEM scratch (current layer's output sequence)
    xw_ref  : (T, 4*nodes) VMEM scratch (hoisted input->gates projection)
    """
    T = x_ref.shape[0]
    nodes = w1_ref.shape[1]
    L = wih_ref.shape[0]

    # ---- linear1 + leaky_relu (one T-row matmul) ------------------------------
    seq_ref[...] = _leaky_relu(
        jnp.dot(x_ref[...], w1_ref[...], preferred_element_type=jnp.float32)
        + b1_ref[...])                                          # (T, nodes)

    # ---- stacked LSTM (PyTorch semantics, gate order i, f, g, o) --------------
    for l in range(L):                                          # L static & small
        # Hoisted input-to-hidden projection: one (T, 4*nodes) matmul + bias,
        # stored to VMEM so per-step row loads are off the recurrence chain.
        xw_ref[...] = (jnp.dot(seq_ref[...], wih_ref[l],
                               preferred_element_type=jnp.float32)
                       + bg_ref[l])                             # (T, 4*nodes)
        whh = whh_ref[l]                                        # (nodes, 4*nodes)
        h = h0_ref[l]                                           # (1, nodes)
        c = c0_ref[l]                                           # (1, nodes)

        for t in range(T):                                      # fully unrolled
            gates = xw_ref[t:t + 1, :] + jnp.dot(
                h, whh, preferred_element_type=jnp.float32)     # (1, 4*nodes)
            # Slice before the nonlinearities: 4 EUP vreg-ops instead of 8.
            if_g = jax.nn.sigmoid(gates[:, 0:2 * nodes])        # i | f (2 vregs)
            g_g = jnp.tanh(gates[:, 2 * nodes:3 * nodes])       # g      (1 vreg)
            o_g = jax.nn.sigmoid(gates[:, 3 * nodes:4 * nodes]) # o      (1 vreg)
            c = if_g[:, nodes:2 * nodes] * c + if_g[:, 0:nodes] * g_g
            h = o_g * jnp.tanh(c)
            # Off-critical-path store; feeds next layer's hoisted matmul / output.
            seq_ref[t:t + 1, :] = h

        hn_ref[l] = h
        cn_ref[l] = c

    # ---- leaky_relu + linear2 + tanh * 2 --------------------------------------
    act = _leaky_relu(seq_ref[...])
    y_ref[...] = jnp.tanh(
        jnp.dot(act, w2_ref[...], preferred_element_type=jnp.float32)
        + b2_ref[...]) * 2.0


def lstm_net_forward(x, params, h0, c0):
    """x: (T, B=1, D_in) f32 -> (y (T,1,n_out), (h_n, c_n) each (L,1,nodes))."""
    T, B, D_in = x.shape
    assert B == 1, "module's hidden state has batch size 1"
    w1, b1, wih, whh, bg, w2, b2 = params
    L, nodes, _ = wih.shape
    n_out = w2.shape[1]

    vmem = pl.BlockSpec(memory_space=pltpu.MemorySpace.VMEM)
    out_shapes = (
        jax.ShapeDtypeStruct((T, n_out), jnp.float32),
        jax.ShapeDtypeStruct((L, 1, nodes), jnp.float32),
        jax.ShapeDtypeStruct((L, 1, nodes), jnp.float32),
    )
    y, hn, cn = pl.pallas_call(
        _lstm_net_kernel,
        out_shape=out_shapes,
        in_specs=[vmem] * 10,
        out_specs=(vmem, vmem, vmem),
        scratch_shapes=[
            pltpu.VMEM((T, nodes), jnp.float32),       # layer output sequence
            pltpu.VMEM((T, 4 * nodes), jnp.float32),   # hoisted xw projection
        ],
    )(x.reshape(T, D_in), w1, b1, wih, whh, bg, w2, b2, h0, c0)
    return y.reshape(T, B, n_out), (hn, cn)


# ------------------------------ pure-JAX reference ------------------------------
def _reference_forward(x, params, h0, c0):
    w1, b1, wih, whh, bg, w2, b2 = params
    hp = lax.Precision.HIGHEST
    T, B, _ = x.shape
    L, nodes, _ = wih.shape
    seq = _leaky_relu(jnp.einsum("tbd,dn->tbn", x, w1, precision=hp) + b1)
    hs, cs = [], []
    for l in range(L):
        h, c = h0[l], c0[l]
        outs = []
        for t in range(T):
            gates = (jnp.dot(seq[t], wih[l], precision=hp)
                     + jnp.dot(h, whh[l], precision=hp) + bg[l])
            i_g = jax.nn.sigmoid(gates[:, 0 * nodes:1 * nodes])
            f_g = jax.nn.sigmoid(gates[:, 1 * nodes:2 * nodes])
            g_g = jnp.tanh(gates[:, 2 * nodes:3 * nodes])
            o_g = jax.nn.sigmoid(gates[:, 3 * nodes:4 * nodes])
            c = f_g * c + i_g * g_g
            h = o_g * jnp.tanh(c)
            outs.append(h)
        seq = jnp.stack(outs, axis=0)
        hs.append(h)
        cs.append(c)
    y = jnp.tanh(jnp.einsum("tbn,no->tbo", _leaky_relu(seq), w2, precision=hp)
                 + b2) * 2.0
    return y, (jnp.stack(hs), jnp.stack(cs))


# ------------------------------ parameter init ----------------------------------
def init_params(key, d_in, nodes, layers, n_out):
    ks = jax.random.split(key, 8)

    def unif(k, shape, fan_in):
        bound = 1.0 / jnp.sqrt(fan_in)
        return jax.random.uniform(k, shape, jnp.float32, -bound, bound)

    w1 = unif(ks[0], (d_in, nodes), d_in)
    b1 = unif(ks[1], (1, nodes), d_in)
    wih = unif(ks[2], (layers, nodes, 4 * nodes), nodes)
    whh = unif(ks[3], (layers, nodes, 4 * nodes), nodes)
    bg = unif(ks[4], (layers, 1, 4 * nodes), nodes)   # bias_ih + bias_hh combined
    w2 = unif(ks[5], (nodes, n_out), nodes)
    b2 = unif(ks[6], (1, n_out), nodes)
    return (w1, b1, wih, whh, bg, w2, b2), ks[7]


if __name__ == "__main__":
    # Module defaults: n_input = 12 + 12 + 6 = 30, nodes = 128, layers = 3,
    # output dim = n_input_state_real = 12.  Seq len 8, batch 1 (hidden has batch 1).
    T, B = 8, 1
    n_sim, n_real, n_act = 12, 12, 6
    d_in = n_sim + n_real + n_act
    nodes, layers, n_out = 128, 3, n_real

    key = jax.random.PRNGKey(0)
    params, key = init_params(key, d_in, nodes, layers, n_out)
    k1, k2, k3 = jax.random.split(key, 3)
    x = jax.random.normal(k1, (T, B, d_in), jnp.float32)
    h0 = jax.random.normal(k2, (layers, 1, nodes), jnp.float32)   # self.hidden[0]
    c0 = jax.random.normal(k3, (layers, 1, nodes), jnp.float32)   # self.hidden[1]

    fwd = jax.jit(functools.partial(lstm_net_forward))
    y, (hn, cn) = fwd(x, params, h0, c0)
    jax.block_until_ready((y, hn, cn))

    y_ref, (hn_ref, cn_ref) = _reference_forward(x, params, h0, c0)
    assert y.shape == (T, B, n_out) and hn.shape == (layers, 1, nodes)
    assert jnp.all(jnp.isfinite(y))
    assert jnp.allclose(y, y_ref, rtol=1e-4, atol=1e-4)
    assert jnp.allclose(hn, hn_ref, rtol=1e-4, atol=1e-4)
    assert jnp.allclose(cn, cn_ref, rtol=1e-4, atol=1e-4)

    print("KERNEL_OK")
</pallas_src>

<mosaic_0001>
module attributes {stable_mosaic.version = 11 : i64} {
  func.func @_lstm_net_kernel(%arg0: memref<8x30xf32, #tpu.memory_space<vmem>>, %arg1: memref<30x128xf32, #tpu.memory_space<vmem>>, %arg2: memref<1x128xf32, #tpu.memory_space<vmem>>, %arg3: memref<3x128x512xf32, #tpu.memory_space<vmem>>, %arg4: memref<3x128x512xf32, #tpu.memory_space<vmem>>, %arg5: memref<3x1x512xf32, #tpu.memory_space<vmem>>, %arg6: memref<128x12xf32, #tpu.memory_space<vmem>>, %arg7: memref<1x12xf32, #tpu.memory_space<vmem>>, %arg8: memref<3x1x128xf32, #tpu.memory_space<vmem>>, %arg9: memref<3x1x128xf32, #tpu.memory_space<vmem>>, %arg10: memref<8x12xf32, #tpu.memory_space<vmem>>, %arg11: memref<3x1x128xf32, #tpu.memory_space<vmem>>, %arg12: memref<3x1x128xf32, #tpu.memory_space<vmem>>, %arg13: memref<8x128xf32, #tpu.memory_space<vmem>>, %arg14: memref<8x512xf32, #tpu.memory_space<vmem>>) attributes {dimension_semantics = [], scalar_prefetch = 0 : i64, scratch_operands = 2 : i64, tpu.core_type = #tpu.core_type<tc>} {
    %c0 = arith.constant 0 : index
    %c0_0 = arith.constant 0 : index
    %0 = vector.load %arg0[%c0, %c0_0] : memref<8x30xf32, #tpu.memory_space<vmem>>, vector<8x30xf32>
    %c0_1 = arith.constant 0 : index
    %c0_2 = arith.constant 0 : index
    %1 = vector.load %arg1[%c0_1, %c0_2] : memref<30x128xf32, #tpu.memory_space<vmem>>, vector<30x128xf32>
    %cst = arith.constant dense<0.000000e+00> : vector<8x128xf32>
    %2 = tpu.matmul %0, %1, %cst {dimension_numbers = #tpu.dot_dimension_numbers<[1], [0], [0], [1], [0, 0, 1, 1], [], []>} : vector<8x30xf32>, vector<30x128xf32>, vector<8x128xf32> -> vector<8x128xf32>
    %c0_3 = arith.constant 0 : index
    %c0_4 = arith.constant 0 : index
    %3 = vector.load %arg2[%c0_3, %c0_4] : memref<1x128xf32, #tpu.memory_space<vmem>>, vector<1x128xf32>
    %4 = vector.broadcast %3 : vector<1x128xf32> to vector<8x128xf32>
    %5 = arith.addf %2, %4 : vector<8x128xf32>
    %cst_5 = arith.constant 0.000000e+00 : f32
    %6 = vector.broadcast %cst_5 : f32 to vector<8x128xf32>
    %7 = arith.cmpf oge, %5, %6 : vector<8x128xf32>
    %cst_6 = arith.constant 0.00999999977 : f32
    %8 = vector.broadcast %cst_6 : f32 to vector<8x128xf32>
    %9 = arith.mulf %8, %5 : vector<8x128xf32>
    %10 = arith.select %7, %5, %9 : vector<8x128xi1>, vector<8x128xf32>
    %c0_7 = arith.constant 0 : index
    %c0_8 = arith.constant 0 : index
    %11 = vector.load %arg13[%c0_7, %c0_8] : memref<8x128xf32, #tpu.memory_space<vmem>>, vector<8x128xf32>
    tpu.vector_store %arg13[%c0_7, %c0_8], %10 {strides = array<i32>} : memref<8x128xf32, #tpu.memory_space<vmem>>, vector<8x128xf32>,
    %c0_9 = arith.constant 0 : index
    %c0_10 = arith.constant 0 : index
    %12 = vector.load %arg13[%c0_9, %c0_10] : memref<8x128xf32, #tpu.memory_space<vmem>>, vector<8x128xf32>
    %c0_11 = arith.constant 0 : index
    %c0_12 = arith.constant 0 : index
    %c0_13 = arith.constant 0 : index
    %13 = vector.load %arg3[%c0_11, %c0_12, %c0_13] : memref<3x128x512xf32, #tpu.memory_space<vmem>>, vector<1x128x512xf32>
    %14 = vector.shape_cast %13 : vector<1x128x512xf32> to vector<128x512xf32>
    %cst_14 = arith.constant dense<0.000000e+00> : vector<8x512xf32>
    %15 = tpu.matmul %12, %14, %cst_14 {dimension_numbers = #tpu.dot_dimension_numbers<[1], [0], [0], [1], [0, 0, 1, 1], [], []>} : vector<8x128xf32>, vector<128x512xf32>, vector<8x512xf32> -> vector<8x512xf32>
    %c0_15 = arith.constant 0 : index
    %c0_16 = arith.constant 0 : index
    %c0_17 = arith.constant 0 : index
    %16 = vector.load %arg5[%c0_15, %c0_16, %c0_17] : memref<3x1x512xf32, #tpu.memory_space<vmem>>, vector<1x1x512xf32>
    %17 = vector.shape_cast %16 : vector<1x1x512xf32> to vector<1x512xf32>
    %18 = vector.broadcast %17 : vector<1x512xf32> to vector<8x512xf32>
    %19 = arith.addf %15, %18 : vector<8x512xf32>
    %c0_18 = arith.constant 0 : index
    %c0_19 = arith.constant 0 : index
    %20 = vector.load %arg14[%c0_18, %c0_19] : memref<8x512xf32, #tpu.memory_space<vmem>>, vector<8x512xf32>
    tpu.vector_store %arg14[%c0_18, %c0_19], %19 {strides = array<i32>} : memref<8x512xf32, #tpu.memory_space<vmem>>, vector<8x512xf32>,
    %c0_20 = arith.constant 0 : index
    %c0_21 = arith.constant 0 : index
    %c0_22 = arith.constant 0 : index
    %21 = vector.load %arg4[%c0_20, %c0_21, %c0_22] : memref<3x128x512xf32, #tpu.memory_space<vmem>>, vector<1x128x512xf32>
    %22 = vector.shape_cast %21 : vector<1x128x512xf32> to vector<128x512xf32>
    %c0_23 = arith.constant 0 : index
    %c0_24 = arith.constant 0 : index
    %c0_25 = arith.constant 0 : index
    %23 = vector.load %arg8[%c0_23, %c0_24, %c0_25] : memref<3x1x128xf32, #tpu.memory_space<vmem>>, vector<1x1x128xf32>
    %24 = vector.shape_cast %23 : vector<1x1x128xf32> to vector<1x128xf32>
    %c0_26 = arith.constant 0 : index
    %c0_27 = arith.constant 0 : index
    %c0_28 = arith.constant 0 : index
    %25 = vector.load %arg9[%c0_26, %c0_27, %c0_28] : memref<3x1x128xf32, #tpu.memory_space<vmem>>, vector<1x1x128xf32>
    %26 = vector.shape_cast %25 : vector<1x1x128xf32> to vector<1x128xf32>
    %c0_29 = arith.constant 0 : index
    %c0_30 = arith.constant 0 : index
    %27 = vector.load %arg14[%c0_29, %c0_30] : memref<8x512xf32, #tpu.memory_space<vmem>>, vector<1x512xf32>
    %cst_31 = arith.constant dense<0.000000e+00> : vector<1x512xf32>
    %28 = tpu.matmul %24, %22, %cst_31 {dimension_numbers = #tpu.dot_dimension_numbers<[1], [0], [0], [1], [0, 0, 1, 1], [], []>} : vector<1x128xf32>, vector<128x512xf32>, vector<1x512xf32> -> vector<1x512xf32>
    %29 = arith.addf %27, %28 : vector<1x512xf32>
    %30 = vector.extract_strided_slice %29 {offsets = [0, 0], sizes = [1, 256], strides = [1, 1]} : vector<1x512xf32> to vector<1x256xf32>
    %31 = arith.negf %30 : vector<1x256xf32>
    %32 = math.exp %31 : vector<1x256xf32>
    %cst_32 = arith.constant 1.000000e+00 : f32
    %33 = vector.broadcast %cst_32 : f32 to vector<1x256xf32>
    %34 = arith.addf %33, %32 : vector<1x256xf32>
    %35 = arith.divf %33, %34 : vector<1x256xf32>
    %36 = vector.extract_strided_slice %29 {offsets = [0, 256], sizes = [1, 128], strides = [1, 1]} : vector<1x512xf32> to vector<1x128xf32>
    %37 = math.tanh %36 : vector<1x128xf32>
    %38 = vector.extract_strided_slice %29 {offsets = [0, 384], sizes = [1, 128], strides = [1, 1]} : vector<1x512xf32> to vector<1x128xf32>
    %39 = arith.negf %38 : vector<1x128xf32>
    %40 = math.exp %39 : vector<1x128xf32>
    %cst_33 = arith.constant 1.000000e+00 : f32
    %41 = vector.broadcast %cst_33 : f32 to vector<1x128xf32>
    %42 = arith.addf %41, %40 : vector<1x128xf32>
    %43 = arith.divf %41, %42 : vector<1x128xf32>
    %44 = vector.extract_strided_slice %35 {offsets = [0, 128], sizes = [1, 128], strides = [1, 1]} : vector<1x256xf32> to vector<1x128xf32>
    %45 = arith.mulf %44, %26 : vector<1x128xf32>
    %46 = vector.extract_strided_slice %35 {offsets = [0, 0], sizes = [1, 128], strides = [1, 1]} : vector<1x256xf32> to vector<1x128xf32>
    %47 = arith.mulf %46, %37 : vector<1x128xf32>
    %48 = arith.addf %45, %47 : vector<1x128xf32>
    %49 = math.tanh %48 : vector<1x128xf32>
    %50 = arith.mulf %43, %49 : vector<1x128xf32>
    %c0_34 = arith.constant 0 : index
    %c0_35 = arith.constant 0 : index
    %51 = vector.load %arg13[%c0_34, %c0_35] : memref<8x128xf32, #tpu.memory_space<vmem>>, vector<1x128xf32>
    tpu.vector_store %arg13[%c0_34, %c0_35], %50 {strides = array<i32>} : memref<8x128xf32, #tpu.memory_space<vmem>>, vector<1x128xf32>,
    %c1 = arith.constant 1 : index
    %c0_36 = arith.constant 0 : index
    %52 = vector.load %arg14[%c1, %c0_36] : memref<8x512xf32, #tpu.memory_space<vmem>>, vector<1x512xf32>
    %cst_37 = arith.constant dense<0.000000e+00> : vector<1x512xf32>
    %53 = tpu.matmul %50, %22, %cst_37 {dimension_numbers = #tpu.dot_dimension_numbers<[1], [0], [0], [1], [0, 0, 1, 1], [], []>} : vector<1x128xf32>, vector<128x512xf32>, vector<1x512xf32> -> vector<1x512xf32>
    %54 = arith.addf %52, %53 : vector<1x512xf32>
    %55 = vector.extract_strided_slice %54 {offsets = [0, 0], sizes = [1, 256], strides = [1, 1]} : vector<1x512xf32> to vector<1x256xf32>
    %56 = arith.negf %55 : vector<1x256xf32>
    %57 = math.exp %56 : vector<1x256xf32>
    %cst_38 = arith.constant 1.000000e+00 : f32
    %58 = vector.broadcast %cst_38 : f32 to vector<1x256xf32>
    %59 = arith.addf %58, %57 : vector<1x256xf32>
    %60 = arith.divf %58, %59 : vector<1x256xf32>
    %61 = vector.extract_strided_slice %54 {offsets = [0, 256], sizes = [1, 128], strides = [1, 1]} : vector<1x512xf32> to vector<1x128xf32>
    %62 = math.tanh %61 : vector<1x128xf32>
    %63 = vector.extract_strided_slice %54 {offsets = [0, 384], sizes = [1, 128], strides = [1, 1]} : vector<1x512xf32> to vector<1x128xf32>
    %64 = arith.negf %63 : vector<1x128xf32>
    %65 = math.exp %64 : vector<1x128xf32>
    %cst_39 = arith.constant 1.000000e+00 : f32
    %66 = vector.broadcast %cst_39 : f32 to vector<1x128xf32>
    %67 = arith.addf %66, %65 : vector<1x128xf32>
    %68 = arith.divf %66, %67 : vector<1x128xf32>
    %69 = vector.extract_strided_slice %60 {offsets = [0, 128], sizes = [1, 128], strides = [1, 1]} : vector<1x256xf32> to vector<1x128xf32>
    %70 = arith.mulf %69, %48 : vector<1x128xf32>
    %71 = vector.extract_strided_slice %60 {offsets = [0, 0], sizes = [1, 128], strides = [1, 1]} : vector<1x256xf32> to vector<1x128xf32>
    %72 = arith.mulf %71, %62 : vector<1x128xf32>
    %73 = arith.addf %70, %72 : vector<1x128xf32>
    %74 = math.tanh %73 : vector<1x128xf32>
    %75 = arith.mulf %68, %74 : vector<1x128xf32>
    %c1_40 = arith.constant 1 : index
    %c0_41 = arith.constant 0 : index
    %76 = vector.load %arg13[%c1_40, %c0_41] : memref<8x128xf32, #tpu.memory_space<vmem>>, vector<1x128xf32>
    tpu.vector_store %arg13[%c1_40, %c0_41], %75 {strides = array<i32>} : memref<8x128xf32, #tpu.memory_space<vmem>>, vector<1x128xf32>,
    %c2 = arith.constant 2 : index
    %c0_42 = arith.constant 0 : index
    %77 = vector.load %arg14[%c2, %c0_42] : memref<8x512xf32, #tpu.memory_space<vmem>>, vector<1x512xf32>
    %cst_43 = arith.constant dense<0.000000e+00> : vector<1x512xf32>
    %78 = tpu.matmul %75, %22, %cst_43 {dimension_numbers = #tpu.dot_dimension_numbers<[1], [0], [0], [1], [0, 0, 1, 1], [], []>} : vector<1x128xf32>, vector<128x512xf32>, vector<1x512xf32> -> vector<1x512xf32>
    %79 = arith.addf %77, %78 : vector<1x512xf32>
    %80 = vector.extract_strided_slice %79 {offsets = [0, 0], sizes = [1, 256], strides = [1, 1]} : vector<1x512xf32> to vector<1x256xf32>
    %81 = arith.negf %80 : vector<1x256xf32>
    %82 = math.exp %81 : vector<1x256xf32>
    %cst_44 = arith.constant 1.000000e+00 : f32
    %83 = vector.broadcast %cst_44 : f32 to vector<1x256xf32>
    %84 = arith.addf %83, %82 : vector<1x256xf32>
    %85 = arith.divf %83, %84 : vector<1x256xf32>
    %86 = vector.extract_strided_slice %79 {offsets = [0, 256], sizes = [1, 128], strides = [1, 1]} : vector<1x512xf32> to vector<1x128xf32>
    %87 = math.tanh %86 : vector<1x128xf32>
    %88 = vector.extract_strided_slice %79 {offsets = [0, 384], sizes = [1, 128], strides = [1, 1]} : vector<1x512xf32> to vector<1x128xf32>
    %89 = arith.negf %88 : vector<1x128xf32>
    %90 = math.exp %89 : vector<1x128xf32>
    %cst_45 = arith.constant 1.000000e+00 : f32
    %91 = vector.broadcast %cst_45 : f32 to vector<1x128xf32>
    %92 = arith.addf %91, %90 : vector<1x128xf32>
    %93 = arith.divf %91, %92 : vector<1x128xf32>
    %94 = vector.extract_strided_slice %85 {offsets = [0, 128], sizes = [1, 128], strides = [1, 1]} : vector<1x256xf32> to vector<1x128xf32>
    %95 = arith.mulf %94, %73 : vector<1x128xf32>
    %96 = vector.extract_strided_slice %85 {offsets = [0, 0], sizes = [1, 128], strides = [1, 1]} : vector<1x256xf32> to vector<1x128xf32>
    %97 = arith.mulf %96, %87 : vector<1x128xf32>
    %98 = arith.addf %95, %97 : vector<1x128xf32>
    %99 = math.tanh %98 : vector<1x128xf32>
    %100 = arith.mulf %93, %99 : vector<1x128xf32>
    %c2_46 = arith.constant 2 : index
    %c0_47 = arith.constant 0 : index
    %101 = vector.load %arg13[%c2_46, %c0_47] : memref<8x128xf32, #tpu.memory_space<vmem>>, vector<1x128xf32>
    tpu.vector_store %arg13[%c2_46, %c0_47], %100 {strides = array<i32>} : memref<8x128xf32, #tpu.memory_space<vmem>>, vector<1x128xf32>,
    %c3 = arith.constant 3 : index
    %c0_48 = arith.constant 0 : index
    %102 = vector.load %arg14[%c3, %c0_48] : memref<8x512xf32, #tpu.memory_space<vmem>>, vector<1x512xf32>
    %cst_49 = arith.constant dense<0.000000e+00> : vector<1x512xf32>
    %103 = tpu.matmul %100, %22, %cst_49 {dimension_numbers = #tpu.dot_dimension_numbers<[1], [0], [0], [1], [0, 0, 1, 1], [], []>} : vector<1x128xf32>, vector<128x512xf32>, vector<1x512xf32> -> vector<1x512xf32>
    %104 = arith.addf %102, %103 : vector<1x512xf32>
    %105 = vector.extract_strided_slice %104 {offsets = [0, 0], sizes = [1, 256], strides = [1, 1]} : vector<1x512xf32> to vector<1x256xf32>
    %106 = arith.negf %105 : vector<1x256xf32>
    %107 = math.exp %106 : vector<1x256xf32>
    %cst_50 = arith.constant 1.000000e+00 : f32
    %108 = vector.broadcast %cst_50 : f32 to vector<1x256xf32>
    %109 = arith.addf %108, %107 : vector<1x256xf32>
    %110 = arith.divf %108, %109 : vector<1x256xf32>
    %111 = vector.extract_strided_slice %104 {offsets = [0, 256], sizes = [1, 128], strides = [1, 1]} : vector<1x512xf32> to vector<1x128xf32>
    %112 = math.tanh %111 : vector<1x128xf32>
    %113 = vector.extract_strided_slice %104 {offsets = [0, 384], sizes = [1, 128], strides = [1, 1]} : vector<1x512xf32> to vector<1x128xf32>
    %114 = arith.negf %113 : vector<1x128xf32>
    %115 = math.exp %114 : vector<1x128xf32>
    %cst_51 = arith.constant 1.000000e+00 : f32
    %116 = vector.broadcast %cst_51 : f32 to vector<1x128xf32>
    %117 = arith.addf %116, %115 : vector<1x128xf32>
    %118 = arith.divf %116, %117 : vector<1x128xf32>
    %119 = vector.extract_strided_slice %110 {offsets = [0, 128], sizes = [1, 128], strides = [1, 1]} : vector<1x256xf32> to vector<1x128xf32>
    %120 = arith.mulf %119, %98 : vector<1x128xf32>
    %121 = vector.extract_strided_slice %110 {offsets = [0, 0], sizes = [1, 128], strides = [1, 1]} : vector<1x256xf32> to vector<1x128xf32>
    %122 = arith.mulf %121, %112 : vector<1x128xf32>
    %123 = arith.addf %120, %122 : vector<1x128xf32>
    %124 = math.tanh %123 : vector<1x128xf32>
    %125 = arith.mulf %118, %124 : vector<1x128xf32>
    %c3_52 = arith.constant 3 : index
    %c0_53 = arith.constant 0 : index
    %126 = vector.load %arg13[%c3_52, %c0_53] : memref<8x128xf32, #tpu.memory_space<vmem>>, vector<1x128xf32>
    tpu.vector_store %arg13[%c3_52, %c0_53], %125 {strides = array<i32>} : memref<8x128xf32, #tpu.memory_space<vmem>>, vector<1x128xf32>,
    %c4 = arith.constant 4 : index
    %c0_54 = arith.constant 0 : index
    %127 = vector.load %arg14[%c4, %c0_54] : memref<8x512xf32, #tpu.memory_space<vmem>>, vector<1x512xf32>
    %cst_55 = arith.constant dense<0.000000e+00> : vector<1x512xf32>
    %128 = tpu.matmul %125, %22, %cst_55 {dimension_numbers = #tpu.dot_dimension_numbers<[1], [0], [0], [1], [0, 0, 1, 1], [], []>} : vector<1x128xf32>, vector<128x512xf32>, vector<1x512xf32> -> vector<1x512xf32>
    %129 = arith.addf %127, %128 : vector<1x512xf32>
    %130 = vector.extract_strided_slice %129 {offsets = [0, 0], sizes = [1, 256], strides = [1, 1]} : vector<1x512xf32> to vector<1x256xf32>
    %131 = arith.negf %130 : vector<1x256xf32>
    %132 = math.exp %131 : vector<1x256xf32>
    %cst_56 = arith.constant 1.000000e+00 : f32
    %133 = vector.broadcast %cst_56 : f32 to vector<1x256xf32>
    %134 = arith.addf %133, %132 : vector<1x256xf32>
    %135 = arith.divf %133, %134 : vector<1x256xf32>
    %136 = vector.extract_strided_slice %129 {offsets = [0, 256], sizes = [1, 128], strides = [1, 1]} : vector<1x512xf32> to vector<1x128xf32>
    %137 = math.tanh %136 : vector<1x128xf32>
    %138 = vector.extract_strided_slice %129 {offsets = [0, 384], sizes = [1, 128], strides = [1, 1]} : vector<1x512xf32> to vector<1x128xf32>
    %139 = arith.negf %138 : vector<1x128xf32>
    %140 = math.exp %139 : vector<1x128xf32>
    %cst_57 = arith.constant 1.000000e+00 : f32
    %141 = vector.broadcast %cst_57 : f32 to vector<1x128xf32>
    %142 = arith.addf %141, %140 : vector<1x128xf32>
    %143 = arith.divf %141, %142 : vector<1x128xf32>
    %144 = vector.extract_strided_slice %135 {offsets = [0, 128], sizes = [1, 128], strides = [1, 1]} : vector<1x256xf32> to vector<1x128xf32>
    %145 = arith.mulf %144, %123 : vector<1x128xf32>
    %146 = vector.extract_strided_slice %135 {offsets = [0, 0], sizes = [1, 128], strides = [1, 1]} : vector<1x256xf32> to vector<1x128xf32>
    %147 = arith.mulf %146, %137 : vector<1x128xf32>
    %148 = arith.addf %145, %147 : vector<1x128xf32>
    %149 = math.tanh %148 : vector<1x128xf32>
    %150 = arith.mulf %143, %149 : vector<1x128xf32>
    %c4_58 = arith.constant 4 : index
    %c0_59 = arith.constant 0 : index
    %151 = vector.load %arg13[%c4_58, %c0_59] : memref<8x128xf32, #tpu.memory_space<vmem>>, vector<1x128xf32>
    tpu.vector_store %arg13[%c4_58, %c0_59], %150 {strides = array<i32>} : memref<8x128xf32, #tpu.memory_space<vmem>>, vector<1x128xf32>,
    %c5 = arith.constant 5 : index
    %c0_60 = arith.constant 0 : index
    %152 = vector.load %arg14[%c5, %c0_60] : memref<8x512xf32, #tpu.memory_space<vmem>>, vector<1x512xf32>
    %cst_61 = arith.constant dense<0.000000e+00> : vector<1x512xf32>
    %153 = tpu.matmul %150, %22, %cst_61 {dimension_numbers = #tpu.dot_dimension_numbers<[1], [0], [0], [1], [0, 0, 1, 1], [], []>} : vector<1x128xf32>, vector<128x512xf32>, vector<1x512xf32> -> vector<1x512xf32>
    %154 = arith.addf %152, %153 : vector<1x512xf32>
    %155 = vector.extract_strided_slice %154 {offsets = [0, 0], sizes = [1, 256], strides = [1, 1]} : vector<1x512xf32> to vector<1x256xf32>
    %156 = arith.negf %155 : vector<1x256xf32>
    %157 = math.exp %156 : vector<1x256xf32>
    %cst_62 = arith.constant 1.000000e+00 : f32
    %158 = vector.broadcast %cst_62 : f32 to vector<1x256xf32>
    %159 = arith.addf %158, %157 : vector<1x256xf32>
    %160 = arith.divf %158, %159 : vector<1x256xf32>
    %161 = vector.extract_strided_slice %154 {offsets = [0, 256], sizes = [1, 128], strides = [1, 1]} : vector<1x512xf32> to vector<1x128xf32>
    %162 = math.tanh %161 : vector<1x128xf32>
    %163 = vector.extract_strided_slice %154 {offsets = [0, 384], sizes = [1, 128], strides = [1, 1]} : vector<1x512xf32> to vector<1x128xf32>
    %164 = arith.negf %163 : vector<1x128xf32>
    %165 = math.exp %164 : vector<1x128xf32>
    %cst_63 = arith.constant 1.000000e+00 : f32
    %166 = vector.broadcast %cst_63 : f32 to vector<1x128xf32>
    %167 = arith.addf %166, %165 : vector<1x128xf32>
    %168 = arith.divf %166, %167 : vector<1x128xf32>
    %169 = vector.extract_strided_slice %160 {offsets = [0, 128], sizes = [1, 128], strides = [1, 1]} : vector<1x256xf32> to vector<1x128xf32>
    %170 = arith.mulf %169, %148 : vector<1x128xf32>
    %171 = vector.extract_strided_slice %160 {offsets = [0, 0], sizes = [1, 128], strides = [1, 1]} : vector<1x256xf32> to vector<1x128xf32>
    %172 = arith.mulf %171, %162 : vector<1x128xf32>
    %173 = arith.addf %170, %172 : vector<1x128xf32>
    %174 = math.tanh %173 : vector<1x128xf32>
    %175 = arith.mulf %168, %174 : vector<1x128xf32>
    %c5_64 = arith.constant 5 : index
    %c0_65 = arith.constant 0 : index
    %176 = vector.load %arg13[%c5_64, %c0_65] : memref<8x128xf32, #tpu.memory_space<vmem>>, vector<1x128xf32>
    tpu.vector_store %arg13[%c5_64, %c0_65], %175 {strides = array<i32>} : memref<8x128xf32, #tpu.memory_space<vmem>>, vector<1x128xf32>,
    %c6 = arith.constant 6 : index
    %c0_66 = arith.constant 0 : index
    %177 = vector.load %arg14[%c6, %c0_66] : memref<8x512xf32, #tpu.memory_space<vmem>>, vector<1x512xf32>
    %cst_67 = arith.constant dense<0.000000e+00> : vector<1x512xf32>
    %178 = tpu.matmul %175, %22, %cst_67 {dimension_numbers = #tpu.dot_dimension_numbers<[1], [0], [0], [1], [0, 0, 1, 1], [], []>} : vector<1x128xf32>, vector<128x512xf32>, vector<1x512xf32> -> vector<1x512xf32>
    %179 = arith.addf %177, %178 : vector<1x512xf32>
    %180 = vector.extract_strided_slice %179 {offsets = [0, 0], sizes = [1, 256], strides = [1, 1]} : vector<1x512xf32> to vector<1x256xf32>
    %181 = arith.negf %180 : vector<1x256xf32>
    %182 = math.exp %181 : vector<1x256xf32>
    %cst_68 = arith.constant 1.000000e+00 : f32
    %183 = vector.broadcast %cst_68 : f32 to vector<1x256xf32>
    %184 = arith.addf %183, %182 : vector<1x256xf32>
    %185 = arith.divf %183, %184 : vector<1x256xf32>
    %186 = vector.extract_strided_slice %179 {offsets = [0, 256], sizes = [1, 128], strides = [1, 1]} : vector<1x512xf32> to vector<1x128xf32>
    %187 = math.tanh %186 : vector<1x128xf32>
    %188 = vector.extract_strided_slice %179 {offsets = [0, 384], sizes = [1, 128], strides = [1, 1]} : vector<1x512xf32> to vector<1x128xf32>
    %189 = arith.negf %188 : vector<1x128xf32>
    %190 = math.exp %189 : vector<1x128xf32>
    %cst_69 = arith.constant 1.000000e+00 : f32
    %191 = vector.broadcast %cst_69 : f32 to vector<1x128xf32>
    %192 = arith.addf %191, %190 : vector<1x128xf32>
    %193 = arith.divf %191, %192 : vector<1x128xf32>
    %194 = vector.extract_strided_slice %185 {offsets = [0, 128], sizes = [1, 128], strides = [1, 1]} : vector<1x256xf32> to vector<1x128xf32>
    %195 = arith.mulf %194, %173 : vector<1x128xf32>
    %196 = vector.extract_strided_slice %185 {offsets = [0, 0], sizes = [1, 128], strides = [1, 1]} : vector<1x256xf32> to vector<1x128xf32>
    %197 = arith.mulf %196, %187 : vector<1x128xf32>
    %198 = arith.addf %195, %197 : vector<1x128xf32>
    %199 = math.tanh %198 : vector<1x128xf32>
    %200 = arith.mulf %193, %199 : vector<1x128xf32>
    %c6_70 = arith.constant 6 : index
    %c0_71 = arith.constant 0 : index
    %201 = vector.load %arg13[%c6_70, %c0_71] : memref<8x128xf32, #tpu.memory_space<vmem>>, vector<1x128xf32>
    tpu.vector_store %arg13[%c6_70, %c0_71], %200 {strides = array<i32>} : memref<8x128xf32, #tpu.memory_space<vmem>>, vector<1x128xf32>,
    %c7 = arith.constant 7 : index
    %c0_72 = arith.constant 0 : index
    %202 = vector.load %arg14[%c7, %c0_72] : memref<8x512xf32, #tpu.memory_space<vmem>>, vector<1x512xf32>
    %cst_73 = arith.constant dense<0.000000e+00> : vector<1x512xf32>
    %203 = tpu.matmul %200, %22, %cst_73 {dimension_numbers = #tpu.dot_dimension_numbers<[1], [0], [0], [1], [0, 0, 1, 1], [], []>} : vector<1x128xf32>, vector<128x512xf32>, vector<1x512xf32> -> vector<1x512xf32>
    %204 = arith.addf %202, %203 : vector<1x512xf32>
    %205 = vector.extract_strided_slice %204 {offsets = [0, 0], sizes = [1, 256], strides = [1, 1]} : vector<1x512xf32> to vector<1x256xf32>
    %206 = arith.negf %205 : vector<1x256xf32>
    %207 = math.exp %206 : vector<1x256xf32>
    %cst_74 = arith.constant 1.000000e+00 : f32
    %208 = vector.broadcast %cst_74 : f32 to vector<1x256xf32>
    %209 = arith.addf %208, %207 : vector<1x256xf32>
    %210 = arith.divf %208, %209 : vector<1x256xf32>
    %211 = vector.extract_strided_slice %204 {offsets = [0, 256], sizes = [1, 128], strides = [1, 1]} : vector<1x512xf32> to vector<1x128xf32>
    %212 = math.tanh %211 : vector<1x128xf32>
    %213 = vector.extract_strided_slice %204 {offsets = [0, 384], sizes = [1, 128], strides = [1, 1]} : vector<1x512xf32> to vector<1x128xf32>
    %214 = arith.negf %213 : vector<1x128xf32>
    %215 = math.exp %214 : vector<1x128xf32>
    %cst_75 = arith.constant 1.000000e+00 : f32
    %216 = vector.broadcast %cst_75 : f32 to vector<1x128xf32>
    %217 = arith.addf %216, %215 : vector<1x128xf32>
    %218 = arith.divf %216, %217 : vector<1x128xf32>
    %219 = vector.extract_strided_slice %210 {offsets = [0, 128], sizes = [1, 128], strides = [1, 1]} : vector<1x256xf32> to vector<1x128xf32>
    %220 = arith.mulf %219, %198 : vector<1x128xf32>
    %221 = vector.extract_strided_slice %210 {offsets = [0, 0], sizes = [1, 128], strides = [1, 1]} : vector<1x256xf32> to vector<1x128xf32>
    %222 = arith.mulf %221, %212 : vector<1x128xf32>
    %223 = arith.addf %220, %222 : vector<1x128xf32>
    %224 = math.tanh %223 : vector<1x128xf32>
    %225 = arith.mulf %218, %224 : vector<1x128xf32>
    %c7_76 = arith.constant 7 : index
    %c0_77 = arith.constant 0 : index
    %226 = vector.load %arg13[%c7_76, %c0_77] : memref<8x128xf32, #tpu.memory_space<vmem>>, vector<1x128xf32>
    tpu.vector_store %arg13[%c7_76, %c0_77], %225 {strides = array<i32>} : memref<8x128xf32, #tpu.memory_space<vmem>>, vector<1x128xf32>,
    %c0_78 = arith.constant 0 : index
    %c0_79 = arith.constant 0 : index
    %c0_80 = arith.constant 0 : index
    %227 = vector.load %arg11[%c0_78, %c0_79, %c0_80] : memref<3x1x128xf32, #tpu.memory_space<vmem>>, vector<1x1x128xf32>
    %228 = vector.shape_cast %227 : vector<1x1x128xf32> to vector<1x128xf32>
    %229 = vector.shape_cast %225 : vector<1x128xf32> to vector<1x1x128xf32>
    tpu.vector_store %arg11[%c0_78, %c0_79, %c0_80], %229 {strides = array<i32>} : memref<3x1x128xf32, #tpu.memory_space<vmem>>, vector<1x1x128xf32>,
    %c0_81 = arith.constant 0 : index
    %c0_82 = arith.constant 0 : index
    %c0_83 = arith.constant 0 : index
    %230 = vector.load %arg12[%c0_81, %c0_82, %c0_83] : memref<3x1x128xf32, #tpu.memory_space<vmem>>, vector<1x1x128xf32>
    %231 = vector.shape_cast %230 : vector<1x1x128xf32> to vector<1x128xf32>
    %232 = vector.shape_cast %223 : vector<1x128xf32> to vector<1x1x128xf32>
    tpu.vector_store %arg12[%c0_81, %c0_82, %c0_83], %232 {strides = array<i32>} : memref<3x1x128xf32, #tpu.memory_space<vmem>>, vector<1x1x128xf32>,
    %c0_84 = arith.constant 0 : index
    %c0_85 = arith.constant 0 : index
    %233 = vector.load %arg13[%c0_84, %c0_85] : memref<8x128xf32, #tpu.memory_space<vmem>>, vector<8x128xf32>
    %c1_86 = arith.constant 1 : index
    %c0_87 = arith.constant 0 : index
    %c0_88 = arith.constant 0 : index
    %234 = vector.load %arg3[%c1_86, %c0_87, %c0_88] : memref<3x128x512xf32, #tpu.memory_space<vmem>>, vector<1x128x512xf32>
    %235 = vector.shape_cast %234 : vector<1x128x512xf32> to vector<128x512xf32>
    %cst_89 = arith.constant dense<0.000000e+00> : vector<8x512xf32>
    %236 = tpu.matmul %233, %235, %cst_89 {dimension_numbers = #tpu.dot_dimension_numbers<[1], [0], [0], [1], [0, 0, 1, 1], [], []>} : vector<8x128xf32>, vector<128x512xf32>, vector<8x512xf32> -> vector<8x512xf32>
    %c1_90 = arith.constant 1 : index
    %c0_91 = arith.constant 0 : index
    %c0_92 = arith.constant 0 : index
    %237 = vector.load %arg5[%c1_90, %c0_91, %c0_92] : memref<3x1x512xf32, #tpu.memory_space<vmem>>, vector<1x1x512xf32>
    %238 = vector.shape_cast %237 : vector<1x1x512xf32> to vector<1x512xf32>
    %239 = vector.broadcast %238 : vector<1x512xf32> to vector<8x512xf32>
    %240 = arith.addf %236, %239 : vector<8x512xf32>
    %c0_93 = arith.constant 0 : index
    %c0_94 = arith.constant 0 : index
    %241 = vector.load %arg14[%c0_93, %c0_94] : memref<8x512xf32, #tpu.memory_space<vmem>>, vector<8x512xf32>
    tpu.vector_store %arg14[%c0_93, %c0_94], %240 {strides = array<i32>} : memref<8x512xf32, #tpu.memory_space<vmem>>, vector<8x512xf32>,
    %c1_95 = arith.constant 1 : index
    %c0_96 = arith.constant 0 : index
    %c0_97 = arith.constant 0 : index
    %242 = vector.load %arg4[%c1_95, %c0_96, %c0_97] : memref<3x128x512xf32, #tpu.memory_space<vmem>>, vector<1x128x512xf32>
    %243 = vector.shape_cast %242 : vector<1x128x512xf32> to vector<128x512xf32>
    %c1_98 = arith.constant 1 : index
    %c0_99 = arith.constant 0 : index
    %c0_100 = arith.constant 0 : index
    %244 = vector.load %arg8[%c1_98, %c0_99, %c0_100] : memref<3x1x128xf32, #tpu.memory_space<vmem>>, vector<1x1x128xf32>
    %245 = vector.shape_cast %244 : vector<1x1x128xf32> to vector<1x128xf32>
    %c1_101 = arith.constant 1 : index
    %c0_102 = arith.constant 0 : index
    %c0_103 = arith.constant 0 : index
    %246 = vector.load %arg9[%c1_101, %c0_102, %c0_103] : memref<3x1x128xf32, #tpu.memory_space<vmem>>, vector<1x1x128xf32>
    %247 = vector.shape_cast %246 : vector<1x1x128xf32> to vector<1x128xf32>
    %c0_104 = arith.constant 0 : index
    %c0_105 = arith.constant 0 : index
    %248 = vector.load %arg14[%c0_104, %c0_105] : memref<8x512xf32, #tpu.memory_space<vmem>>, vector<1x512xf32>
    %cst_106 = arith.constant dense<0.000000e+00> : vector<1x512xf32>
    %249 = tpu.matmul %245, %243, %cst_106 {dimension_numbers = #tpu.dot_dimension_numbers<[1], [0], [0], [1], [0, 0, 1, 1], [], []>} : vector<1x128xf32>, vector<128x512xf32>, vector<1x512xf32> -> vector<1x512xf32>
    %250 = arith.addf %248, %249 : vector<1x512xf32>
    %251 = vector.extract_strided_slice %250 {offsets = [0, 0], sizes = [1, 256], strides = [1, 1]} : vector<1x512xf32> to vector<1x256xf32>
    %252 = arith.negf %251 : vector<1x256xf32>
    %253 = math.exp %252 : vector<1x256xf32>
    %cst_107 = arith.constant 1.000000e+00 : f32
    %254 = vector.broadcast %cst_107 : f32 to vector<1x256xf32>
    %255 = arith.addf %254, %253 : vector<1x256xf32>
    %256 = arith.divf %254, %255 : vector<1x256xf32>
    %257 = vector.extract_strided_slice %250 {offsets = [0, 256], sizes = [1, 128], strides = [1, 1]} : vector<1x512xf32> to vector<1x128xf32>
    %258 = math.tanh %257 : vector<1x128xf32>
    %259 = vector.extract_strided_slice %250 {offsets = [0, 384], sizes = [1, 128], strides = [1, 1]} : vector<1x512xf32> to vector<1x128xf32>
    %260 = arith.negf %259 : vector<1x128xf32>
    %261 = math.exp %260 : vector<1x128xf32>
    %cst_108 = arith.constant 1.000000e+00 : f32
    %262 = vector.broadcast %cst_108 : f32 to vector<1x128xf32>
    %263 = arith.addf %262, %261 : vector<1x128xf32>
    %264 = arith.divf %262, %263 : vector<1x128xf32>
    %265 = vector.extract_strided_slice %256 {offsets = [0, 128], sizes = [1, 128], strides = [1, 1]} : vector<1x256xf32> to vector<1x128xf32>
    %266 = arith.mulf %265, %247 : vector<1x128xf32>
    %267 = vector.extract_strided_slice %256 {offsets = [0, 0], sizes = [1, 128], strides = [1, 1]} : vector<1x256xf32> to vector<1x128xf32>
    %268 = arith.mulf %267, %258 : vector<1x128xf32>
    %269 = arith.addf %266, %268 : vector<1x128xf32>
    %270 = math.tanh %269 : vector<1x128xf32>
    %271 = arith.mulf %264, %270 : vector<1x128xf32>
    %c0_109 = arith.constant 0 : index
    %c0_110 = arith.constant 0 : index
    %272 = vector.load %arg13[%c0_109, %c0_110] : memref<8x128xf32, #tpu.memory_space<vmem>>, vector<1x128xf32>
    tpu.vector_store %arg13[%c0_109, %c0_110], %271 {strides = array<i32>} : memref<8x128xf32, #tpu.memory_space<vmem>>, vector<1x128xf32>,
    %c1_111 = arith.constant 1 : index
    %c0_112 = arith.constant 0 : index
    %273 = vector.load %arg14[%c1_111, %c0_112] : memref<8x512xf32, #tpu.memory_space<vmem>>, vector<1x512xf32>
    %cst_113 = arith.constant dense<0.000000e+00> : vector<1x512xf32>
    %274 = tpu.matmul %271, %243, %cst_113 {dimension_numbers = #tpu.dot_dimension_numbers<[1], [0], [0], [1], [0, 0, 1, 1], [], []>} : vector<1x128xf32>, vector<128x512xf32>, vector<1x512xf32> -> vector<1x512xf32>
    %275 = arith.addf %273, %274 : vector<1x512xf32>
    %276 = vector.extract_strided_slice %275 {offsets = [0, 0], sizes = [1, 256], strides = [1, 1]} : vector<1x512xf32> to vector<1x256xf32>
    %277 = arith.negf %276 : vector<1x256xf32>
    %278 = math.exp %277 : vector<1x256xf32>
    %cst_114 = arith.constant 1.000000e+00 : f32
    %279 = vector.broadcast %cst_114 : f32 to vector<1x256xf32>
    %280 = arith.addf %279, %278 : vector<1x256xf32>
    %281 = arith.divf %279, %280 : vector<1x256xf32>
    %282 = vector.extract_strided_slice %275 {offsets = [0, 256], sizes = [1, 128], strides = [1, 1]} : vector<1x512xf32> to vector<1x128xf32>
    %283 = math.tanh %282 : vector<1x128xf32>
    %284 = vector.extract_strided_slice %275 {offsets = [0, 384], sizes = [1, 128], strides = [1, 1]} : vector<1x512xf32> to vector<1x128xf32>
    %285 = arith.negf %284 : vector<1x128xf32>
    %286 = math.exp %285 : vector<1x128xf32>
    %cst_115 = arith.constant 1.000000e+00 : f32
    %287 = vector.broadcast %cst_115 : f32 to vector<1x128xf32>
    %288 = arith.addf %287, %286 : vector<1x128xf32>
    %289 = arith.divf %287, %288 : vector<1x128xf32>
    %290 = vector.extract_strided_slice %281 {offsets = [0, 128], sizes = [1, 128], strides = [1, 1]} : vector<1x256xf32> to vector<1x128xf32>
    %291 = arith.mulf %290, %269 : vector<1x128xf32>
    %292 = vector.extract_strided_slice %281 {offsets = [0, 0], sizes = [1, 128], strides = [1, 1]} : vector<1x256xf32> to vector<1x128xf32>
    %293 = arith.mulf %292, %283 : vector<1x128xf32>
    %294 = arith.addf %291, %293 : vector<1x128xf32>
    %295 = math.tanh %294 : vector<1x128xf32>
    %296 = arith.mulf %289, %295 : vector<1x128xf32>
    %c1_116 = arith.constant 1 : index
    %c0_117 = arith.constant 0 : index
    %297 = vector.load %arg13[%c1_116, %c0_117] : memref<8x128xf32, #tpu.memory_space<vmem>>, vector<1x128xf32>
    tpu.vector_store %arg13[%c1_116, %c0_117], %296 {strides = array<i32>} : memref<8x128xf32, #tpu.memory_space<vmem>>, vector<1x128xf32>,
    %c2_118 = arith.constant 2 : index
    %c0_119 = arith.constant 0 : index
    %298 = vector.load %arg14[%c2_118, %c0_119] : memref<8x512xf32, #tpu.memory_space<vmem>>, vector<1x512xf32>
    %cst_120 = arith.constant dense<0.000000e+00> : vector<1x512xf32>
    %299 = tpu.matmul %296, %243, %cst_120 {dimension_numbers = #tpu.dot_dimension_numbers<[1], [0], [0], [1], [0, 0, 1, 1], [], []>} : vector<1x128xf32>, vector<128x512xf32>, vector<1x512xf32> -> vector<1x512xf32>
    %300 = arith.addf %298, %299 : vector<1x512xf32>
    %301 = vector.extract_strided_slice %300 {offsets = [0, 0], sizes = [1, 256], strides = [1, 1]} : vector<1x512xf32> to vector<1x256xf32>
    %302 = arith.negf %301 : vector<1x256xf32>
    %303 = math.exp %302 : vector<1x256xf32>
    %cst_121 = arith.constant 1.000000e+00 : f32
    %304 = vector.broadcast %cst_121 : f32 to vector<1x256xf32>
    %305 = arith.addf %304, %303 : vector<1x256xf32>
    %306 = arith.divf %304, %305 : vector<1x256xf32>
    %307 = vector.extract_strided_slice %300 {offsets = [0, 256], sizes = [1, 128], strides = [1, 1]} : vector<1x512xf32> to vector<1x128xf32>
    %308 = math.tanh %307 : vector<1x128xf32>
    %309 = vector.extract_strided_slice %300 {offsets = [0, 384], sizes = [1, 128], strides = [1, 1]} : vector<1x512xf32> to vector<1x128xf32>
    %310 = arith.negf %309 : vector<1x128xf32>
    %311 = math.exp %310 : vector<1x128xf32>
    %cst_122 = arith.constant 1.000000e+00 : f32
    %312 = vector.broadcast %cst_122 : f32 to vector<1x128xf32>
    %313 = arith.addf %312, %311 : vector<1x128xf32>
    %314 = arith.divf %312, %313 : vector<1x128xf32>
    %315 = vector.extract_strided_slice %306 {offsets = [0, 128], sizes = [1, 128], strides = [1, 1]} : vector<1x256xf32> to vector<1x128xf32>
    %316 = arith.mulf %315, %294 : vector<1x128xf32>
    %317 = vector.extract_strided_slice %306 {offsets = [0, 0], sizes = [1, 128], strides = [1, 1]} : vector<1x256xf32> to vector<1x128xf32>
    %318 = arith.mulf %317, %308 : vector<1x128xf32>
    %319 = arith.addf %316, %318 : vector<1x128xf32>
    %320 = math.tanh %319 : vector<1x128xf32>
    %321 = arith.mulf %314, %320 : vector<1x128xf32>
    %c2_123 = arith.constant 2 : index
    %c0_124 = arith.constant 0 : index
    %322 = vector.load %arg13[%c2_123, %c0_124] : memref<8x128xf32, #tpu.memory_space<vmem>>, vector<1x128xf32>
    tpu.vector_store %arg13[%c2_123, %c0_124], %321 {strides = array<i32>} : memref<8x128xf32, #tpu.memory_space<vmem>>, vector<1x128xf32>,
    %c3_125 = arith.constant 3 : index
    %c0_126 = arith.constant 0 : index
    %323 = vector.load %arg14[%c3_125, %c0_126] : memref<8x512xf32, #tpu.memory_space<vmem>>, vector<1x512xf32>
    %cst_127 = arith.constant dense<0.000000e+00> : vector<1x512xf32>
    %324 = tpu.matmul %321, %243, %cst_127 {dimension_numbers = #tpu.dot_dimension_numbers<[1], [0], [0], [1], [0, 0, 1, 1], [], []>} : vector<1x128xf32>, vector<128x512xf32>, vector<1x512xf32> -> vector<1x512xf32>
    %325 = arith.addf %323, %324 : vector<1x512xf32>
    %326 = vector.extract_strided_slice %325 {offsets = [0, 0], sizes = [1, 256], strides = [1, 1]} : vector<1x512xf32> to vector<1x256xf32>
    %327 = arith.negf %326 : vector<1x256xf32>
    %328 = math.exp %327 : vector<1x256xf32>
    %cst_128 = arith.constant 1.000000e+00 : f32
    %329 = vector.broadcast %cst_128 : f32 to vector<1x256xf32>
    %330 = arith.addf %329, %328 : vector<1x256xf32>
    %331 = arith.divf %329, %330 : vector<1x256xf32>
    %332 = vector.extract_strided_slice %325 {offsets = [0, 256], sizes = [1, 128], strides = [1, 1]} : vector<1x512xf32> to vector<1x128xf32>
    %333 = math.tanh %332 : vector<1x128xf32>
    %334 = vector.extract_strided_slice %325 {offsets = [0, 384], sizes = [1, 128], strides = [1, 1]} : vector<1x512xf32> to vector<1x128xf32>
    %335 = arith.negf %334 : vector<1x128xf32>
    %336 = math.exp %335 : vector<1x128xf32>
    %cst_129 = arith.constant 1.000000e+00 : f32
    %337 = vector.broadcast %cst_129 : f32 to vector<1x128xf32>
    %338 = arith.addf %337, %336 : vector<1x128xf32>
    %339 = arith.divf %337, %338 : vector<1x128xf32>
    %340 = vector.extract_strided_slice %331 {offsets = [0, 128], sizes = [1, 128], strides = [1, 1]} : vector<1x256xf32> to vector<1x128xf32>
    %341 = arith.mulf %340, %319 : vector<1x128xf32>
    %342 = vector.extract_strided_slice %331 {offsets = [0, 0], sizes = [1, 128], strides = [1, 1]} : vector<1x256xf32> to vector<1x128xf32>
    %343 = arith.mulf %342, %333 : vector<1x128xf32>
    %344 = arith.addf %341, %343 : vector<1x128xf32>
    %345 = math.tanh %344 : vector<1x128xf32>
    %346 = arith.mulf %339, %345 : vector<1x128xf32>
    %c3_130 = arith.constant 3 : index
    %c0_131 = arith.constant 0 : index
    %347 = vector.load %arg13[%c3_130, %c0_131] : memref<8x128xf32, #tpu.memory_space<vmem>>, vector<1x128xf32>
    tpu.vector_store %arg13[%c3_130, %c0_131], %346 {strides = array<i32>} : memref<8x128xf32, #tpu.memory_space<vmem>>, vector<1x128xf32>,
    %c4_132 = arith.constant 4 : index
    %c0_133 = arith.constant 0 : index
    %348 = vector.load %arg14[%c4_132, %c0_133] : memref<8x512xf32, #tpu.memory_space<vmem>>, vector<1x512xf32>
    %cst_134 = arith.constant dense<0.000000e+00> : vector<1x512xf32>
    %349 = tpu.matmul %346, %243, %cst_134 {dimension_numbers = #tpu.dot_dimension_numbers<[1], [0], [0], [1], [0, 0, 1, 1], [], []>} : vector<1x128xf32>, vector<128x512xf32>, vector<1x512xf32> -> vector<1x512xf32>
    %350 = arith.addf %348, %349 : vector<1x512xf32>
    %351 = vector.extract_strided_slice %350 {offsets = [0, 0], sizes = [1, 256], strides = [1, 1]} : vector<1x512xf32> to vector<1x256xf32>
    %352 = arith.negf %351 : vector<1x256xf32>
    %353 = math.exp %352 : vector<1x256xf32>
    %cst_135 = arith.constant 1.000000e+00 : f32
    %354 = vector.broadcast %cst_135 : f32 to vector<1x256xf32>
    %355 = arith.addf %354, %353 : vector<1x256xf32>
    %356 = arith.divf %354, %355 : vector<1x256xf32>
    %357 = vector.extract_strided_slice %350 {offsets = [0, 256], sizes = [1, 128], strides = [1, 1]} : vector<1x512xf32> to vector<1x128xf32>
    %358 = math.tanh %357 : vector<1x128xf32>
    %359 = vector.extract_strided_slice %350 {offsets = [0, 384], sizes = [1, 128], strides = [1, 1]} : vector<1x512xf32> to vector<1x128xf32>
    %360 = arith.negf %359 : vector<1x128xf32>
    %361 = math.exp %360 : vector<1x128xf32>
    %cst_136 = arith.constant 1.000000e+00 : f32
    %362 = vector.broadcast %cst_136 : f32 to vector<1x128xf32>
    %363 = arith.addf %362, %361 : vector<1x128xf32>
    %364 = arith.divf %362, %363 : vector<1x128xf32>
    %365 = vector.extract_strided_slice %356 {offsets = [0, 128], sizes = [1, 128], strides = [1, 1]} : vector<1x256xf32> to vector<1x128xf32>
    %366 = arith.mulf %365, %344 : vector<1x128xf32>
    %367 = vector.extract_strided_slice %356 {offsets = [0, 0], sizes = [1, 128], strides = [1, 1]} : vector<1x256xf32> to vector<1x128xf32>
    %368 = arith.mulf %367, %358 : vector<1x128xf32>
    %369 = arith.addf %366, %368 : vector<1x128xf32>
    %370 = math.tanh %369 : vector<1x128xf32>
    %371 = arith.mulf %364, %370 : vector<1x128xf32>
    %c4_137 = arith.constant 4 : index
    %c0_138 = arith.constant 0 : index
    %372 = vector.load %arg13[%c4_137, %c0_138] : memref<8x128xf32, #tpu.memory_space<vmem>>, vector<1x128xf32>
    tpu.vector_store %arg13[%c4_137, %c0_138], %371 {strides = array<i32>} : memref<8x128xf32, #tpu.memory_space<vmem>>, vector<1x128xf32>,
    %c5_139 = arith.constant 5 : index
    %c0_140 = arith.constant 0 : index
    %373 = vector.load %arg14[%c5_139, %c0_140] : memref<8x512xf32, #tpu.memory_space<vmem>>, vector<1x512xf32>
    %cst_141 = arith.constant dense<0.000000e+00> : vector<1x512xf32>
    %374 = tpu.matmul %371, %243, %cst_141 {dimension_numbers = #tpu.dot_dimension_numbers<[1], [0], [0], [1], [0, 0, 1, 1], [], []>} : vector<1x128xf32>, vector<128x512xf32>, vector<1x512xf32> -> vector<1x512xf32>
    %375 = arith.addf %373, %374 : vector<1x512xf32>
    %376 = vector.extract_strided_slice %375 {offsets = [0, 0], sizes = [1, 256], strides = [1, 1]} : vector<1x512xf32> to vector<1x256xf32>
    %377 = arith.negf %376 : vector<1x256xf32>
    %378 = math.exp %377 : vector<1x256xf32>
    %cst_142 = arith.constant 1.000000e+00 : f32
    %379 = vector.broadcast %cst_142 : f32 to vector<1x256xf32>
    %380 = arith.addf %379, %378 : vector<1x256xf32>
    %381 = arith.divf %379, %380 : vector<1x256xf32>
    %382 = vector.extract_strided_slice %375 {offsets = [0, 256], sizes = [1, 128], strides = [1, 1]} : vector<1x512xf32> to vector<1x128xf32>
    %383 = math.tanh %382 : vector<1x128xf32>
    %384 = vector.extract_strided_slice %375 {offsets = [0, 384], sizes = [1, 128], strides = [1, 1]} : vector<1x512xf32> to vector<1x128xf32>
    %385 = arith.negf %384 : vector<1x128xf32>
    %386 = math.exp %385 : vector<1x128xf32>
    %cst_143 = arith.constant 1.000000e+00 : f32
    %387 = vector.broadcast %cst_143 : f32 to vector<1x128xf32>
    %388 = arith.addf %387, %386 : vector<1x128xf32>
    %389 = arith.divf %387, %388 : vector<1x128xf32>
    %390 = vector.extract_strided_slice %381 {offsets = [0, 128], sizes = [1, 128], strides = [1, 1]} : vector<1x256xf32> to vector<1x128xf32>
    %391 = arith.mulf %390, %369 : vector<1x128xf32>
    %392 = vector.extract_strided_slice %381 {offsets = [0, 0], sizes = [1, 128], strides = [1, 1]} : vector<1x256xf32> to vector<1x128xf32>
    %393 = arith.mulf %392, %383 : vector<1x128xf32>
    %394 = arith.addf %391, %393 : vector<1x128xf32>
    %395 = math.tanh %394 : vector<1x128xf32>
    %396 = arith.mulf %389, %395 : vector<1x128xf32>
    %c5_144 = arith.constant 5 : index
    %c0_145 = arith.constant 0 : index
    %397 = vector.load %arg13[%c5_144, %c0_145] : memref<8x128xf32, #tpu.memory_space<vmem>>, vector<1x128xf32>
    tpu.vector_store %arg13[%c5_144, %c0_145], %396 {strides = array<i32>} : memref<8x128xf32, #tpu.memory_space<vmem>>, vector<1x128xf32>,
    %c6_146 = arith.constant 6 : index
    %c0_147 = arith.constant 0 : index
    %398 = vector.load %arg14[%c6_146, %c0_147] : memref<8x512xf32, #tpu.memory_space<vmem>>, vector<1x512xf32>
    %cst_148 = arith.constant dense<0.000000e+00> : vector<1x512xf32>
    %399 = tpu.matmul %396, %243, %cst_148 {dimension_numbers = #tpu.dot_dimension_numbers<[1], [0], [0], [1], [0, 0, 1, 1], [], []>} : vector<1x128xf32>, vector<128x512xf32>, vector<1x512xf32> -> vector<1x512xf32>
    %400 = arith.addf %398, %399 : vector<1x512xf32>
    %401 = vector.extract_strided_slice %400 {offsets = [0, 0], sizes = [1, 256], strides = [1, 1]} : vector<1x512xf32> to vector<1x256xf32>
    %402 = arith.negf %401 : vector<1x256xf32>
    %403 = math.exp %402 : vector<1x256xf32>
    %cst_149 = arith.constant 1.000000e+00 : f32
    %404 = vector.broadcast %cst_149 : f32 to vector<1x256xf32>
    %405 = arith.addf %404, %403 : vector<1x256xf32>
    %406 = arith.divf %404, %405 : vector<1x256xf32>
    %407 = vector.extract_strided_slice %400 {offsets = [0, 256], sizes = [1, 128], strides = [1, 1]} : vector<1x512xf32> to vector<1x128xf32>
    %408 = math.tanh %407 : vector<1x128xf32>
    %409 = vector.extract_strided_slice %400 {offsets = [0, 384], sizes = [1, 128], strides = [1, 1]} : vector<1x512xf32> to vector<1x128xf32>
    %410 = arith.negf %409 : vector<1x128xf32>
    %411 = math.exp %410 : vector<1x128xf32>
    %cst_150 = arith.constant 1.000000e+00 : f32
    %412 = vector.broadcast %cst_150 : f32 to vector<1x128xf32>
    %413 = arith.addf %412, %411 : vector<1x128xf32>
    %414 = arith.divf %412, %413 : vector<1x128xf32>
    %415 = vector.extract_strided_slice %406 {offsets = [0, 128], sizes = [1, 128], strides = [1, 1]} : vector<1x256xf32> to vector<1x128xf32>
    %416 = arith.mulf %415, %394 : vector<1x128xf32>
    %417 = vector.extract_strided_slice %406 {offsets = [0, 0], sizes = [1, 128], strides = [1, 1]} : vector<1x256xf32> to vector<1x128xf32>
    %418 = arith.mulf %417, %408 : vector<1x128xf32>
    %419 = arith.addf %416, %418 : vector<1x128xf32>
    %420 = math.tanh %419 : vector<1x128xf32>
    %421 = arith.mulf %414, %420 : vector<1x128xf32>
    %c6_151 = arith.constant 6 : index
    %c0_152 = arith.constant 0 : index
    %422 = vector.load %arg13[%c6_151, %c0_152] : memref<8x128xf32, #tpu.memory_space<vmem>>, vector<1x128xf32>
    tpu.vector_store %arg13[%c6_151, %c0_152], %421 {strides = array<i32>} : memref<8x128xf32, #tpu.memory_space<vmem>>, vector<1x128xf32>,
    %c7_153 = arith.constant 7 : index
    %c0_154 = arith.constant 0 : index
    %423 = vector.load %arg14[%c7_153, %c0_154] : memref<8x512xf32, #tpu.memory_space<vmem>>, vector<1x512xf32>
    %cst_155 = arith.constant dense<0.000000e+00> : vector<1x512xf32>
    %424 = tpu.matmul %421, %243, %cst_155 {dimension_numbers = #tpu.dot_dimension_numbers<[1], [0], [0], [1], [0, 0, 1, 1], [], []>} : vector<1x128xf32>, vector<128x512xf32>, vector<1x512xf32> -> vector<1x512xf32>
    %425 = arith.addf %423, %424 : vector<1x512xf32>
    %426 = vector.extract_strided_slice %425 {offsets = [0, 0], sizes = [1, 256], strides = [1, 1]} : vector<1x512xf32> to vector<1x256xf32>
    %427 = arith.negf %426 : vector<1x256xf32>
    %428 = math.exp %427 : vector<1x256xf32>
    %cst_156 = arith.constant 1.000000e+00 : f32
    %429 = vector.broadcast %cst_156 : f32 to vector<1x256xf32>
    %430 = arith.addf %429, %428 : vector<1x256xf32>
    %431 = arith.divf %429, %430 : vector<1x256xf32>
    %432 = vector.extract_strided_slice %425 {offsets = [0, 256], sizes = [1, 128], strides = [1, 1]} : vector<1x512xf32> to vector<1x128xf32>
    %433 = math.tanh %432 : vector<1x128xf32>
    %434 = vector.extract_strided_slice %425 {offsets = [0, 384], sizes = [1, 128], strides = [1, 1]} : vector<1x512xf32> to vector<1x128xf32>
    %435 = arith.negf %434 : vector<1x128xf32>
    %436 = math.exp %435 : vector<1x128xf32>
    %cst_157 = arith.constant 1.000000e+00 : f32
    %437 = vector.broadcast %cst_157 : f32 to vector<1x128xf32>
    %438 = arith.addf %437, %436 : vector<1x128xf32>
    %439 = arith.divf %437, %438 : vector<1x128xf32>
    %440 = vector.extract_strided_slice %431 {offsets = [0, 128], sizes = [1, 128], strides = [1, 1]} : vector<1x256xf32> to vector<1x128xf32>
    %441 = arith.mulf %440, %419 : vector<1x128xf32>
    %442 = vector.extract_strided_slice %431 {offsets = [0, 0], sizes = [1, 128], strides = [1, 1]} : vector<1x256xf32> to vector<1x128xf32>
    %443 = arith.mulf %442, %433 : vector<1x128xf32>
    %444 = arith.addf %441, %443 : vector<1x128xf32>
    %445 = math.tanh %444 : vector<1x128xf32>
    %446 = arith.mulf %439, %445 : vector<1x128xf32>
    %c7_158 = arith.constant 7 : index
    %c0_159 = arith.constant 0 : index
    %447 = vector.load %arg13[%c7_158, %c0_159] : memref<8x128xf32, #tpu.memory_space<vmem>>, vector<1x128xf32>
    tpu.vector_store %arg13[%c7_158, %c0_159], %446 {strides = array<i32>} : memref<8x128xf32, #tpu.memory_space<vmem>>, vector<1x128xf32>,
    %c1_160 = arith.constant 1 : index
    %c0_161 = arith.constant 0 : index
    %c0_162 = arith.constant 0 : index
    %448 = vector.load %arg11[%c1_160, %c0_161, %c0_162] : memref<3x1x128xf32, #tpu.memory_space<vmem>>, vector<1x1x128xf32>
    %449 = vector.shape_cast %448 : vector<1x1x128xf32> to vector<1x128xf32>
    %450 = vector.shape_cast %446 : vector<1x128xf32> to vector<1x1x128xf32>
    tpu.vector_store %arg11[%c1_160, %c0_161, %c0_162], %450 {strides = array<i32>} : memref<3x1x128xf32, #tpu.memory_space<vmem>>, vector<1x1x128xf32>,
    %c1_163 = arith.constant 1 : index
    %c0_164 = arith.constant 0 : index
    %c0_165 = arith.constant 0 : index
    %451 = vector.load %arg12[%c1_163, %c0_164, %c0_165] : memref<3x1x128xf32, #tpu.memory_space<vmem>>, vector<1x1x128xf32>
    %452 = vector.shape_cast %451 : vector<1x1x128xf32> to vector<1x128xf32>
    %453 = vector.shape_cast %444 : vector<1x128xf32> to vector<1x1x128xf32>
    tpu.vector_store %arg12[%c1_163, %c0_164, %c0_165], %453 {strides = array<i32>} : memref<3x1x128xf32, #tpu.memory_space<vmem>>, vector<1x1x128xf32>,
    %c0_166 = arith.constant 0 : index
    %c0_167 = arith.constant 0 : index
    %454 = vector.load %arg13[%c0_166, %c0_167] : memref<8x128xf32, #tpu.memory_space<vmem>>, vector<8x128xf32>
    %c2_168 = arith.constant 2 : index
    %c0_169 = arith.constant 0 : index
    %c0_170 = arith.constant 0 : index
    %455 = vector.load %arg3[%c2_168, %c0_169, %c0_170] : memref<3x128x512xf32, #tpu.memory_space<vmem>>, vector<1x128x512xf32>
    %456 = vector.shape_cast %455 : vector<1x128x512xf32> to vector<128x512xf32>
    %cst_171 = arith.constant dense<0.000000e+00> : vector<8x512xf32>
    %457 = tpu.matmul %454, %456, %cst_171 {dimension_numbers = #tpu.dot_dimension_numbers<[1], [0], [0], [1], [0, 0, 1, 1], [], []>} : vector<8x128xf32>, vector<128x512xf32>, vector<8x512xf32> -> vector<8x512xf32>
    %c2_172 = arith.constant 2 : index
    %c0_173 = arith.constant 0 : index
    %c0_174 = arith.constant 0 : index
    %458 = vector.load %arg5[%c2_172, %c0_173, %c0_174] : memref<3x1x512xf32, #tpu.memory_space<vmem>>, vector<1x1x512xf32>
    %459 = vector.shape_cast %458 : vector<1x1x512xf32> to vector<1x512xf32>
    %460 = vector.broadcast %459 : vector<1x512xf32> to vector<8x512xf32>
    %461 = arith.addf %457, %460 : vector<8x512xf32>
    %c0_175 = arith.constant 0 : index
    %c0_176 = arith.constant 0 : index
    %462 = vector.load %arg14[%c0_175, %c0_176] : memref<8x512xf32, #tpu.memory_space<vmem>>, vector<8x512xf32>
    tpu.vector_store %arg14[%c0_175, %c0_176], %461 {strides = array<i32>} : memref<8x512xf32, #tpu.memory_space<vmem>>, vector<8x512xf32>,
    %c2_177 = arith.constant 2 : index
    %c0_178 = arith.constant 0 : index
    %c0_179 = arith.constant 0 : index
    %463 = vector.load %arg4[%c2_177, %c0_178, %c0_179] : memref<3x128x512xf32, #tpu.memory_space<vmem>>, vector<1x128x512xf32>
    %464 = vector.shape_cast %463 : vector<1x128x512xf32> to vector<128x512xf32>
    %c2_180 = arith.constant 2 : index
    %c0_181 = arith.constant 0 : index
    %c0_182 = arith.constant 0 : index
    %465 = vector.load %arg8[%c2_180, %c0_181, %c0_182] : memref<3x1x128xf32, #tpu.memory_space<vmem>>, vector<1x1x128xf32>
    %466 = vector.shape_cast %465 : vector<1x1x128xf32> to vector<1x128xf32>
    %c2_183 = arith.constant 2 : index
    %c0_184 = arith.constant 0 : index
    %c0_185 = arith.constant 0 : index
    %467 = vector.load %arg9[%c2_183, %c0_184, %c0_185] : memref<3x1x128xf32, #tpu.memory_space<vmem>>, vector<1x1x128xf32>
    %468 = vector.shape_cast %467 : vector<1x1x128xf32> to vector<1x128xf32>
    %c0_186 = arith.constant 0 : index
    %c0_187 = arith.constant 0 : index
    %469 = vector.load %arg14[%c0_186, %c0_187] : memref<8x512xf32, #tpu.memory_space<vmem>>, vector<1x512xf32>
    %cst_188 = arith.constant dense<0.000000e+00> : vector<1x512xf32>
    %470 = tpu.matmul %466, %464, %cst_188 {dimension_numbers = #tpu.dot_dimension_numbers<[1], [0], [0], [1], [0, 0, 1, 1], [], []>} : vector<1x128xf32>, vector<128x512xf32>, vector<1x512xf32> -> vector<1x512xf32>
    %471 = arith.addf %469, %470 : vector<1x512xf32>
    %472 = vector.extract_strided_slice %471 {offsets = [0, 0], sizes = [1, 256], strides = [1, 1]} : vector<1x512xf32> to vector<1x256xf32>
    %473 = arith.negf %472 : vector<1x256xf32>
    %474 = math.exp %473 : vector<1x256xf32>
    %cst_189 = arith.constant 1.000000e+00 : f32
    %475 = vector.broadcast %cst_189 : f32 to vector<1x256xf32>
    %476 = arith.addf %475, %474 : vector<1x256xf32>
    %477 = arith.divf %475, %476 : vector<1x256xf32>
    %478 = vector.extract_strided_slice %471 {offsets = [0, 256], sizes = [1, 128], strides = [1, 1]} : vector<1x512xf32> to vector<1x128xf32>
    %479 = math.tanh %478 : vector<1x128xf32>
    %480 = vector.extract_strided_slice %471 {offsets = [0, 384], sizes = [1, 128], strides = [1, 1]} : vector<1x512xf32> to vector<1x128xf32>
    %481 = arith.negf %480 : vector<1x128xf32>
    %482 = math.exp %481 : vector<1x128xf32>
    %cst_190 = arith.constant 1.000000e+00 : f32
    %483 = vector.broadcast %cst_190 : f32 to vector<1x128xf32>
    %484 = arith.addf %483, %482 : vector<1x128xf32>
    %485 = arith.divf %483, %484 : vector<1x128xf32>
    %486 = vector.extract_strided_slice %477 {offsets = [0, 128], sizes = [1, 128], strides = [1, 1]} : vector<1x256xf32> to vector<1x128xf32>
    %487 = arith.mulf %486, %468 : vector<1x128xf32>
    %488 = vector.extract_strided_slice %477 {offsets = [0, 0], sizes = [1, 128], strides = [1, 1]} : vector<1x256xf32> to vector<1x128xf32>
    %489 = arith.mulf %488, %479 : vector<1x128xf32>
    %490 = arith.addf %487, %489 : vector<1x128xf32>
    %491 = math.tanh %490 : vector<1x128xf32>
    %492 = arith.mulf %485, %491 : vector<1x128xf32>
    %c0_191 = arith.constant 0 : index
    %c0_192 = arith.constant 0 : index
    %493 = vector.load %arg13[%c0_191, %c0_192] : memref<8x128xf32, #tpu.memory_space<vmem>>, vector<1x128xf32>
    tpu.vector_store %arg13[%c0_191, %c0_192], %492 {strides = array<i32>} : memref<8x128xf32, #tpu.memory_space<vmem>>, vector<1x128xf32>,
    %c1_193 = arith.constant 1 : index
    %c0_194 = arith.constant 0 : index
    %494 = vector.load %arg14[%c1_193, %c0_194] : memref<8x512xf32, #tpu.memory_space<vmem>>, vector<1x512xf32>
    %cst_195 = arith.constant dense<0.000000e+00> : vector<1x512xf32>
    %495 = tpu.matmul %492, %464, %cst_195 {dimension_numbers = #tpu.dot_dimension_numbers<[1], [0], [0], [1], [0, 0, 1, 1], [], []>} : vector<1x128xf32>, vector<128x512xf32>, vector<1x512xf32> -> vector<1x512xf32>
    %496 = arith.addf %494, %495 : vector<1x512xf32>
    %497 = vector.extract_strided_slice %496 {offsets = [0, 0], sizes = [1, 256], strides = [1, 1]} : vector<1x512xf32> to vector<1x256xf32>
    %498 = arith.negf %497 : vector<1x256xf32>
    %499 = math.exp %498 : vector<1x256xf32>
    %cst_196 = arith.constant 1.000000e+00 : f32
    %500 = vector.broadcast %cst_196 : f32 to vector<1x256xf32>
    %501 = arith.addf %500, %499 : vector<1x256xf32>
    %502 = arith.divf %500, %501 : vector<1x256xf32>
    %503 = vector.extract_strided_slice %496 {offsets = [0, 256], sizes = [1, 128], strides = [1, 1]} : vector<1x512xf32> to vector<1x128xf32>
    %504 = math.tanh %503 : vector<1x128xf32>
    %505 = vector.extract_strided_slice %496 {offsets = [0, 384], sizes = [1, 128], strides = [1, 1]} : vector<1x512xf32> to vector<1x128xf32>
    %506 = arith.negf %505 : vector<1x128xf32>
    %507 = math.exp %506 : vector<1x128xf32>
    %cst_197 = arith.constant 1.000000e+00 : f32
    %508 = vector.broadcast %cst_197 : f32 to vector<1x128xf32>
    %509 = arith.addf %508, %507 : vector<1x128xf32>
    %510 = arith.divf %508, %509 : vector<1x128xf32>
    %511 = vector.extract_strided_slice %502 {offsets = [0, 128], sizes = [1, 128], strides = [1, 1]} : vector<1x256xf32> to vector<1x128xf32>
    %512 = arith.mulf %511, %490 : vector<1x128xf32>
    %513 = vector.extract_strided_slice %502 {offsets = [0, 0], sizes = [1, 128], strides = [1, 1]} : vector<1x256xf32> to vector<1x128xf32>
    %514 = arith.mulf %513, %504 : vector<1x128xf32>
    %515 = arith.addf %512, %514 : vector<1x128xf32>
    %516 = math.tanh %515 : vector<1x128xf32>
    %517 = arith.mulf %510, %516 : vector<1x128xf32>
    %c1_198 = arith.constant 1 : index
    %c0_199 = arith.constant 0 : index
    %518 = vector.load %arg13[%c1_198, %c0_199] : memref<8x128xf32, #tpu.memory_space<vmem>>, vector<1x128xf32>
    tpu.vector_store %arg13[%c1_198, %c0_199], %517 {strides = array<i32>} : memref<8x128xf32, #tpu.memory_space<vmem>>, vector<1x128xf32>,
    %c2_200 = arith.constant 2 : index
    %c0_201 = arith.constant 0 : index
    %519 = vector.load %arg14[%c2_200, %c0_201] : memref<8x512xf32, #tpu.memory_space<vmem>>, vector<1x512xf32>
    %cst_202 = arith.constant dense<0.000000e+00> : vector<1x512xf32>
    %520 = tpu.matmul %517, %464, %cst_202 {dimension_numbers = #tpu.dot_dimension_numbers<[1], [0], [0], [1], [0, 0, 1, 1], [], []>} : vector<1x128xf32>, vector<128x512xf32>, vector<1x512xf32> -> vector<1x512xf32>
    %521 = arith.addf %519, %520 : vector<1x512xf32>
    %522 = vector.extract_strided_slice %521 {offsets = [0, 0], sizes = [1, 256], strides = [1, 1]} : vector<1x512xf32> to vector<1x256xf32>
    %523 = arith.negf %522 : vector<1x256xf32>
    %524 = math.exp %523 : vector<1x256xf32>
    %cst_203 = arith.constant 1.000000e+00 : f32
    %525 = vector.broadcast %cst_203 : f32 to vector<1x256xf32>
    %526 = arith.addf %525, %524 : vector<1x256xf32>
    %527 = arith.divf %525, %526 : vector<1x256xf32>
    %528 = vector.extract_strided_slice %521 {offsets = [0, 256], sizes = [1, 128], strides = [1, 1]} : vector<1x512xf32> to vector<1x128xf32>
    %529 = math.tanh %528 : vector<1x128xf32>
    %530 = vector.extract_strided_slice %521 {offsets = [0, 384], sizes = [1, 128], strides = [1, 1]} : vector<1x512xf32> to vector<1x128xf32>
    %531 = arith.negf %530 : vector<1x128xf32>
    %532 = math.exp %531 : vector<1x128xf32>
    %cst_204 = arith.constant 1.000000e+00 : f32
    %533 = vector.broadcast %cst_204 : f32 to vector<1x128xf32>
    %534 = arith.addf %533, %532 : vector<1x128xf32>
    %535 = arith.divf %533, %534 : vector<1x128xf32>
    %536 = vector.extract_strided_slice %527 {offsets = [0, 128], sizes = [1, 128], strides = [1, 1]} : vector<1x256xf32> to vector<1x128xf32>
    %537 = arith.mulf %536, %515 : vector<1x128xf32>
    %538 = vector.extract_strided_slice %527 {offsets = [0, 0], sizes = [1, 128], strides = [1, 1]} : vector<1x256xf32> to vector<1x128xf32>
    %539 = arith.mulf %538, %529 : vector<1x128xf32>
    %540 = arith.addf %537, %539 : vector<1x128xf32>
    %541 = math.tanh %540 : vector<1x128xf32>
    %542 = arith.mulf %535, %541 : vector<1x128xf32>
    %c2_205 = arith.constant 2 : index
    %c0_206 = arith.constant 0 : index
    %543 = vector.load %arg13[%c2_205, %c0_206] : memref<8x128xf32, #tpu.memory_space<vmem>>, vector<1x128xf32>
    tpu.vector_store %arg13[%c2_205, %c0_206], %542 {strides = array<i32>} : memref<8x128xf32, #tpu.memory_space<vmem>>, vector<1x128xf32>,
    %c3_207 = arith.constant 3 : index
    %c0_208 = arith.constant 0 : index
    %544 = vector.load %arg14[%c3_207, %c0_208] : memref<8x512xf32, #tpu.memory_space<vmem>>, vector<1x512xf32>
    %cst_209 = arith.constant dense<0.000000e+00> : vector<1x512xf32>
    %545 = tpu.matmul %542, %464, %cst_209 {dimension_numbers = #tpu.dot_dimension_numbers<[1], [0], [0], [1], [0, 0, 1, 1], [], []>} : vector<1x128xf32>, vector<128x512xf32>, vector<1x512xf32> -> vector<1x512xf32>
    %546 = arith.addf %544, %545 : vector<1x512xf32>
    %547 = vector.extract_strided_slice %546 {offsets = [0, 0], sizes = [1, 256], strides = [1, 1]} : vector<1x512xf32> to vector<1x256xf32>
    %548 = arith.negf %547 : vector<1x256xf32>
    %549 = math.exp %548 : vector<1x256xf32>
    %cst_210 = arith.constant 1.000000e+00 : f32
    %550 = vector.broadcast %cst_210 : f32 to vector<1x256xf32>
    %551 = arith.addf %550, %549 : vector<1x256xf32>
    %552 = arith.divf %550, %551 : vector<1x256xf32>
    %553 = vector.extract_strided_slice %546 {offsets = [0, 256], sizes = [1, 128], strides = [1, 1]} : vector<1x512xf32> to vector<1x128xf32>
    %554 = math.tanh %553 : vector<1x128xf32>
    %555 = vector.extract_strided_slice %546 {offsets = [0, 384], sizes = [1, 128], strides = [1, 1]} : vector<1x512xf32> to vector<1x128xf32>
    %556 = arith.negf %555 : vector<1x128xf32>
    %557 = math.exp %556 : vector<1x128xf32>
    %cst_211 = arith.constant 1.000000e+00 : f32
    %558 = vector.broadcast %cst_211 : f32 to vector<1x128xf32>
    %559 = arith.addf %558, %557 : vector<1x128xf32>
    %560 = arith.divf %558, %559 : vector<1x128xf32>
    %561 = vector.extract_strided_slice %552 {offsets = [0, 128], sizes = [1, 128], strides = [1, 1]} : vector<1x256xf32> to vector<1x128xf32>
    %562 = arith.mulf %561, %540 : vector<1x128xf32>
    %563 = vector.extract_strided_slice %552 {offsets = [0, 0], sizes = [1, 128], strides = [1, 1]} : vector<1x256xf32> to vector<1x128xf32>
    %564 = arith.mulf %563, %554 : vector<1x128xf32>
    %565 = arith.addf %562, %564 : vector<1x128xf32>
    %566 = math.tanh %565 : vector<1x128xf32>
    %567 = arith.mulf %560, %566 : vector<1x128xf32>
    %c3_212 = arith.constant 3 : index
    %c0_213 = arith.constant 0 : index
    %568 = vector.load %arg13[%c3_212, %c0_213] : memref<8x128xf32, #tpu.memory_space<vmem>>, vector<1x128xf32>
    tpu.vector_store %arg13[%c3_212, %c0_213], %567 {strides = array<i32>} : memref<8x128xf32, #tpu.memory_space<vmem>>, vector<1x128xf32>,
    %c4_214 = arith.constant 4 : index
    %c0_215 = arith.constant 0 : index
    %569 = vector.load %arg14[%c4_214, %c0_215] : memref<8x512xf32, #tpu.memory_space<vmem>>, vector<1x512xf32>
    %cst_216 = arith.constant dense<0.000000e+00> : vector<1x512xf32>
    %570 = tpu.matmul %567, %464, %cst_216 {dimension_numbers = #tpu.dot_dimension_numbers<[1], [0], [0], [1], [0, 0, 1, 1], [], []>} : vector<1x128xf32>, vector<128x512xf32>, vector<1x512xf32> -> vector<1x512xf32>
    %571 = arith.addf %569, %570 : vector<1x512xf32>
    %572 = vector.extract_strided_slice %571 {offsets = [0, 0], sizes = [1, 256], strides = [1, 1]} : vector<1x512xf32> to vector<1x256xf32>
    %573 = arith.negf %572 : vector<1x256xf32>
    %574 = math.exp %573 : vector<1x256xf32>
    %cst_217 = arith.constant 1.000000e+00 : f32
    %575 = vector.broadcast %cst_217 : f32 to vector<1x256xf32>
    %576 = arith.addf %575, %574 : vector<1x256xf32>
    %577 = arith.divf %575, %576 : vector<1x256xf32>
    %578 = vector.extract_strided_slice %571 {offsets = [0, 256], sizes = [1, 128], strides = [1, 1]} : vector<1x512xf32> to vector<1x128xf32>
    %579 = math.tanh %578 : vector<1x128xf32>
    %580 = vector.extract_strided_slice %571 {offsets = [0, 384], sizes = [1, 128], strides = [1, 1]} : vector<1x512xf32> to vector<1x128xf32>
    %581 = arith.negf %580 : vector<1x128xf32>
    %582 = math.exp %581 : vector<1x128xf32>
    %cst_218 = arith.constant 1.000000e+00 : f32
    %583 = vector.broadcast %cst_218 : f32 to vector<1x128xf32>
    %584 = arith.addf %583, %582 : vector<1x128xf32>
    %585 = arith.divf %583, %584 : vector<1x128xf32>
    %586 = vector.extract_strided_slice %577 {offsets = [0, 128], sizes = [1, 128], strides = [1, 1]} : vector<1x256xf32> to vector<1x128xf32>
    %587 = arith.mulf %586, %565 : vector<1x128xf32>
    %588 = vector.extract_strided_slice %577 {offsets = [0, 0], sizes = [1, 128], strides = [1, 1]} : vector<1x256xf32> to vector<1x128xf32>
    %589 = arith.mulf %588, %579 : vector<1x128xf32>
    %590 = arith.addf %587, %589 : vector<1x128xf32>
    %591 = math.tanh %590 : vector<1x128xf32>
    %592 = arith.mulf %585, %591 : vector<1x128xf32>
    %c4_219 = arith.constant 4 : index
    %c0_220 = arith.constant 0 : index
    %593 = vector.load %arg13[%c4_219, %c0_220] : memref<8x128xf32, #tpu.memory_space<vmem>>, vector<1x128xf32>
    tpu.vector_store %arg13[%c4_219, %c0_220], %592 {strides = array<i32>} : memref<8x128xf32, #tpu.memory_space<vmem>>, vector<1x128xf32>,
    %c5_221 = arith.constant 5 : index
    %c0_222 = arith.constant 0 : index
    %594 = vector.load %arg14[%c5_221, %c0_222] : memref<8x512xf32, #tpu.memory_space<vmem>>, vector<1x512xf32>
    %cst_223 = arith.constant dense<0.000000e+00> : vector<1x512xf32>
    %595 = tpu.matmul %592, %464, %cst_223 {dimension_numbers = #tpu.dot_dimension_numbers<[1], [0], [0], [1], [0, 0, 1, 1], [], []>} : vector<1x128xf32>, vector<128x512xf32>, vector<1x512xf32> -> vector<1x512xf32>
    %596 = arith.addf %594, %595 : vector<1x512xf32>
    %597 = vector.extract_strided_slice %596 {offsets = [0, 0], sizes = [1, 256], strides = [1, 1]} : vector<1x512xf32> to vector<1x256xf32>
    %598 = arith.negf %597 : vector<1x256xf32>
    %599 = math.exp %598 : vector<1x256xf32>
    %cst_224 = arith.constant 1.000000e+00 : f32
    %600 = vector.broadcast %cst_224 : f32 to vector<1x256xf32>
    %601 = arith.addf %600, %599 : vector<1x256xf32>
    %602 = arith.divf %600, %601 : vector<1x256xf32>
    %603 = vector.extract_strided_slice %596 {offsets = [0, 256], sizes = [1, 128], strides = [1, 1]} : vector<1x512xf32> to vector<1x128xf32>
    %604 = math.tanh %603 : vector<1x128xf32>
    %605 = vector.extract_strided_slice %596 {offsets = [0, 384], sizes = [1, 128], strides = [1, 1]} : vector<1x512xf32> to vector<1x128xf32>
    %606 = arith.negf %605 : vector<1x128xf32>
    %607 = math.exp %606 : vector<1x128xf32>
    %cst_225 = arith.constant 1.000000e+00 : f32
    %608 = vector.broadcast %cst_225 : f32 to vector<1x128xf32>
    %609 = arith.addf %608, %607 : vector<1x128xf32>
    %610 = arith.divf %608, %609 : vector<1x128xf32>
    %611 = vector.extract_strided_slice %602 {offsets = [0, 128], sizes = [1, 128], strides = [1, 1]} : vector<1x256xf32> to vector<1x128xf32>
    %612 = arith.mulf %611, %590 : vector<1x128xf32>
    %613 = vector.extract_strided_slice %602 {offsets = [0, 0], sizes = [1, 128], strides = [1, 1]} : vector<1x256xf32> to vector<1x128xf32>
    %614 = arith.mulf %613, %604 : vector<1x128xf32>
    %615 = arith.addf %612, %614 : vector<1x128xf32>
    %616 = math.tanh %615 : vector<1x128xf32>
    %617 = arith.mulf %610, %616 : vector<1x128xf32>
    %c5_226 = arith.constant 5 : index
    %c0_227 = arith.constant 0 : index
    %618 = vector.load %arg13[%c5_226, %c0_227] : memref<8x128xf32, #tpu.memory_space<vmem>>, vector<1x128xf32>
    tpu.vector_store %arg13[%c5_226, %c0_227], %617 {strides = array<i32>} : memref<8x128xf32, #tpu.memory_space<vmem>>, vector<1x128xf32>,
    %c6_228 = arith.constant 6 : index
    %c0_229 = arith.constant 0 : index
    %619 = vector.load %arg14[%c6_228, %c0_229] : memref<8x512xf32, #tpu.memory_space<vmem>>, vector<1x512xf32>
    %cst_230 = arith.constant dense<0.000000e+00> : vector<1x512xf32>
    %620 = tpu.matmul %617, %464, %cst_230 {dimension_numbers = #tpu.dot_dimension_numbers<[1], [0], [0], [1], [0, 0, 1, 1], [], []>} : vector<1x128xf32>, vector<128x512xf32>, vector<1x512xf32> -> vector<1x512xf32>
    %621 = arith.addf %619, %620 : vector<1x512xf32>
    %622 = vector.extract_strided_slice %621 {offsets = [0, 0], sizes = [1, 256], strides = [1, 1]} : vector<1x512xf32> to vector<1x256xf32>
    %623 = arith.negf %622 : vector<1x256xf32>
    %624 = math.exp %623 : vector<1x256xf32>
    %cst_231 = arith.constant 1.000000e+00 : f32
    %625 = vector.broadcast %cst_231 : f32 to vector<1x256xf32>
    %626 = arith.addf %625, %624 : vector<1x256xf32>
    %627 = arith.divf %625, %626 : vector<1x256xf32>
    %628 = vector.extract_strided_slice %621 {offsets = [0, 256], sizes = [1, 128], strides = [1, 1]} : vector<1x512xf32> to vector<1x128xf32>
    %629 = math.tanh %628 : vector<1x128xf32>
    %630 = vector.extract_strided_slice %621 {offsets = [0, 384], sizes = [1, 128], strides = [1, 1]} : vector<1x512xf32> to vector<1x128xf32>
    %631 = arith.negf %630 : vector<1x128xf32>
    %632 = math.exp %631 : vector<1x128xf32>
    %cst_232 = arith.constant 1.000000e+00 : f32
    %633 = vector.broadcast %cst_232 : f32 to vector<1x128xf32>
    %634 = arith.addf %633, %632 : vector<1x128xf32>
    %635 = arith.divf %633, %634 : vector<1x128xf32>
    %636 = vector.extract_strided_slice %627 {offsets = [0, 128], sizes = [1, 128], strides = [1, 1]} : vector<1x256xf32> to vector<1x128xf32>
    %637 = arith.mulf %636, %615 : vector<1x128xf32>
    %638 = vector.extract_strided_slice %627 {offsets = [0, 0], sizes = [1, 128], strides = [1, 1]} : vector<1x256xf32> to vector<1x128xf32>
    %639 = arith.mulf %638, %629 : vector<1x128xf32>
    %640 = arith.addf %637, %639 : vector<1x128xf32>
    %641 = math.tanh %640 : vector<1x128xf32>
    %642 = arith.mulf %635, %641 : vector<1x128xf32>
    %c6_233 = arith.constant 6 : index
    %c0_234 = arith.constant 0 : index
    %643 = vector.load %arg13[%c6_233, %c0_234] : memref<8x128xf32, #tpu.memory_space<vmem>>, vector<1x128xf32>
    tpu.vector_store %arg13[%c6_233, %c0_234], %642 {strides = array<i32>} : memref<8x128xf32, #tpu.memory_space<vmem>>, vector<1x128xf32>,
    %c7_235 = arith.constant 7 : index
    %c0_236 = arith.constant 0 : index
    %644 = vector.load %arg14[%c7_235, %c0_236] : memref<8x512xf32, #tpu.memory_space<vmem>>, vector<1x512xf32>
    %cst_237 = arith.constant dense<0.000000e+00> : vector<1x512xf32>
    %645 = tpu.matmul %642, %464, %cst_237 {dimension_numbers = #tpu.dot_dimension_numbers<[1], [0], [0], [1], [0, 0, 1, 1], [], []>} : vector<1x128xf32>, vector<128x512xf32>, vector<1x512xf32> -> vector<1x512xf32>
    %646 = arith.addf %644, %645 : vector<1x512xf32>
    %647 = vector.extract_strided_slice %646 {offsets = [0, 0], sizes = [1, 256], strides = [1, 1]} : vector<1x512xf32> to vector<1x256xf32>
    %648 = arith.negf %647 : vector<1x256xf32>
    %649 = math.exp %648 : vector<1x256xf32>
    %cst_238 = arith.constant 1.000000e+00 : f32
    %650 = vector.broadcast %cst_238 : f32 to vector<1x256xf32>
    %651 = arith.addf %650, %649 : vector<1x256xf32>
    %652 = arith.divf %650, %651 : vector<1x256xf32>
    %653 = vector.extract_strided_slice %646 {offsets = [0, 256], sizes = [1, 128], strides = [1, 1]} : vector<1x512xf32> to vector<1x128xf32>
    %654 = math.tanh %653 : vector<1x128xf32>
    %655 = vector.extract_strided_slice %646 {offsets = [0, 384], sizes = [1, 128], strides = [1, 1]} : vector<1x512xf32> to vector<1x128xf32>
    %656 = arith.negf %655 : vector<1x128xf32>
    %657 = math.exp %656 : vector<1x128xf32>
    %cst_239 = arith.constant 1.000000e+00 : f32
    %658 = vector.broadcast %cst_239 : f32 to vector<1x128xf32>
    %659 = arith.addf %658, %657 : vector<1x128xf32>
    %660 = arith.divf %658, %659 : vector<1x128xf32>
    %661 = vector.extract_strided_slice %652 {offsets = [0, 128], sizes = [1, 128], strides = [1, 1]} : vector<1x256xf32> to vector<1x128xf32>
    %662 = arith.mulf %661, %640 : vector<1x128xf32>
    %663 = vector.extract_strided_slice %652 {offsets = [0, 0], sizes = [1, 128], strides = [1, 1]} : vector<1x256xf32> to vector<1x128xf32>
    %664 = arith.mulf %663, %654 : vector<1x128xf32>
    %665 = arith.addf %662, %664 : vector<1x128xf32>
    %666 = math.tanh %665 : vector<1x128xf32>
    %667 = arith.mulf %660, %666 : vector<1x128xf32>
    %c7_240 = arith.constant 7 : index
    %c0_241 = arith.constant 0 : index
    %668 = vector.load %arg13[%c7_240, %c0_241] : memref<8x128xf32, #tpu.memory_space<vmem>>, vector<1x128xf32>
    tpu.vector_store %arg13[%c7_240, %c0_241], %667 {strides = array<i32>} : memref<8x128xf32, #tpu.memory_space<vmem>>, vector<1x128xf32>,
    %c2_242 = arith.constant 2 : index
    %c0_243 = arith.constant 0 : index
    %c0_244 = arith.constant 0 : index
    %669 = vector.load %arg11[%c2_242, %c0_243, %c0_244] : memref<3x1x128xf32, #tpu.memory_space<vmem>>, vector<1x1x128xf32>
    %670 = vector.shape_cast %669 : vector<1x1x128xf32> to vector<1x128xf32>
    %671 = vector.shape_cast %667 : vector<1x128xf32> to vector<1x1x128xf32>
    tpu.vector_store %arg11[%c2_242, %c0_243, %c0_244], %671 {strides = array<i32>} : memref<3x1x128xf32, #tpu.memory_space<vmem>>, vector<1x1x128xf32>,
    %c2_245 = arith.constant 2 : index
    %c0_246 = arith.constant 0 : index
    %c0_247 = arith.constant 0 : index
    %672 = vector.load %arg12[%c2_245, %c0_246, %c0_247] : memref<3x1x128xf32, #tpu.memory_space<vmem>>, vector<1x1x128xf32>
    %673 = vector.shape_cast %672 : vector<1x1x128xf32> to vector<1x128xf32>
    %674 = vector.shape_cast %665 : vector<1x128xf32> to vector<1x1x128xf32>
    tpu.vector_store %arg12[%c2_245, %c0_246, %c0_247], %674 {strides = array<i32>} : memref<3x1x128xf32, #tpu.memory_space<vmem>>, vector<1x1x128xf32>,
    %c0_248 = arith.constant 0 : index
    %c0_249 = arith.constant 0 : index
    %675 = vector.load %arg13[%c0_248, %c0_249] : memref<8x128xf32, #tpu.memory_space<vmem>>, vector<8x128xf32>
    %cst_250 = arith.constant 0.000000e+00 : f32
    %676 = vector.broadcast %cst_250 : f32 to vector<8x128xf32>
    %677 = arith.cmpf oge, %675, %676 : vector<8x128xf32>
    %cst_251 = arith.constant 0.00999999977 : f32
    %678 = vector.broadcast %cst_251 : f32 to vector<8x128xf32>
    %679 = arith.mulf %678, %675 : vector<8x128xf32>
    %680 = arith.select %677, %675, %679 : vector<8x128xi1>, vector<8x128xf32>
    %c0_252 = arith.constant 0 : index
    %c0_253 = arith.constant 0 : index
    %681 = vector.load %arg6[%c0_252, %c0_253] : memref<128x12xf32, #tpu.memory_space<vmem>>, vector<128x12xf32>
    %cst_254 = arith.constant dense<0.000000e+00> : vector<8x12xf32>
    %682 = tpu.matmul %680, %681, %cst_254 {dimension_numbers = #tpu.dot_dimension_numbers<[1], [0], [0], [1], [0, 0, 1, 1], [], []>} : vector<8x128xf32>, vector<128x12xf32>, vector<8x12xf32> -> vector<8x12xf32>
    %c0_255 = arith.constant 0 : index
    %c0_256 = arith.constant 0 : index
    %683 = vector.load %arg7[%c0_255, %c0_256] : memref<1x12xf32, #tpu.memory_space<vmem>>, vector<1x12xf32>
    %684 = vector.broadcast %683 : vector<1x12xf32> to vector<8x12xf32>
    %685 = arith.addf %682, %684 : vector<8x12xf32>
    %686 = math.tanh %685 : vector<8x12xf32>
    %cst_257 = arith.constant 2.000000e+00 : f32
    %687 = vector.broadcast %cst_257 : f32 to vector<8x12xf32>
    %688 = arith.mulf %686, %687 : vector<8x12xf32>
    %c0_258 = arith.constant 0 : index
    %c0_259 = arith.constant 0 : index
    %689 = vector.load %arg10[%c0_258, %c0_259] : memref<8x12xf32, #tpu.memory_space<vmem>>, vector<8x12xf32>
    tpu.vector_store %arg10[%c0_258, %c0_259], %688 {strides = array<i32>} : memref<8x12xf32, #tpu.memory_space<vmem>>, vector<8x12xf32>,
    return
  }
}

</mosaic_0001>

<llo_original>
// kernel: lstm_net_forward.1
$region0: #{lstm_net_forward.1}
  #allocation0 [shape = 'u32[]', space=smem, size = 0x4, offset = 0x4, fixed_abs, tag = 'smem constant byte address 0x4 - core index']
  #allocation1 [shape = 'u32[72,128]{1,0:T(1,128)}', space=vmem, size = 0x9000, scoped, tag = 'internal scratch']
  #allocation2 [shape = 'f32[8,128]{1,0:T(8,128)}', space=vmem, size = 0x1000, scoped, tag = 'scratch operand']
  #allocation3 [shape = 'f32[8,512]{1,0:T(8,128)}', space=vmem, size = 0x4000, scoped, tag = 'scratch operand']
  %s0 = inlined_call_operand.vmem [shape: f32[8,30], index: 0, kind: input, shape index: {}]
  %s1 = inlined_call_operand.vmem [shape: f32[30,128], index: 1, kind: input, shape index: {}]
  %s2 = inlined_call_operand.vmem [shape: f32[1,128], index: 2, kind: input, shape index: {}]
  %s3 = inlined_call_operand.hbm [shape: f32[3,128,512], index: 3, kind: input, shape index: {}]
  %s4 = inlined_call_operand.hbm [shape: f32[3,128,512], index: 4, kind: input, shape index: {}]
  %s5 = inlined_call_operand.vmem [shape: f32[3,1,512], index: 5, kind: input, shape index: {}]
  %s6 = inlined_call_operand.vmem [shape: f32[128,12], index: 6, kind: input, shape index: {}]
  %s7 = inlined_call_operand.vmem [shape: f32[1,12], index: 7, kind: input, shape index: {}]
  %s8 = inlined_call_operand.vmem [shape: f32[3,1,128], index: 8, kind: input, shape index: {}]
  %s9 = inlined_call_operand.vmem [shape: f32[3,1,128], index: 9, kind: input, shape index: {}]
  %s10 = inlined_call_operand.hbm [shape: f32[8,12], index: 10, kind: output, shape index: {0}]
  %s11 = inlined_call_operand.hbm [shape: f32[3,1,128], index: 11, kind: output, shape index: {1}]
  %s12 = inlined_call_operand.hbm [shape: f32[3,1,128], index: 12, kind: output, shape index: {2}]
  %13 = xla_tuple %s10, %s11, %s12
  %s14 = sld [smem:[#allocation0]]
  $region74: #{lstm_net_forward.1} parent=0
    _
  %s16 = ssub.s32 1, %s14
  %s17 = scalar_select 0, %s16, %s14
  $region1: #{lstm_net_forward.1} parent=0
    #allocation4 [shape = 'u8[786432]{0}', space=vmem, size = 0xc0000, scoped, tag = 'input window, operand 3, single buffered']
    #allocation5 [shape = 's32[1]{0}', space=sflag, size = 0x4, scoped, tag = 'scoped memory for lstm_net_forward.1']
    #allocation6 [shape = 's32[1]{0}', space=sflag, size = 0x4, scoped, tag = 'scoped memory for lstm_net_forward.1']
    #allocation7 [shape = 'u8[786432]{0}', space=vmem, size = 0xc0000, scoped, tag = 'input window, operand 4, single buffered']
    #allocation8 [shape = 's32[1]{0}', space=sflag, size = 0x4, scoped, tag = 'scoped memory for lstm_net_forward.1']
    #allocation9 [shape = 'u8[4096]{0}', space=vmem, size = 0x1000, scoped, tag = 'output window, operand 0, single buffered']
    #allocation10 [shape = 'u8[1536]{0}', space=vmem, size = 0x800, scoped, tag = 'output window, operand 1, single buffered']
    #allocation11 [shape = 's32[1]{0}', space=sflag, size = 0x4, scoped, tag = 'scoped memory for lstm_net_forward.1']
    #allocation12 [shape = 'u8[1536]{0}', space=vmem, size = 0x800, scoped, tag = 'output window, operand 2, single buffered']
    %18 = vsyncpa [#allocation5], 0
    %19 = vsyncpa [#allocation8], 0
    %20 = vsyncpa [#allocation6], 0
    %21 = vsyncpa [#allocation11], 0
    // Predicated region
    $region2: #{lstm_net_forward.1} parent=1 // pred_check
      _
    $region3: #{lstm_net_forward.1} parent=1 // pred_check_branch
      %23 = sbr.rel (0) target = $region5
    $region4: #{lstm_net_forward.1} parent=1 // pred_region
      _
    $region5: #{lstm_net_forward.1} parent=1 // pred_fallthru
      _
    // Predicated region
    $region6: #{lstm_net_forward.1} parent=1 // pred_check
      _
    $region7: #{lstm_net_forward.1} parent=1 // pred_check_branch
      %25 = sbr.rel (0) target = $region9
    $region8: #{lstm_net_forward.1} parent=1 // pred_region
      _
    $region9: #{lstm_net_forward.1} parent=1 // pred_fallthru
      _
    // Predicated region
    $region10: #{lstm_net_forward.1} parent=1 // pred_check
      _
    $region11: #{lstm_net_forward.1} parent=1 // pred_check_branch
      %27 = sbr.rel (0) target = $region13
    $region12: #{lstm_net_forward.1} parent=1 // pred_region
      _
    $region13: #{lstm_net_forward.1} parent=1 // pred_fallthru
      _
    // Predicated region
    $region14: #{lstm_net_forward.1} parent=1 // pred_check
      _
    $region15: #{lstm_net_forward.1} parent=1 // pred_check_branch
      %29 = sbr.rel (0) target = $region17
    $region16: #{lstm_net_forward.1} parent=1 // pred_region
      %31 = vsyncadd [#allocation5], 0
      %s32 = sshll.u32 %s3, 4
      %s33 = int_to_ptr.hbm [resolvable:$true] %s32
      %s34 = sshll.u32 [#allocation4], 4
      %s35 = int_to_ptr.vmem [resolvable:$true] %s34
      %40 = dma.hbm_to_vmem [thread:$0]  %s33, 24576, %s35, [#allocation5], 512, 512, 32
    $region17: #{lstm_net_forward.1} parent=1 // pred_fallthru
      _
    // Predicated region
    $region18: #{lstm_net_forward.1} parent=1 // pred_check
      _
    $region19: #{lstm_net_forward.1} parent=1 // pred_check_branch
      %42 = sbr.rel (0) target = $region21
    $region20: #{lstm_net_forward.1} parent=1 // pred_region
      %44 = vsyncadd [#allocation8], 0
      %s45 = sshll.u32 %s4, 4
      %s46 = int_to_ptr.hbm [resolvable:$true] %s45
      %s47 = sshll.u32 [#allocation7], 4
      %s48 = int_to_ptr.vmem [resolvable:$true] %s47
      %53 = dma.hbm_to_vmem [thread:$0]  %s46, 24576, %s48, [#allocation8], 512, 512, 32
    $region21: #{lstm_net_forward.1} parent=1 // pred_fallthru
      _
    // Predicated region
    $region22: #{lstm_net_forward.1} parent=1 // pred_check
      _
    $region23: #{lstm_net_forward.1} parent=1 // pred_check_branch
      %55 = sbr.rel (0) target = $region25
    $region24: #{lstm_net_forward.1} parent=1 // pred_region
      _
    $region25: #{lstm_net_forward.1} parent=1 // pred_fallthru
      _
    // Predicated region
    $region26: #{lstm_net_forward.1} parent=1 // pred_check
      _
    $region27: #{lstm_net_forward.1} parent=1 // pred_check_branch
      %57 = sbr.rel (0) target = $region29
    $region28: #{lstm_net_forward.1} parent=1 // pred_region
      _
    $region29: #{lstm_net_forward.1} parent=1 // pred_fallthru
      _
    // Predicated region
    $region30: #{lstm_net_forward.1} parent=1 // pred_check
      _
    $region31: #{lstm_net_forward.1} parent=1 // pred_check_branch
      %59 = sbr.rel (0) target = $region33
    $region32: #{lstm_net_forward.1} parent=1 // pred_region
      _
    $region33: #{lstm_net_forward.1} parent=1 // pred_fallthru
      _
    // Predicated region
    $region34: #{lstm_net_forward.1} parent=1 // pred_check
      _
    $region35: #{lstm_net_forward.1} parent=1 // pred_check_branch
      %61 = sbr.rel (0) target = $region37
    $region36: #{lstm_net_forward.1} parent=1 // pred_region
      _
    $region37: #{lstm_net_forward.1} parent=1 // pred_fallthru
      _
    // Predicated region
    $region38: #{lstm_net_forward.1} parent=1 // pred_check
      _
    $region39: #{lstm_net_forward.1} parent=1 // pred_check_branch
      %63 = sbr.rel (0) target = $region41
    $region40: #{lstm_net_forward.1} parent=1 // pred_region
      _
    $region41: #{lstm_net_forward.1} parent=1 // pred_fallthru
      _
    // Predicated region
    $region42: #{lstm_net_forward.1} parent=1 // pred_check
      _
    $region43: #{lstm_net_forward.1} parent=1 // pred_check_branch
      %65 = sbr.rel (0) target = $region45
    $region44: #{lstm_net_forward.1} parent=1 // pred_region
      %67 = dma.done [#allocation5], 24576
    $region45: #{lstm_net_forward.1} parent=1 // pred_fallthru
      _
    // Predicated region
    $region46: #{lstm_net_forward.1} parent=1 // pred_check
      _
    $region47: #{lstm_net_forward.1} parent=1 // pred_check_branch
      %69 = sbr.rel (0) target = $region49
    $region48: #{lstm_net_forward.1} parent=1 // pred_region
      %71 = dma.done [#allocation8], 24576
    $region49: #{lstm_net_forward.1} parent=1 // pred_fallthru
      _
    %v72 = vld [vmem:[%s0] sm:$0xff]
    %v73 = vld [vmem:[%s1] sm:$0xff]
    %v74 = vld [vmem:[%s1 + $0x8] sm:$0xff]
    %v75 = vld [vmem:[%s1 + $0x10] sm:$0xff]
    %v76 = vld [vmem:[%s1 + $0x18] sm:$0x3f]
    %v77 = vld [vmem:[%s2] sm:$0x1]
    %v79 = vperm.slane %v77, 0
    %vm81 = vcmask 244736
    %v83 = vsel %vm81, %v72, 0
    %vm85 = vcmask 1045504
    %v87 = vsel %vm85, %v76, 0
    %89 = vmatpush.msra.mxu0 0.0
    %90 = vmatpush.msra.mxu0 0.0
    %91 = vmatpush.msra.mxu0 0.0
    %92 = vmatpush.msra.mxu0 0.0
    %93 = vmatpush.msra.mxu0 0.0
    %94 = vmatpush.msra.mxu0 0.0
    %95 = vmatpush.msra.mxu0 0.0
    %96 = vmatpush.msra.mxu0 0.0
    %97 = vmatpush.msra.mxu0 0.0
    %98 = vmatpush.msra.mxu0 0.0
    %99 = vmatpush.msra.mxu0 0.0
    %100 = vmatpush.msra.mxu0 0.0
    %101 = vmatpush.msra.mxu0 %v87
    %102 = vmatpush.msra.mxu0 %v75
    %103 = vmatpush.msra.mxu0 %v74
    %104 = vmatpush.msra.mxu0 %v73
    %105 = vmatmul.f32.gmra.mxu0 %v83
    %v106 = vpop.f32.mrf.mxu0
    %v107 = vadd.f32 %v79, %v106
    %108 = vdwg.mxu0
    %vm109 = vcmp.ge.f32.partialorder %v107, 0.0
    %v110 = vmul.f32 %v107, 0.01
    %v111 = vsel %vm109, %v107, %v110
    %112 = vst [vmem:[#allocation2] sm:$0xff] %v111
    %v113 = vld [vmem:[#allocation2] sm:$0xff]
    %v114 = vld [vmem:[#allocation4] sm:$0xff]
    %v115 = vld [vmem:[#allocation4 + $0x8] sm:$0xff]
    %v116 = vld [vmem:[#allocation4 + $0x10] sm:$0xff]
    %v117 = vld [vmem:[#allocation4 + $0x18] sm:$0xff]
    %v118 = vld [vmem:[#allocation4 + $0x20] sm:$0xff]
    %v119 = vld [vmem:[#allocation4 + $0x28] sm:$0xff]
    %v120 = vld [vmem:[#allocation4 + $0x30] sm:$0xff]
    %v121 = vld [vmem:[#allocation4 + $0x38] sm:$0xff]
    %v122 = vld [vmem:[#allocation4 + $0x40] sm:$0xff]
    %v123 = vld [vmem:[#allocation4 + $0x48] sm:$0xff]
    %v124 = vld [vmem:[#allocation4 + $0x50] sm:$0xff]
    %v125 = vld [vmem:[#allocation4 + $0x58] sm:$0xff]
    %v126 = vld [vmem:[#allocation4 + $0x60] sm:$0xff]
    %v127 = vld [vmem:[#allocation4 + $0x68] sm:$0xff]
    %v128 = vld [vmem:[#allocation4 + $0x70] sm:$0xff]
    %v129 = vld [vmem:[#allocation4 + $0x78] sm:$0xff]
    %v130 = vld [vmem:[#allocation4 + $0x80] sm:$0xff]
    %v131 = vld [vmem:[#allocation4 + $0x88] sm:$0xff]
    %v132 = vld [vmem:[#allocation4 + $0x90] sm:$0xff]
    %v133 = vld [vmem:[#allocation4 + $0x98] sm:$0xff]
    %v134 = vld [vmem:[#allocation4 + $0xa0] sm:$0xff]
    %v135 = vld [vmem:[#allocation4 + $0xa8] sm:$0xff]
    %v136 = vld [vmem:[#allocation4 + $0xb0] sm:$0xff]
    %v137 = vld [vmem:[#allocation4 + $0xb8] sm:$0xff]
    %v138 = vld [vmem:[#allocation4 + $0xc0] sm:$0xff]
    %v139 = vld [vmem:[#allocation4 + $0xc8] sm:$0xff]
    %v140 = vld [vmem:[#allocation4 + $0xd0] sm:$0xff]
    %v141 = vld [vmem:[#allocation4 + $0xd8] sm:$0xff]
    %v142 = vld [vmem:[#allocation4 + $0xe0] sm:$0xff]
    %v143 = vld [vmem:[#allocation4 + $0xe8] sm:$0xff]
    %v144 = vld [vmem:[#allocation4 + $0xf0] sm:$0xff]
    %v145 = vld [vmem:[#allocation4 + $0xf8] sm:$0xff]
    %v146 = vld [vmem:[#allocation4 + $0x100] sm:$0xff]
    %v147 = vld [vmem:[#allocation4 + $0x108] sm:$0xff]
    %v148 = vld [vmem:[#allocation4 + $0x110] sm:$0xff]
    %v149 = vld [vmem:[#allocation4 + $0x118] sm:$0xff]
    %v150 = vld [vmem:[#allocation4 + $0x120] sm:$0xff]
    %v151 = vld [vmem:[#allocation4 + $0x128] sm:$0xff]
    %v152 = vld [vmem:[#allocation4 + $0x130] sm:$0xff]
    %v153 = vld [vmem:[#allocation4 + $0x138] sm:$0xff]
    %v154 = vld [vmem:[#allocation4 + $0x140] sm:$0xff]
    %v155 = vld [vmem:[#allocation4 + $0x148] sm:$0xff]
    %v156 = vld [vmem:[#allocation4 + $0x150] sm:$0xff]
    %v157 = vld [vmem:[#allocation4 + $0x158] sm:$0xff]
    %v158 = vld [vmem:[#allocation4 + $0x160] sm:$0xff]
    %v159 = vld [vmem:[#allocation4 + $0x168] sm:$0xff]
    %v160 = vld [vmem:[#allocation4 + $0x170] sm:$0xff]
    %v161 = vld [vmem:[#allocation4 + $0x178] sm:$0xff]
    %v162 = vld [vmem:[#allocation4 + $0x180] sm:$0xff]
    %v163 = vld [vmem:[#allocation4 + $0x188] sm:$0xff]
    %v164 = vld [vmem:[#allocation4 + $0x190] sm:$0xff]
    %v165 = vld [vmem:[#allocation4 + $0x198] sm:$0xff]
    %v166 = vld [vmem:[#allocation4 + $0x1a0] sm:$0xff]
    %v167 = vld [vmem:[#allocation4 + $0x1a8] sm:$0xff]
    %v168 = vld [vmem:[#allocation4 + $0x1b0] sm:$0xff]
    %v169 = vld [vmem:[#allocation4 + $0x1b8] sm:$0xff]
    %v170 = vld [vmem:[#allocation4 + $0x1c0] sm:$0xff]
    %v171 = vld [vmem:[#allocation4 + $0x1c8] sm:$0xff]
    %v172 = vld [vmem:[#allocation4 + $0x1d0] sm:$0xff]
    %v173 = vld [vmem:[#allocation4 + $0x1d8] sm:$0xff]
    %v174 = vld [vmem:[#allocation4 + $0x1e0] sm:$0xff]
    %v175 = vld [vmem:[#allocation4 + $0x1e8] sm:$0xff]
    %v176 = vld [vmem:[#allocation4 + $0x1f0] sm:$0xff]
    %v177 = vld [vmem:[#allocation4 + $0x1f8] sm:$0xff]
    %v178 = vld [vmem:[%s5] sm:$0xf]
    %v180 = vperm.slane %v178, 0
    %v181 = vperm.slane %v178, 1
    %v182 = vperm.slane %v178, 2
    %v183 = vperm.slane %v178, 3
    %188 = vmatpush.msra.mxu0 %v174
    %189 = vmatpush.msra.mxu0 %v170
    %190 = vmatpush.msra.mxu0 %v166
    %191 = vmatpush.msra.mxu0 %v162
    %192 = vmatpush.msra.mxu0 %v158
    %193 = vmatpush.msra.mxu0 %v154
    %194 = vmatpush.msra.mxu0 %v150
    %195 = vmatpush.msra.mxu0 %v146
    %196 = vmatpush.msra.mxu0 %v142
    %197 = vmatpush.msra.mxu0 %v138
    %198 = vmatpush.msra.mxu0 %v134
    %199 = vmatpush.msra.mxu0 %v130
    %200 = vmatpush.msra.mxu0 %v126
    %201 = vmatpush.msra.mxu0 %v122
    %202 = vmatpush.msra.mxu0 %v118
    %203 = vmatpush.msra.mxu0 %v114
    %204 = vmatmul.f32.gmra.mxu0 %v113
    %v205 = vpop.f32.mrf.mxu0
    %v206 = vadd.f32 %v180, %v205
    %207 = vdwg.mxu0
    %208 = vmatpush.msra.mxu0 %v175
    %209 = vmatpush.msra.mxu0 %v171
    %210 = vmatpush.msra.mxu0 %v167
    %211 = vmatpush.msra.mxu0 %v163
    %212 = vmatpush.msra.mxu0 %v159
    %213 = vmatpush.msra.mxu0 %v155
    %214 = vmatpush.msra.mxu0 %v151
    %215 = vmatpush.msra.mxu0 %v147
    %216 = vmatpush.msra.mxu0 %v143
    %217 = vmatpush.msra.mxu0 %v139
    %218 = vmatpush.msra.mxu0 %v135
    %219 = vmatpush.msra.mxu0 %v131
    %220 = vmatpush.msra.mxu0 %v127
    %221 = vmatpush.msra.mxu0 %v123
    %222 = vmatpush.msra.mxu0 %v119
    %223 = vmatpush.msra.mxu0 %v115
    %224 = vmatmul.f32.gmra.mxu0 %v113
    %v225 = vpop.f32.mrf.mxu0
    %v226 = vadd.f32 %v181, %v225
    %227 = vdwg.mxu0
    %228 = vmatpush.msra.mxu0 %v176
    %229 = vmatpush.msra.mxu0 %v172
    %230 = vmatpush.msra.mxu0 %v168
    %231 = vmatpush.msra.mxu0 %v164
    %232 = vmatpush.msra.mxu0 %v160
    %233 = vmatpush.msra.mxu0 %v156
    %234 = vmatpush.msra.mxu0 %v152
    %235 = vmatpush.msra.mxu0 %v148
    %236 = vmatpush.msra.mxu0 %v144
    %237 = vmatpush.msra.mxu0 %v140
    %238 = vmatpush.msra.mxu0 %v136
    %239 = vmatpush.msra.mxu0 %v132
    %240 = vmatpush.msra.mxu0 %v128
    %241 = vmatpush.msra.mxu0 %v124
    %242 = vmatpush.msra.mxu0 %v120
    %243 = vmatpush.msra.mxu0 %v116
    %244 = vmatmul.f32.gmra.mxu0 %v113
    %v245 = vpop.f32.mrf.mxu0
    %v246 = vadd.f32 %v182, %v245
    %247 = vdwg.mxu0
    %248 = vmatpush.msra.mxu0 %v177
    %249 = vmatpush.msra.mxu0 %v173
    %250 = vmatpush.msra.mxu0 %v169
    %251 = vmatpush.msra.mxu0 %v165
    %252 = vmatpush.msra.mxu0 %v161
    %253 = vmatpush.msra.mxu0 %v157
    %254 = vmatpush.msra.mxu0 %v153
    %255 = vmatpush.msra.mxu0 %v149
    %256 = vmatpush.msra.mxu0 %v145
    %257 = vmatpush.msra.mxu0 %v141
    %258 = vmatpush.msra.mxu0 %v137
    %259 = vmatpush.msra.mxu0 %v133
    %260 = vmatpush.msra.mxu0 %v129
    %261 = vmatpush.msra.mxu0 %v125
    %262 = vmatpush.msra.mxu0 %v121
    %263 = vmatpush.msra.mxu0 %v117
    %264 = vmatmul.f32.gmra.mxu0 %v113
    %v265 = vpop.f32.mrf.mxu0
    %v266 = vadd.f32 %v183, %v265
    %267 = vdwg.mxu0
    %268 = vst [vmem:[#allocation3] sm:$0xff] %v206
    %269 = vst [vmem:[#allocation3 + $0x8] sm:$0xff] %v226
    %270 = vst [vmem:[#allocation3 + $0x10] sm:$0xff] %v246
    %271 = vst [vmem:[#allocation3 + $0x18] sm:$0xff] %v266
    %v272 = vld [vmem:[#allocation7] sm:$0xff]
    %v273 = vld [vmem:[#allocation7 + $0x8] sm:$0xff]
    %v274 = vld [vmem:[#allocation7 + $0x10] sm:$0xff]
    %v275 = vld [vmem:[#allocation7 + $0x18] sm:$0xff]
    %v276 = vld [vmem:[#allocation7 + $0x20] sm:$0xff]
    %v277 = vld [vmem:[#allocation7 + $0x28] sm:$0xff]
    %v278 = vld [vmem:[#allocation7 + $0x30] sm:$0xff]
    %v279 = vld [vmem:[#allocation7 + $0x38] sm:$0xff]
    %v280 = vld [vmem:[#allocation7 + $0x40] sm:$0xff]
    %v281 = vld [vmem:[#allocation7 + $0x48] sm:$0xff]
    %v282 = vld [vmem:[#allocation7 + $0x50] sm:$0xff]
    %v283 = vld [vmem:[#allocation7 + $0x58] sm:$0xff]
    %v284 = vld [vmem:[#allocation7 + $0x60] sm:$0xff]
    %v285 = vld [vmem:[#allocation7 + $0x68] sm:$0xff]
    %v286 = vld [vmem:[#allocation7 + $0x70] sm:$0xff]
    %v287 = vld [vmem:[#allocation7 + $0x78] sm:$0xff]
    %v288 = vld [vmem:[#allocation7 + $0x80] sm:$0xff]
    %v289 = vld [vmem:[#allocation7 + $0x88] sm:$0xff]
    %v290 = vld [vmem:[#allocation7 + $0x90] sm:$0xff]
    %v291 = vld [vmem:[#allocation7 + $0x98] sm:$0xff]
    %v292 = vld [vmem:[#allocation7 + $0xa0] sm:$0xff]
    %v293 = vld [vmem:[#allocation7 + $0xa8] sm:$0xff]
    %v294 = vld [vmem:[#allocation7 + $0xb0] sm:$0xff]
    %v295 = vld [vmem:[#allocation7 + $0xb8] sm:$0xff]
    %v296 = vld [vmem:[#allocation7 + $0xc0] sm:$0xff]
    %v297 = vld [vmem:[#allocation7 + $0xc8] sm:$0xff]
    %v298 = vld [vmem:[#allocation7 + $0xd0] sm:$0xff]
    %v299 = vld [vmem:[#allocation7 + $0xd8] sm:$0xff]
    %v300 = vld [vmem:[#allocation7 + $0xe0] sm:$0xff]
    %v301 = vld [vmem:[#allocation7 + $0xe8] sm:$0xff]
    %v302 = vld [vmem:[#allocation7 + $0xf0] sm:$0xff]
    %v303 = vld [vmem:[#allocation7 + $0xf8] sm:$0xff]
    %v304 = vld [vmem:[#allocation7 + $0x100] sm:$0xff]
    %v305 = vld [vmem:[#allocation7 + $0x108] sm:$0xff]
    %v306 = vld [vmem:[#allocation7 + $0x110] sm:$0xff]
    %v307 = vld [vmem:[#allocation7 + $0x118] sm:$0xff]
    %v308 = vld [vmem:[#allocation7 + $0x120] sm:$0xff]
    %v309 = vld [vmem:[#allocation7 + $0x128] sm:$0xff]
    %v310 = vld [vmem:[#allocation7 + $0x130] sm:$0xff]
    %v311 = vld [vmem:[#allocation7 + $0x138] sm:$0xff]
    %v312 = vld [vmem:[#allocation7 + $0x140] sm:$0xff]
    %v313 = vld [vmem:[#allocation7 + $0x148] sm:$0xff]
    %v314 = vld [vmem:[#allocation7 + $0x150] sm:$0xff]
    %v315 = vld [vmem:[#allocation7 + $0x158] sm:$0xff]
    %v316 = vld [vmem:[#allocation7 + $0x160] sm:$0xff]
    %v317 = vld [vmem:[#allocation7 + $0x168] sm:$0xff]
    %v318 = vld [vmem:[#allocation7 + $0x170] sm:$0xff]
    %v319 = vld [vmem:[#allocation7 + $0x178] sm:$0xff]
    %v320 = vld [vmem:[#allocation7 + $0x180] sm:$0xff]
    %v321 = vld [vmem:[#allocation7 + $0x188] sm:$0xff]
    %v322 = vld [vmem:[#allocation7 + $0x190] sm:$0xff]
    %v323 = vld [vmem:[#allocation7 + $0x198] sm:$0xff]
    %v324 = vld [vmem:[#allocation7 + $0x1a0] sm:$0xff]
    %v325 = vld [vmem:[#allocation7 + $0x1a8] sm:$0xff]
    %v326 = vld [vmem:[#allocation7 + $0x1b0] sm:$0xff]
    %v327 = vld [vmem:[#allocation7 + $0x1b8] sm:$0xff]
    %v328 = vld [vmem:[#allocation7 + $0x1c0] sm:$0xff]
    %v329 = vld [vmem:[#allocation7 + $0x1c8] sm:$0xff]
    %v330 = vld [vmem:[#allocation7 + $0x1d0] sm:$0xff]
    %v331 = vld [vmem:[#allocation7 + $0x1d8] sm:$0xff]
    %v332 = vld [vmem:[#allocation7 + $0x1e0] sm:$0xff]
    %v333 = vld [vmem:[#allocation7 + $0x1e8] sm:$0xff]
    %v334 = vld [vmem:[#allocation7 + $0x1f0] sm:$0xff]
    %v335 = vld [vmem:[#allocation7 + $0x1f8] sm:$0xff]
    %v336 = vld [vmem:[%s8] sm:$0x1]
    %v337 = vld [vmem:[%s9] sm:$0x1]
    %v338 = vld [vmem:[#allocation3] ss:$8 sm:$0xf]
    %339 = vmatpush.msra.mxu0 %v332
    %340 = vmatpush.msra.mxu0 %v328
    %341 = vmatpush.msra.mxu0 %v324
    %342 = vmatpush.msra.mxu0 %v320
    %343 = vmatpush.msra.mxu0 %v316
    %344 = vmatpush.msra.mxu0 %v312
    %345 = vmatpush.msra.mxu0 %v308
    %346 = vmatpush.msra.mxu0 %v304
    %347 = vmatpush.msra.mxu0 %v300
    %348 = vmatpush.msra.mxu0 %v296
    %349 = vmatpush.msra.mxu0 %v292
    %350 = vmatpush.msra.mxu0 %v288
    %351 = vmatpush.msra.mxu0 %v284
    %352 = vmatpush.msra.mxu0 %v280
    %353 = vmatpush.msra.mxu0 %v276
    %354 = vmatpush.msra.mxu0 %v272
    %355 = vmatmul.f32.gmra.mxu0 %v336
    %v356 = vpop.f32.mrf.mxu0
    %v357 = vadd.f32 0.0, %v356
    %358 = vdwg.mxu0
    %359 = vmatpush.msra.mxu0 %v333
    %360 = vmatpush.msra.mxu0 %v329
    %361 = vmatpush.msra.mxu0 %v325
    %362 = vmatpush.msra.mxu0 %v321
    %363 = vmatpush.msra.mxu0 %v317
    %364 = vmatpush.msra.mxu0 %v313
    %365 = vmatpush.msra.mxu0 %v309
    %366 = vmatpush.msra.mxu0 %v305
    %367 = vmatpush.msra.mxu0 %v301
    %368 = vmatpush.msra.mxu0 %v297
    %369 = vmatpush.msra.mxu0 %v293
    %370 = vmatpush.msra.mxu0 %v289
    %371 = vmatpush.msra.mxu0 %v285
    %372 = vmatpush.msra.mxu0 %v281
    %373 = vmatpush.msra.mxu0 %v277
    %374 = vmatpush.msra.mxu0 %v273
    %375 = vmatmul.f32.gmra.mxu0 %v336
    %v376 = vpop.f32.mrf.mxu0
    %v377 = vadd.f32 0.0, %v376
    %378 = vdwg.mxu0
    %379 = vmatpush.msra.mxu0 %v334
    %380 = vmatpush.msra.mxu0 %v330
    %381 = vmatpush.msra.mxu0 %v326
    %382 = vmatpush.msra.mxu0 %v322
    %383 = vmatpush.msra.mxu0 %v318
    %384 = vmatpush.msra.mxu0 %v314
    %385 = vmatpush.msra.mxu0 %v310
    %386 = vmatpush.msra.mxu0 %v306
    %387 = vmatpush.msra.mxu0 %v302
    %388 = vmatpush.msra.mxu0 %v298
    %389 = vmatpush.msra.mxu0 %v294
    %390 = vmatpush.msra.mxu0 %v290
    %391 = vmatpush.msra.mxu0 %v286
    %392 = vmatpush.msra.mxu0 %v282
    %393 = vmatpush.msra.mxu0 %v278
    %394 = vmatpush.msra.mxu0 %v274
    %395 = vmatmul.f32.gmra.mxu0 %v336
    %v396 = vpop.f32.mrf.mxu0
    %v397 = vadd.f32 0.0, %v396
    %398 = vdwg.mxu0
    %399 = vmatpush.msra.mxu0 %v335
    %400 = vmatpush.msra.mxu0 %v331
    %401 = vmatpush.msra.mxu0 %v327
    %402 = vmatpush.msra.mxu0 %v323
    %403 = vmatpush.msra.mxu0 %v319
    %404 = vmatpush.msra.mxu0 %v315
    %405 = vmatpush.msra.mxu0 %v311
    %406 = vmatpush.msra.mxu0 %v307
    %407 = vmatpush.msra.mxu0 %v303
    %408 = vmatpush.msra.mxu0 %v299
    %409 = vmatpush.msra.mxu0 %v295
    %410 = vmatpush.msra.mxu0 %v291
    %411 = vmatpush.msra.mxu0 %v287
    %412 = vmatpush.msra.mxu0 %v283
    %413 = vmatpush.msra.mxu0 %v279
    %414 = vmatpush.msra.mxu0 %v275
    %415 = vmatmul.f32.gmra.mxu0 %v336
    %v416 = vpop.f32.mrf.mxu0
    %v417 = vadd.f32 0.0, %v416
    %418 = vdwg.mxu0
    %v423 = vrot.slane %v377, 7
    %v424 = vrot.slane %v397, 6
    %v425 = vrot.slane %v417, 5
    %vm426 = vcmask 1040384
    %v427 = vsel %vm426, %v357, %v423
    %vm428 = vcmask 1042434
    %v429 = vsel %vm428, %v424, %v425
    %vm430 = vcmask 1041408
    %v431 = vsel %vm430, %v427, %v429
    %v433 = vadd.f32 %v338, %v431
    %v434 = vxor.u32 %v433, 2147483648
    %v435 = vmul.f32 %v434, 1.442695
    %v436 = vpow.pop %v435
    %v437 = vadd.f32 %v436, 1.0
    %v438 = vrcp.pop %v437
    %v439 = vmul.f32 %v437, %v438
    %v440 = vsub.f32 1.0, %v439
    %v441 = vmul.f32 %v438, %v440
    %v442 = vadd.f32 %v438, %v441
    %vm443 = vweird.f32 %v437
    %vm444 = vweird.f32 %v438
    %vm445 = vmor %vm443, %vm444
    %v446 = vsel %vm445, %v438, %v442
    %v447 = vand.u32 2147483647, %v437
    %vm448 = vcmp.eq.f32.partialorder %v447, 8.507059e+37
    %v449 = vand.u32 %v437, 2147483648
    %v450 = vor.u32 1.1754944e-38, %v449
    %v451 = vsel %vm448, %v450, %v446
    %v452 = vmul.f32 1.0, %v451
    %v454 = vrot.slane %v433, 2
    %v456 = vtanh.pop %v454
    %v457 = vrot.slane %v433, 3
    %v459 = vxor.u32 %v457, 2147483648
    %v460 = vmul.f32 %v459, 1.442695
    %v461 = vpow.pop %v460
    %v462 = vadd.f32 %v461, 1.0
    %v463 = vrcp.pop %v462
    %v464 = vmul.f32 %v462, %v463
    %v465 = vsub.f32 1.0, %v464
    %v466 = vmul.f32 %v463, %v465
    %v467 = vadd.f32 %v463, %v466
    %vm468 = vweird.f32 %v462
    %vm469 = vweird.f32 %v463
    %vm470 = vmor %vm468, %vm469
    %v471 = vsel %vm470, %v463, %v467
    %v472 = vand.u32 2147483647, %v462
    %vm473 = vcmp.eq.f32.partialorder %v472, 8.507059e+37
    %v474 = vand.u32 %v462, 2147483648
    %v475 = vor.u32 1.1754944e-38, %v474
    %v476 = vsel %vm473, %v475, %v471
    %v477 = vmul.f32 1.0, %v476
    %v479 = vrot.slane %v452, 1
    %v481 = vmul.f32 %v479, %v337
    %v482 = vmul.f32 %v452, %v456
    %v483 = vadd.f32 %v481, %v482
    %v484 = vtanh.pop %v483
    %v485 = vmul.f32 %v477, %v484
    %486 = vst [vmem:[#allocation2] sm:$0x1] %v485
    %s487 = scalar_lea.vmem [#allocation3], 1
    %v488 = vld [vmem:[%s487] ss:$8 sm:$0xf]
    %489 = vmatpush.msra.mxu0 %v332
    %490 = vmatpush.msra.mxu0 %v328
    %491 = vmatpush.msra.mxu0 %v324
    %492 = vmatpush.msra.mxu0 %v320
    %493 = vmatpush.msra.mxu0 %v316
    %494 = vmatpush.msra.mxu0 %v312
    %495 = vmatpush.msra.mxu0 %v308
    %496 = vmatpush.msra.mxu0 %v304
    %497 = vmatpush.msra.mxu0 %v300
    %498 = vmatpush.msra.mxu0 %v296
    %499 = vmatpush.msra.mxu0 %v292
    %500 = vmatpush.msra.mxu0 %v288
    %501 = vmatpush.msra.mxu0 %v284
    %502 = vmatpush.msra.mxu0 %v280
    %503 = vmatpush.msra.mxu0 %v276
    %504 = vmatpush.msra.mxu0 %v272
    %505 = vmatmul.f32.gmra.mxu0 %v485
    %v506 = vpop.f32.mrf.mxu0
    %v507 = vadd.f32 0.0, %v506
    %508 = vdwg.mxu0
    %509 = vmatpush.msra.mxu0 %v333
    %510 = vmatpush.msra.mxu0 %v329
    %511 = vmatpush.msra.mxu0 %v325
    %512 = vmatpush.msra.mxu0 %v321
    %513 = vmatpush.msra.mxu0 %v317
    %514 = vmatpush.msra.mxu0 %v313
    %515 = vmatpush.msra.mxu0 %v309
    %516 = vmatpush.msra.mxu0 %v305
    %517 = vmatpush.msra.mxu0 %v301
    %518 = vmatpush.msra.mxu0 %v297
    %519 = vmatpush.msra.mxu0 %v293
    %520 = vmatpush.msra.mxu0 %v289
    %521 = vmatpush.msra.mxu0 %v285
    %522 = vmatpush.msra.mxu0 %v281
    %523 = vmatpush.msra.mxu0 %v277
    %524 = vmatpush.msra.mxu0 %v273
    %525 = vmatmul.f32.gmra.mxu0 %v485
    %v526 = vpop.f32.mrf.mxu0
    %v527 = vadd.f32 0.0, %v526
    %528 = vdwg.mxu0
    %529 = vmatpush.msra.mxu0 %v334
    %530 = vmatpush.msra.mxu0 %v330
    %531 = vmatpush.msra.mxu0 %v326
    %532 = vmatpush.msra.mxu0 %v322
    %533 = vmatpush.msra.mxu0 %v318
    %534 = vmatpush.msra.mxu0 %v314
    %535 = vmatpush.msra.mxu0 %v310
    %536 = vmatpush.msra.mxu0 %v306
    %537 = vmatpush.msra.mxu0 %v302
    %538 = vmatpush.msra.mxu0 %v298
    %539 = vmatpush.msra.mxu0 %v294
    %540 = vmatpush.msra.mxu0 %v290
    %541 = vmatpush.msra.mxu0 %v286
    %542 = vmatpush.msra.mxu0 %v282
    %543 = vmatpush.msra.mxu0 %v278
    %544 = vmatpush.msra.mxu0 %v274
    %545 = vmatmul.f32.gmra.mxu0 %v485
    %v546 = vpop.f32.mrf.mxu0
    %v547 = vadd.f32 0.0, %v546
    %548 = vdwg.mxu0
    %549 = vmatpush.msra.mxu0 %v335
    %550 = vmatpush.msra.mxu0 %v331
    %551 = vmatpush.msra.mxu0 %v327
    %552 = vmatpush.msra.mxu0 %v323
    %553 = vmatpush.msra.mxu0 %v319
    %554 = vmatpush.msra.mxu0 %v315
    %555 = vmatpush.msra.mxu0 %v311
    %556 = vmatpush.msra.mxu0 %v307
    %557 = vmatpush.msra.mxu0 %v303
    %558 = vmatpush.msra.mxu0 %v299
    %559 = vmatpush.msra.mxu0 %v295
    %560 = vmatpush.msra.mxu0 %v291
    %561 = vmatpush.msra.mxu0 %v287
    %562 = vmatpush.msra.mxu0 %v283
    %563 = vmatpush.msra.mxu0 %v279
    %564 = vmatpush.msra.mxu0 %v275
    %565 = vmatmul.f32.gmra.mxu0 %v485
    %v566 = vpop.f32.mrf.mxu0
    %v567 = vadd.f32 0.0, %v566
    %568 = vdwg.mxu0
    %v573 = vrot.slane %v527, 7
    %v574 = vrot.slane %v547, 6
    %v575 = vrot.slane %v567, 5
    %v576 = vsel %vm426, %v507, %v573
    %v577 = vsel %vm428, %v574, %v575
    %v578 = vsel %vm430, %v576, %v577
    %v580 = vadd.f32 %v488, %v578
    %v581 = vxor.u32 %v580, 2147483648
    %v582 = vmul.f32 %v581, 1.442695
    %v583 = vpow.pop %v582
    %v584 = vadd.f32 %v583, 1.0
    %v585 = vrcp.pop %v584
    %v586 = vmul.f32 %v584, %v585
    %v587 = vsub.f32 1.0, %v586
    %v588 = vmul.f32 %v585, %v587
    %v589 = vadd.f32 %v585, %v588
    %vm590 = vweird.f32 %v584
    %vm591 = vweird.f32 %v585
    %vm592 = vmor %vm590, %vm591
    %v593 = vsel %vm592, %v585, %v589
    %v594 = vand.u32 2147483647, %v584
    %vm595 = vcmp.eq.f32.partialorder %v594, 8.507059e+37
    %v596 = vand.u32 %v584, 2147483648
    %v597 = vor.u32 1.1754944e-38, %v596
    %v598 = vsel %vm595, %v597, %v593
    %v599 = vmul.f32 1.0, %v598
    %v601 = vrot.slane %v580, 2
    %v603 = vtanh.pop %v601
    %v604 = vrot.slane %v580, 3
    %v606 = vxor.u32 %v604, 2147483648
    %v607 = vmul.f32 %v606, 1.442695
    %v608 = vpow.pop %v607
    %v609 = vadd.f32 %v608, 1.0
    %v610 = vrcp.pop %v609
    %v611 = vmul.f32 %v609, %v610
    %v612 = vsub.f32 1.0, %v611
    %v613 = vmul.f32 %v610, %v612
    %v614 = vadd.f32 %v610, %v613
    %vm615 = vweird.f32 %v609
    %vm616 = vweird.f32 %v610
    %vm617 = vmor %vm615, %vm616
    %v618 = vsel %vm617, %v610, %v614
    %v619 = vand.u32 2147483647, %v609
    %vm620 = vcmp.eq.f32.partialorder %v619, 8.507059e+37
    %v621 = vand.u32 %v609, 2147483648
    %v622 = vor.u32 1.1754944e-38, %v621
    %v623 = vsel %vm620, %v622, %v618
    %v624 = vmul.f32 1.0, %v623
    %v626 = vrot.slane %v599, 1
    %v628 = vmul.f32 %v626, %v483
    %v629 = vmul.f32 %v599, %v603
    %v630 = vadd.f32 %v628, %v629
    %v631 = vtanh.pop %v630
    %v632 = vmul.f32 %v624, %v631
    %633 = vst [vmem:[#allocation2 + $0x1] sm:$0x1] %v632
    %s634 = scalar_lea.vmem [#allocation3], 2
    %v635 = vld [vmem:[%s634] ss:$8 sm:$0xf]
    %636 = vmatpush.msra.mxu0 %v332
    %637 = vmatpush.msra.mxu0 %v328
    %638 = vmatpush.msra.mxu0 %v324
    %639 = vmatpush.msra.mxu0 %v320
    %640 = vmatpush.msra.mxu0 %v316
    %641 = vmatpush.msra.mxu0 %v312
    %642 = vmatpush.msra.mxu0 %v308
    %643 = vmatpush.msra.mxu0 %v304
    %644 = vmatpush.msra.mxu0 %v300
    %645 = vmatpush.msra.mxu0 %v296
    %646 = vmatpush.msra.mxu0 %v292
    %647 = vmatpush.msra.mxu0 %v288
    %648 = vmatpush.msra.mxu0 %v284
    %649 = vmatpush.msra.mxu0 %v280
    %650 = vmatpush.msra.mxu0 %v276
    %651 = vmatpush.msra.mxu0 %v272
    %652 = vmatmul.f32.gmra.mxu0 %v632
    %v653 = vpop.f32.mrf.mxu0
    %v654 = vadd.f32 0.0, %v653
    %655 = vdwg.mxu0
    %656 = vmatpush.msra.mxu0 %v333
    %657 = vmatpush.msra.mxu0 %v329
    %658 = vmatpush.msra.mxu0 %v325
    %659 = vmatpush.msra.mxu0 %v321
    %660 = vmatpush.msra.mxu0 %v317
    %661 = vmatpush.msra.mxu0 %v313
    %662 = vmatpush.msra.mxu0 %v309
    %663 = vmatpush.msra.mxu0 %v305
    %664 = vmatpush.msra.mxu0 %v301
    %665 = vmatpush.msra.mxu0 %v297
    %666 = vmatpush.msra.mxu0 %v293
    %667 = vmatpush.msra.mxu0 %v289
    %668 = vmatpush.msra.mxu0 %v285
    %669 = vmatpush.msra.mxu0 %v281
    %670 = vmatpush.msra.mxu0 %v277
    %671 = vmatpush.msra.mxu0 %v273
    %672 = vmatmul.f32.gmra.mxu0 %v632
    %v673 = vpop.f32.mrf.mxu0
    %v674 = vadd.f32 0.0, %v673
    %675 = vdwg.mxu0
    %676 = vmatpush.msra.mxu0 %v334
    %677 = vmatpush.msra.mxu0 %v330
    %678 = vmatpush.msra.mxu0 %v326
    %679 = vmatpush.msra.mxu0 %v322
    %680 = vmatpush.msra.mxu0 %v318
    %681 = vmatpush.msra.mxu0 %v314
    %682 = vmatpush.msra.mxu0 %v310
    %683 = vmatpush.msra.mxu0 %v306
    %684 = vmatpush.msra.mxu0 %v302
    %685 = vmatpush.msra.mxu0 %v298
    %686 = vmatpush.msra.mxu0 %v294
    %687 = vmatpush.msra.mxu0 %v290
    %688 = vmatpush.msra.mxu0 %v286
    %689 = vmatpush.msra.mxu0 %v282
    %690 = vmatpush.msra.mxu0 %v278
    %691 = vmatpush.msra.mxu0 %v274
    %692 = vmatmul.f32.gmra.mxu0 %v632
    %v693 = vpop.f32.mrf.mxu0
    %v694 = vadd.f32 0.0, %v693
    %695 = vdwg.mxu0
    %696 = vmatpush.msra.mxu0 %v335
    %697 = vmatpush.msra.mxu0 %v331
    %698 = vmatpush.msra.mxu0 %v327
    %699 = vmatpush.msra.mxu0 %v323
    %700 = vmatpush.msra.mxu0 %v319
    %701 = vmatpush.msra.mxu0 %v315
    %702 = vmatpush.msra.mxu0 %v311
    %703 = vmatpush.msra.mxu0 %v307
    %704 = vmatpush.msra.mxu0 %v303
    %705 = vmatpush.msra.mxu0 %v299
    %706 = vmatpush.msra.mxu0 %v295
    %707 = vmatpush.msra.mxu0 %v291
    %708 = vmatpush.msra.mxu0 %v287
    %709 = vmatpush.msra.mxu0 %v283
    %710 = vmatpush.msra.mxu0 %v279
    %711 = vmatpush.msra.mxu0 %v275
    %712 = vmatmul.f32.gmra.mxu0 %v632
    %v713 = vpop.f32.mrf.mxu0
    %v714 = vadd.f32 0.0, %v713
    %715 = vdwg.mxu0
    %v720 = vrot.slane %v674, 7
    %v721 = vrot.slane %v694, 6
    %v722 = vrot.slane %v714, 5
    %v723 = vsel %vm426, %v654, %v720
    %v724 = vsel %vm428, %v721, %v722
    %v725 = vsel %vm430, %v723, %v724
    %v727 = vadd.f32 %v635, %v725
    %v728 = vxor.u32 %v727, 2147483648
    %v729 = vmul.f32 %v728, 1.442695
    %v730 = vpow.pop %v729
    %v731 = vadd.f32 %v730, 1.0
    %v732 = vrcp.pop %v731
    %v733 = vmul.f32 %v731, %v732
    %v734 = vsub.f32 1.0, %v733
    %v735 = vmul.f32 %v732, %v734
    %v736 = vadd.f32 %v732, %v735
    %vm737 = vweird.f32 %v731
    %vm738 = vweird.f32 %v732
    %vm739 = vmor %vm737, %vm738
    %v740 = vsel %vm739, %v732, %v736
    %v741 = vand.u32 2147483647, %v731
    %vm742 = vcmp.eq.f32.partialorder %v741, 8.507059e+37
    %v743 = vand.u32 %v731, 2147483648
    %v744 = vor.u32 1.1754944e-38, %v743
    %v745 = vsel %vm742, %v744, %v740
    %v746 = vmul.f32 1.0, %v745
    %v748 = vrot.slane %v727, 2
    %v750 = vtanh.pop %v748
    %v751 = vrot.slane %v727, 3
    %v753 = vxor.u32 %v751, 2147483648
    %v754 = vmul.f32 %v753, 1.442695
    %v755 = vpow.pop %v754
    %v756 = vadd.f32 %v755, 1.0
    %v757 = vrcp.pop %v756
    %v758 = vmul.f32 %v756, %v757
    %v759 = vsub.f32 1.0, %v758
    %v760 = vmul.f32 %v757, %v759
    %v761 = vadd.f32 %v757, %v760
    %vm762 = vweird.f32 %v756
    %vm763 = vweird.f32 %v757
    %vm764 = vmor %vm762, %vm763
    %v765 = vsel %vm764, %v757, %v761
    %v766 = vand.u32 2147483647, %v756
    %vm767 = vcmp.eq.f32.partialorder %v766, 8.507059e+37
    %v768 = vand.u32 %v756, 2147483648
    %v769 = vor.u32 1.1754944e-38, %v768
    %v770 = vsel %vm767, %v769, %v765
    %v771 = vmul.f32 1.0, %v770
    %v773 = vrot.slane %v746, 1
    %v775 = vmul.f32 %v773, %v630
    %v776 = vmul.f32 %v746, %v750
    %v777 = vadd.f32 %v775, %v776
    %v778 = vtanh.pop %v777
    %v779 = vmul.f32 %v771, %v778
    %780 = vst [vmem:[#allocation2 + $0x2] sm:$0x1] %v779
    %s781 = scalar_lea.vmem [#allocation3], 3
    %v782 = vld [vmem:[%s781] ss:$8 sm:$0xf]
    %783 = vmatpush.msra.mxu0 %v332
    %784 = vmatpush.msra.mxu0 %v328
    %785 = vmatpush.msra.mxu0 %v324
    %786 = vmatpush.msra.mxu0 %v320
    %787 = vmatpush.msra.mxu0 %v316
    %788 = vmatpush.msra.mxu0 %v312
    %789 = vmatpush.msra.mxu0 %v308
    %790 = vmatpush.msra.mxu0 %v304
    %791 = vmatpush.msra.mxu0 %v300
    %792 = vmatpush.msra.mxu0 %v296
    %793 = vmatpush.msra.mxu0 %v292
    %794 = vmatpush.msra.mxu0 %v288
    %795 = vmatpush.msra.mxu0 %v284
    %796 = vmatpush.msra.mxu0 %v280
    %797 = vmatpush.msra.mxu0 %v276
    %798 = vmatpush.msra.mxu0 %v272
    %799 = vmatmul.f32.gmra.mxu0 %v779
    %v800 = vpop.f32.mrf.mxu0
    %v801 = vadd.f32 0.0, %v800
    %802 = vdwg.mxu0
    %803 = vmatpush.msra.mxu0 %v333
    %804 = vmatpush.msra.mxu0 %v329
    %805 = vmatpush.msra.mxu0 %v325
    %806 = vmatpush.msra.mxu0 %v321
    %807 = vmatpush.msra.mxu0 %v317
    %808 = vmatpush.msra.mxu0 %v313
    %809 = vmatpush.msra.mxu0 %v309
    %810 = vmatpush.msra.mxu0 %v305
    %811 = vmatpush.msra.mxu0 %v301
    %812 = vmatpush.msra.mxu0 %v297
    %813 = vmatpush.msra.mxu0 %v293
    %814 = vmatpush.msra.mxu0 %v289
    %815 = vmatpush.msra.mxu0 %v285
    %816 = vmatpush.msra.mxu0 %v281
    %817 = vmatpush.msra.mxu0 %v277
    %818 = vmatpush.msra.mxu0 %v273
    %819 = vmatmul.f32.gmra.mxu0 %v779
    %v820 = vpop.f32.mrf.mxu0
    %v821 = vadd.f32 0.0, %v820
    %822 = vdwg.mxu0
    %823 = vmatpush.msra.mxu0 %v334
    %824 = vmatpush.msra.mxu0 %v330
    %825 = vmatpush.msra.mxu0 %v326
    %826 = vmatpush.msra.mxu0 %v322
    %827 = vmatpush.msra.mxu0 %v318
    %828 = vmatpush.msra.mxu0 %v314
    %829 = vmatpush.msra.mxu0 %v310
    %830 = vmatpush.msra.mxu0 %v306
    %831 = vmatpush.msra.mxu0 %v302
    %832 = vmatpush.msra.mxu0 %v298
    %833 = vmatpush.msra.mxu0 %v294
    %834 = vmatpush.msra.mxu0 %v290
    %835 = vmatpush.msra.mxu0 %v286
    %836 = vmatpush.msra.mxu0 %v282
    %837 = vmatpush.msra.mxu0 %v278
    %838 = vmatpush.msra.mxu0 %v274
    %839 = vmatmul.f32.gmra.mxu0 %v779
    %v840 = vpop.f32.mrf.mxu0
    %v841 = vadd.f32 0.0, %v840
    %842 = vdwg.mxu0
    %843 = vmatpush.msra.mxu0 %v335
    %844 = vmatpush.msra.mxu0 %v331
    %845 = vmatpush.msra.mxu0 %v327
    %846 = vmatpush.msra.mxu0 %v323
    %847 = vmatpush.msra.mxu0 %v319
    %848 = vmatpush.msra.mxu0 %v315
    %849 = vmatpush.msra.mxu0 %v311
    %850 = vmatpush.msra.mxu0 %v307
    %851 = vmatpush.msra.mxu0 %v303
    %852 = vmatpush.msra.mxu0 %v299
    %853 = vmatpush.msra.mxu0 %v295
    %854 = vmatpush.msra.mxu0 %v291
    %855 = vmatpush.msra.mxu0 %v287
    %856 = vmatpush.msra.mxu0 %v283
    %857 = vmatpush.msra.mxu0 %v279
    %858 = vmatpush.msra.mxu0 %v275
    %859 = vmatmul.f32.gmra.mxu0 %v779
    %v860 = vpop.f32.mrf.mxu0
    %v861 = vadd.f32 0.0, %v860
    %862 = vdwg.mxu0
    %v867 = vrot.slane %v821, 7
    %v868 = vrot.slane %v841, 6
    %v869 = vrot.slane %v861, 5
    %v870 = vsel %vm426, %v801, %v867
    %v871 = vsel %vm428, %v868, %v869
    %v872 = vsel %vm430, %v870, %v871
    %v874 = vadd.f32 %v782, %v872
    %v875 = vxor.u32 %v874, 2147483648
    %v876 = vmul.f32 %v875, 1.442695
    %v877 = vpow.pop %v876
    %v878 = vadd.f32 %v877, 1.0
    %v879 = vrcp.pop %v878
    %v880 = vmul.f32 %v878, %v879
    %v881 = vsub.f32 1.0, %v880
    %v882 = vmul.f32 %v879, %v881
    %v883 = vadd.f32 %v879, %v882
    %vm884 = vweird.f32 %v878
    %vm885 = vweird.f32 %v879
    %vm886 = vmor %vm884, %vm885
    %v887 = vsel %vm886, %v879, %v883
    %v888 = vand.u32 2147483647, %v878
    %vm889 = vcmp.eq.f32.partialorder %v888, 8.507059e+37
    %v890 = vand.u32 %v878, 2147483648
    %v891 = vor.u32 1.1754944e-38, %v890
    %v892 = vsel %vm889, %v891, %v887
    %v893 = vmul.f32 1.0, %v892
    %v895 = vrot.slane %v874, 2
    %v897 = vtanh.pop %v895
    %v898 = vrot.slane %v874, 3
    %v900 = vxor.u32 %v898, 2147483648
    %v901 = vmul.f32 %v900, 1.442695
    %v902 = vpow.pop %v901
    %v903 = vadd.f32 %v902, 1.0
    %v904 = vrcp.pop %v903
    %v905 = vmul.f32 %v903, %v904
    %v906 = vsub.f32 1.0, %v905
    %v907 = vmul.f32 %v904, %v906
    %v908 = vadd.f32 %v904, %v907
    %vm909 = vweird.f32 %v903
    %vm910 = vweird.f32 %v904
    %vm911 = vmor %vm909, %vm910
    %v912 = vsel %vm911, %v904, %v908
    %v913 = vand.u32 2147483647, %v903
    %vm914 = vcmp.eq.f32.partialorder %v913, 8.507059e+37
    %v915 = vand.u32 %v903, 2147483648
    %v916 = vor.u32 1.1754944e-38, %v915
    %v917 = vsel %vm914, %v916, %v912
    %v918 = vmul.f32 1.0, %v917
    %v920 = vrot.slane %v893, 1
    %v922 = vmul.f32 %v920, %v777
    %v923 = vmul.f32 %v893, %v897
    %v924 = vadd.f32 %v922, %v923
    %v925 = vtanh.pop %v924
    %v926 = vmul.f32 %v918, %v925
    %927 = vst [vmem:[#allocation2 + $0x3] sm:$0x1] %v926
    %s928 = scalar_lea.vmem [#allocation3], 4
    %v929 = vld [vmem:[%s928] ss:$8 sm:$0xf]
    %930 = vmatpush.msra.mxu0 %v332
    %931 = vmatpush.msra.mxu0 %v328
    %932 = vmatpush.msra.mxu0 %v324
    %933 = vmatpush.msra.mxu0 %v320
    %934 = vmatpush.msra.mxu0 %v316
    %935 = vmatpush.msra.mxu0 %v312
    %936 = vmatpush.msra.mxu0 %v308
    %937 = vmatpush.msra.mxu0 %v304
    %938 = vmatpush.msra.mxu0 %v300
    %939 = vmatpush.msra.mxu0 %v296
    %940 = vmatpush.msra.mxu0 %v292
    %941 = vmatpush.msra.mxu0 %v288
    %942 = vmatpush.msra.mxu0 %v284
    %943 = vmatpush.msra.mxu0 %v280
    %944 = vmatpush.msra.mxu0 %v276
    %945 = vmatpush.msra.mxu0 %v272
    %946 = vmatmul.f32.gmra.mxu0 %v926
    %v947 = vpop.f32.mrf.mxu0
    %v948 = vadd.f32 0.0, %v947
    %949 = vdwg.mxu0
    %950 = vmatpush.msra.mxu0 %v333
    %951 = vmatpush.msra.mxu0 %v329
    %952 = vmatpush.msra.mxu0 %v325
    %953 = vmatpush.msra.mxu0 %v321
    %954 = vmatpush.msra.mxu0 %v317
    %955 = vmatpush.msra.mxu0 %v313
    %956 = vmatpush.msra.mxu0 %v309
    %957 = vmatpush.msra.mxu0 %v305
    %958 = vmatpush.msra.mxu0 %v301
    %959 = vmatpush.msra.mxu0 %v297
    %960 = vmatpush.msra.mxu0 %v293
    %961 = vmatpush.msra.mxu0 %v289
    %962 = vmatpush.msra.mxu0 %v285
    %963 = vmatpush.msra.mxu0 %v281
    %964 = vmatpush.msra.mxu0 %v277
    %965 = vmatpush.msra.mxu0 %v273
    %966 = vmatmul.f32.gmra.mxu0 %v926
    %v967 = vpop.f32.mrf.mxu0
    %v968 = vadd.f32 0.0, %v967
    %969 = vdwg.mxu0
    %970 = vmatpush.msra.mxu0 %v334
    %971 = vmatpush.msra.mxu0 %v330
    %972 = vmatpush.msra.mxu0 %v326
    %973 = vmatpush.msra.mxu0 %v322
    %974 = vmatpush.msra.mxu0 %v318
    %975 = vmatpush.msra.mxu0 %v314
    %976 = vmatpush.msra.mxu0 %v310
    %977 = vmatpush.msra.mxu0 %v306
    %978 = vmatpush.msra.mxu0 %v302
    %979 = vmatpush.msra.mxu0 %v298
    %980 = vmatpush.msra.mxu0 %v294
    %981 = vmatpush.msra.mxu0 %v290
    %982 = vmatpush.msra.mxu0 %v286
    %983 = vmatpush.msra.mxu0 %v282
    %984 = vmatpush.msra.mxu0 %v278
    %985 = vmatpush.msra.mxu0 %v274
    %986 = vmatmul.f32.gmra.mxu0 %v926
    %v987 = vpop.f32.mrf.mxu0
    %v988 = vadd.f32 0.0, %v987
    %989 = vdwg.mxu0
    %990 = vmatpush.msra.mxu0 %v335
    %991 = vmatpush.msra.mxu0 %v331
    %992 = vmatpush.msra.mxu0 %v327
    %993 = vmatpush.msra.mxu0 %v323
    %994 = vmatpush.msra.mxu0 %v319
    %995 = vmatpush.msra.mxu0 %v315
    %996 = vmatpush.msra.mxu0 %v311
    %997 = vmatpush.msra.mxu0 %v307
    %998 = vmatpush.msra.mxu0 %v303
    %999 = vmatpush.msra.mxu0 %v299
    %1000 = vmatpush.msra.mxu0 %v295
    %1001 = vmatpush.msra.mxu0 %v291
    %1002 = vmatpush.msra.mxu0 %v287
    %1003 = vmatpush.msra.mxu0 %v283
    %1004 = vmatpush.msra.mxu0 %v279
    %1005 = vmatpush.msra.mxu0 %v275
    %1006 = vmatmul.f32.gmra.mxu0 %v926
    %v1007 = vpop.f32.mrf.mxu0
    %v1008 = vadd.f32 0.0, %v1007
    %1009 = vdwg.mxu0
    %v1014 = vrot.slane %v968, 7
    %v1015 = vrot.slane %v988, 6
    %v1016 = vrot.slane %v1008, 5
    %v1017 = vsel %vm426, %v948, %v1014
    %v1018 = vsel %vm428, %v1015, %v1016
    %v1019 = vsel %vm430, %v1017, %v1018
    %v1021 = vadd.f32 %v929, %v1019
    %v1022 = vxor.u32 %v1021, 2147483648
    %v1023 = vmul.f32 %v1022, 1.442695
    %v1024 = vpow.pop %v1023
    %v1025 = vadd.f32 %v1024, 1.0
    %v1026 = vrcp.pop %v1025
    %v1027 = vmul.f32 %v1025, %v1026
    %v1028 = vsub.f32 1.0, %v1027
    %v1029 = vmul.f32 %v1026, %v1028
    %v1030 = vadd.f32 %v1026, %v1029
    %vm1031 = vweird.f32 %v1025
    %vm1032 = vweird.f32 %v1026
    %vm1033 = vmor %vm1031, %vm1032
    %v1034 = vsel %vm1033, %v1026, %v1030
    %v1035 = vand.u32 2147483647, %v1025
    %vm1036 = vcmp.eq.f32.partialorder %v1035, 8.507059e+37
    %v1037 = vand.u32 %v1025, 2147483648
    %v1038 = vor.u32 1.1754944e-38, %v1037
    %v1039 = vsel %vm1036, %v1038, %v1034
    %v1040 = vmul.f32 1.0, %v1039
    %v1042 = vrot.slane %v1021, 2
    %v1044 = vtanh.pop %v1042
    %v1045 = vrot.slane %v1021, 3
    %v1047 = vxor.u32 %v1045, 2147483648
    %v1048 = vmul.f32 %v1047, 1.442695
    %v1049 = vpow.pop %v1048
    %v1050 = vadd.f32 %v1049, 1.0
    %v1051 = vrcp.pop %v1050
    %v1052 = vmul.f32 %v1050, %v1051
    %v1053 = vsub.f32 1.0, %v1052
    %v1054 = vmul.f32 %v1051, %v1053
    %v1055 = vadd.f32 %v1051, %v1054
    %vm1056 = vweird.f32 %v1050
    %vm1057 = vweird.f32 %v1051
    %vm1058 = vmor %vm1056, %vm1057
    %v1059 = vsel %vm1058, %v1051, %v1055
    %v1060 = vand.u32 2147483647, %v1050
    %vm1061 = vcmp.eq.f32.partialorder %v1060, 8.507059e+37
    %v1062 = vand.u32 %v1050, 2147483648
    %v1063 = vor.u32 1.1754944e-38, %v1062
    %v1064 = vsel %vm1061, %v1063, %v1059
    %v1065 = vmul.f32 1.0, %v1064
    %v1067 = vrot.slane %v1040, 1
    %v1069 = vmul.f32 %v1067, %v924
    %v1070 = vmul.f32 %v1040, %v1044
    %v1071 = vadd.f32 %v1069, %v1070
    %v1072 = vtanh.pop %v1071
    %v1073 = vmul.f32 %v1065, %v1072
    %1074 = vst [vmem:[#allocation2 + $0x4] sm:$0x1] %v1073
    %s1075 = scalar_lea.vmem [#allocation3], 5
    %v1076 = vld [vmem:[%s1075] ss:$8 sm:$0xf]
    %1077 = vmatpush.msra.mxu0 %v332
    %1078 = vmatpush.msra.mxu0 %v328
    %1079 = vmatpush.msra.mxu0 %v324
    %1080 = vmatpush.msra.mxu0 %v320
    %1081 = vmatpush.msra.mxu0 %v316
    %1082 = vmatpush.msra.mxu0 %v312
    %1083 = vmatpush.msra.mxu0 %v308
    %1084 = vmatpush.msra.mxu0 %v304
    %1085 = vmatpush.msra.mxu0 %v300
    %1086 = vmatpush.msra.mxu0 %v296
    %1087 = vmatpush.msra.mxu0 %v292
    %1088 = vmatpush.msra.mxu0 %v288
    %1089 = vmatpush.msra.mxu0 %v284
    %1090 = vmatpush.msra.mxu0 %v280
    %1091 = vmatpush.msra.mxu0 %v276
    %1092 = vmatpush.msra.mxu0 %v272
    %1093 = vmatmul.f32.gmra.mxu0 %v1073
    %v1094 = vpop.f32.mrf.mxu0
    %v1095 = vadd.f32 0.0, %v1094
    %1096 = vdwg.mxu0
    %1097 = vmatpush.msra.mxu0 %v333
    %1098 = vmatpush.msra.mxu0 %v329
    %1099 = vmatpush.msra.mxu0 %v325
    %1100 = vmatpush.msra.mxu0 %v321
    %1101 = vmatpush.msra.mxu0 %v317
    %1102 = vmatpush.msra.mxu0 %v313
    %1103 = vmatpush.msra.mxu0 %v309
    %1104 = vmatpush.msra.mxu0 %v305
    %1105 = vmatpush.msra.mxu0 %v301
    %1106 = vmatpush.msra.mxu0 %v297
    %1107 = vmatpush.msra.mxu0 %v293
    %1108 = vmatpush.msra.mxu0 %v289
    %1109 = vmatpush.msra.mxu0 %v285
    %1110 = vmatpush.msra.mxu0 %v281
    %1111 = vmatpush.msra.mxu0 %v277
    %1112 = vmatpush.msra.mxu0 %v273
    %1113 = vmatmul.f32.gmra.mxu0 %v1073
    %v1114 = vpop.f32.mrf.mxu0
    %v1115 = vadd.f32 0.0, %v1114
    %1116 = vdwg.mxu0
    %1117 = vmatpush.msra.mxu0 %v334
    %1118 = vmatpush.msra.mxu0 %v330
    %1119 = vmatpush.msra.mxu0 %v326
    %1120 = vmatpush.msra.mxu0 %v322
    %1121 = vmatpush.msra.mxu0 %v318
    %1122 = vmatpush.msra.mxu0 %v314
    %1123 = vmatpush.msra.mxu0 %v310
    %1124 = vmatpush.msra.mxu0 %v306
    %1125 = vmatpush.msra.mxu0 %v302
    %1126 = vmatpush.msra.mxu0 %v298
    %1127 = vmatpush.msra.mxu0 %v294
    %1128 = vmatpush.msra.mxu0 %v290
    %1129 = vmatpush.msra.mxu0 %v286
    %1130 = vmatpush.msra.mxu0 %v282
    %1131 = vmatpush.msra.mxu0 %v278
    %1132 = vmatpush.msra.mxu0 %v274
    %1133 = vmatmul.f32.gmra.mxu0 %v1073
    %v1134 = vpop.f32.mrf.mxu0
    %v1135 = vadd.f32 0.0, %v1134
    %1136 = vdwg.mxu0
    %1137 = vmatpush.msra.mxu0 %v335
    %1138 = vmatpush.msra.mxu0 %v331
    %1139 = vmatpush.msra.mxu0 %v327
    %1140 = vmatpush.msra.mxu0 %v323
    %1141 = vmatpush.msra.mxu0 %v319
    %1142 = vmatpush.msra.mxu0 %v315
    %1143 = vmatpush.msra.mxu0 %v311
    %1144 = vmatpush.msra.mxu0 %v307
    %1145 = vmatpush.msra.mxu0 %v303
    %1146 = vmatpush.msra.mxu0 %v299
    %1147 = vmatpush.msra.mxu0 %v295
    %1148 = vmatpush.msra.mxu0 %v291
    %1149 = vmatpush.msra.mxu0 %v287
    %1150 = vmatpush.msra.mxu0 %v283
    %1151 = vmatpush.msra.mxu0 %v279
    %1152 = vmatpush.msra.mxu0 %v275
    %1153 = vmatmul.f32.gmra.mxu0 %v1073
    %v1154 = vpop.f32.mrf.mxu0
    %v1155 = vadd.f32 0.0, %v1154
    %1156 = vdwg.mxu0
    %v1161 = vrot.slane %v1115, 7
    %v1162 = vrot.slane %v1135, 6
    %v1163 = vrot.slane %v1155, 5
    %v1164 = vsel %vm426, %v1095, %v1161
    %v1165 = vsel %vm428, %v1162, %v1163
    %v1166 = vsel %vm430, %v1164, %v1165
    %v1168 = vadd.f32 %v1076, %v1166
    %v1169 = vxor.u32 %v1168, 2147483648
    %v1170 = vmul.f32 %v1169, 1.442695
    %v1171 = vpow.pop %v1170
    %v1172 = vadd.f32 %v1171, 1.0
    %v1173 = vrcp.pop %v1172
    %v1174 = vmul.f32 %v1172, %v1173
    %v1175 = vsub.f32 1.0, %v1174
    %v1176 = vmul.f32 %v1173, %v1175
    %v1177 = vadd.f32 %v1173, %v1176
    %vm1178 = vweird.f32 %v1172
    %vm1179 = vweird.f32 %v1173
    %vm1180 = vmor %vm1178, %vm1179
    %v1181 = vsel %vm1180, %v1173, %v1177
    %v1182 = vand.u32 2147483647, %v1172
    %vm1183 = vcmp.eq.f32.partialorder %v1182, 8.507059e+37
    %v1184 = vand.u32 %v1172, 2147483648
    %v1185 = vor.u32 1.1754944e-38, %v1184
    %v1186 = vsel %vm1183, %v1185, %v1181
    %v1187 = vmul.f32 1.0, %v1186
    %v1189 = vrot.slane %v1168, 2
    %v1191 = vtanh.pop %v1189
    %v1192 = vrot.slane %v1168, 3
    %v1194 = vxor.u32 %v1192, 2147483648
    %v1195 = vmul.f32 %v1194, 1.442695
    %v1196 = vpow.pop %v1195
    %v1197 = vadd.f32 %v1196, 1.0
    %v1198 = vrcp.pop %v1197
    %v1199 = vmul.f32 %v1197, %v1198
    %v1200 = vsub.f32 1.0, %v1199
    %v1201 = vmul.f32 %v1198, %v1200
    %v1202 = vadd.f32 %v1198, %v1201
    %vm1203 = vweird.f32 %v1197
    %vm1204 = vweird.f32 %v1198
    %vm1205 = vmor %vm1203, %vm1204
    %v1206 = vsel %vm1205, %v1198, %v1202
    %v1207 = vand.u32 2147483647, %v1197
    %vm1208 = vcmp.eq.f32.partialorder %v1207, 8.507059e+37
    %v1209 = vand.u32 %v1197, 2147483648
    %v1210 = vor.u32 1.1754944e-38, %v1209
    %v1211 = vsel %vm1208, %v1210, %v1206
    %v1212 = vmul.f32 1.0, %v1211
    %v1214 = vrot.slane %v1187, 1
    %v1216 = vmul.f32 %v1214, %v1071
    %v1217 = vmul.f32 %v1187, %v1191
    %v1218 = vadd.f32 %v1216, %v1217
    %v1219 = vtanh.pop %v1218
    %v1220 = vmul.f32 %v1212, %v1219
    %1221 = vst [vmem:[#allocation2 + $0x5] sm:$0x1] %v1220
    %s1222 = scalar_lea.vmem [#allocation3], 6
    %v1223 = vld [vmem:[%s1222] ss:$8 sm:$0xf]
    %1224 = vmatpush.msra.mxu0 %v332
    %1225 = vmatpush.msra.mxu0 %v328
    %1226 = vmatpush.msra.mxu0 %v324
    %1227 = vmatpush.msra.mxu0 %v320
    %1228 = vmatpush.msra.mxu0 %v316
    %1229 = vmatpush.msra.mxu0 %v312
    %1230 = vmatpush.msra.mxu0 %v308
    %1231 = vmatpush.msra.mxu0 %v304
    %1232 = vmatpush.msra.mxu0 %v300
    %1233 = vmatpush.msra.mxu0 %v296
    %1234 = vmatpush.msra.mxu0 %v292
    %1235 = vmatpush.msra.mxu0 %v288
    %1236 = vmatpush.msra.mxu0 %v284
    %1237 = vmatpush.msra.mxu0 %v280
    %1238 = vmatpush.msra.mxu0 %v276
    %1239 = vmatpush.msra.mxu0 %v272
    %1240 = vmatmul.f32.gmra.mxu0 %v1220
    %v1241 = vpop.f32.mrf.mxu0
    %v1242 = vadd.f32 0.0, %v1241
    %1243 = vdwg.mxu0
    %1244 = vmatpush.msra.mxu0 %v333
    %1245 = vmatpush.msra.mxu0 %v329
    %1246 = vmatpush.msra.mxu0 %v325
    %1247 = vmatpush.msra.mxu0 %v321
    %1248 = vmatpush.msra.mxu0 %v317
    %1249 = vmatpush.msra.mxu0 %v313
    %1250 = vmatpush.msra.mxu0 %v309
    %1251 = vmatpush.msra.mxu0 %v305
    %1252 = vmatpush.msra.mxu0 %v301
    %1253 = vmatpush.msra.mxu0 %v297
    %1254 = vmatpush.msra.mxu0 %v293
    %1255 = vmatpush.msra.mxu0 %v289
    %1256 = vmatpush.msra.mxu0 %v285
    %1257 = vmatpush.msra.mxu0 %v281
    %1258 = vmatpush.msra.mxu0 %v277
    %1259 = vmatpush.msra.mxu0 %v273
    %1260 = vmatmul.f32.gmra.mxu0 %v1220
    %v1261 = vpop.f32.mrf.mxu0
    %v1262 = vadd.f32 0.0, %v1261
    %1263 = vdwg.mxu0
    %1264 = vmatpush.msra.mxu0 %v334
    %1265 = vmatpush.msra.mxu0 %v330
    %1266 = vmatpush.msra.mxu0 %v326
    %1267 = vmatpush.msra.mxu0 %v322
    %1268 = vmatpush.msra.mxu0 %v318
    %1269 = vmatpush.msra.mxu0 %v314
    %1270 = vmatpush.msra.mxu0 %v310
    %1271 = vmatpush.msra.mxu0 %v306
    %1272 = vmatpush.msra.mxu0 %v302
    %1273 = vmatpush.msra.mxu0 %v298
    %1274 = vmatpush.msra.mxu0 %v294
    %1275 = vmatpush.msra.mxu0 %v290
    %1276 = vmatpush.msra.mxu0 %v286
    %1277 = vmatpush.msra.mxu0 %v282
    %1278 = vmatpush.msra.mxu0 %v278
    %1279 = vmatpush.msra.mxu0 %v274
    %1280 = vmatmul.f32.gmra.mxu0 %v1220
    %v1281 = vpop.f32.mrf.mxu0
    %v1282 = vadd.f32 0.0, %v1281
    %1283 = vdwg.mxu0
    %1284 = vmatpush.msra.mxu0 %v335
    %1285 = vmatpush.msra.mxu0 %v331
    %1286 = vmatpush.msra.mxu0 %v327
    %1287 = vmatpush.msra.mxu0 %v323
    %1288 = vmatpush.msra.mxu0 %v319
    %1289 = vmatpush.msra.mxu0 %v315
    %1290 = vmatpush.msra.mxu0 %v311
    %1291 = vmatpush.msra.mxu0 %v307
    %1292 = vmatpush.msra.mxu0 %v303
    %1293 = vmatpush.msra.mxu0 %v299
    %1294 = vmatpush.msra.mxu0 %v295
    %1295 = vmatpush.msra.mxu0 %v291
    %1296 = vmatpush.msra.mxu0 %v287
    %1297 = vmatpush.msra.mxu0 %v283
    %1298 = vmatpush.msra.mxu0 %v279
    %1299 = vmatpush.msra.mxu0 %v275
    %1300 = vmatmul.f32.gmra.mxu0 %v1220
    %v1301 = vpop.f32.mrf.mxu0
    %v1302 = vadd.f32 0.0, %v1301
    %1303 = vdwg.mxu0
    %v1308 = vrot.slane %v1262, 7
    %v1309 = vrot.slane %v1282, 6
    %v1310 = vrot.slane %v1302, 5
    %v1311 = vsel %vm426, %v1242, %v1308
    %v1312 = vsel %vm428, %v1309, %v1310
    %v1313 = vsel %vm430, %v1311, %v1312
    %v1315 = vadd.f32 %v1223, %v1313
    %v1316 = vxor.u32 %v1315, 2147483648
    %v1317 = vmul.f32 %v1316, 1.442695
    %v1318 = vpow.pop %v1317
    %v1319 = vadd.f32 %v1318, 1.0
    %v1320 = vrcp.pop %v1319
    %v1321 = vmul.f32 %v1319, %v1320
    %v1322 = vsub.f32 1.0, %v1321
    %v1323 = vmul.f32 %v1320, %v1322
    %v1324 = vadd.f32 %v1320, %v1323
    %vm1325 = vweird.f32 %v1319
    %vm1326 = vweird.f32 %v1320
    %vm1327 = vmor %vm1325, %vm1326
    %v1328 = vsel %vm1327, %v1320, %v1324
    %v1329 = vand.u32 2147483647, %v1319
    %vm1330 = vcmp.eq.f32.partialorder %v1329, 8.507059e+37
    %v1331 = vand.u32 %v1319, 2147483648
    %v1332 = vor.u32 1.1754944e-38, %v1331
    %v1333 = vsel %vm1330, %v1332, %v1328
    %v1334 = vmul.f32 1.0, %v1333
    %v1336 = vrot.slane %v1315, 2
    %v1338 = vtanh.pop %v1336
    %v1339 = vrot.slane %v1315, 3
    %v1341 = vxor.u32 %v1339, 2147483648
    %v1342 = vmul.f32 %v1341, 1.442695
    %v1343 = vpow.pop %v1342
    %v1344 = vadd.f32 %v1343, 1.0
    %v1345 = vrcp.pop %v1344
    %v1346 = vmul.f32 %v1344, %v1345
    %v1347 = vsub.f32 1.0, %v1346
    %v1348 = vmul.f32 %v1345, %v1347
    %v1349 = vadd.f32 %v1345, %v1348
    %vm1350 = vweird.f32 %v1344
    %vm1351 = vweird.f32 %v1345
    %vm1352 = vmor %vm1350, %vm1351
    %v1353 = vsel %vm1352, %v1345, %v1349
    %v1354 = vand.u32 2147483647, %v1344
    %vm1355 = vcmp.eq.f32.partialorder %v1354, 8.507059e+37
    %v1356 = vand.u32 %v1344, 2147483648
    %v1357 = vor.u32 1.1754944e-38, %v1356
    %v1358 = vsel %vm1355, %v1357, %v1353
    %v1359 = vmul.f32 1.0, %v1358
    %v1361 = vrot.slane %v1334, 1
    %v1363 = vmul.f32 %v1361, %v1218
    %v1364 = vmul.f32 %v1334, %v1338
    %v1365 = vadd.f32 %v1363, %v1364
    %v1366 = vtanh.pop %v1365
    %v1367 = vmul.f32 %v1359, %v1366
    %1368 = vst [vmem:[#allocation2 + $0x6] sm:$0x1] %v1367
    %s1369 = scalar_lea.vmem [#allocation3], 7
    %v1370 = vld [vmem:[%s1369] ss:$8 sm:$0xf]
    %1371 = vmatpush.msra.mxu0 %v332
    %1372 = vmatpush.msra.mxu0 %v328
    %1373 = vmatpush.msra.mxu0 %v324
    %1374 = vmatpush.msra.mxu0 %v320
    %1375 = vmatpush.msra.mxu0 %v316
    %1376 = vmatpush.msra.mxu0 %v312
    %1377 = vmatpush.msra.mxu0 %v308
    %1378 = vmatpush.msra.mxu0 %v304
    %1379 = vmatpush.msra.mxu0 %v300
    %1380 = vmatpush.msra.mxu0 %v296
    %1381 = vmatpush.msra.mxu0 %v292
    %1382 = vmatpush.msra.mxu0 %v288
    %1383 = vmatpush.msra.mxu0 %v284
    %1384 = vmatpush.msra.mxu0 %v280
    %1385 = vmatpush.msra.mxu0 %v276
    %1386 = vmatpush.msra.mxu0 %v272
    %1387 = vmatmul.f32.gmra.mxu0 %v1367
    %v1388 = vpop.f32.mrf.mxu0
    %v1389 = vadd.f32 0.0, %v1388
    %1390 = vdwg.mxu0
    %1391 = vmatpush.msra.mxu0 %v333
    %1392 = vmatpush.msra.mxu0 %v329
    %1393 = vmatpush.msra.mxu0 %v325
    %1394 = vmatpush.msra.mxu0 %v321
    %1395 = vmatpush.msra.mxu0 %v317
    %1396 = vmatpush.msra.mxu0 %v313
    %1397 = vmatpush.msra.mxu0 %v309
    %1398 = vmatpush.msra.mxu0 %v305
    %1399 = vmatpush.msra.mxu0 %v301
    %1400 = vmatpush.msra.mxu0 %v297
    %1401 = vmatpush.msra.mxu0 %v293
    %1402 = vmatpush.msra.mxu0 %v289
    %1403 = vmatpush.msra.mxu0 %v285
    %1404 = vmatpush.msra.mxu0 %v281
    %1405 = vmatpush.msra.mxu0 %v277
    %1406 = vmatpush.msra.mxu0 %v273
    %1407 = vmatmul.f32.gmra.mxu0 %v1367
    %v1408 = vpop.f32.mrf.mxu0
    %v1409 = vadd.f32 0.0, %v1408
    %1410 = vdwg.mxu0
    %1411 = vmatpush.msra.mxu0 %v334
    %1412 = vmatpush.msra.mxu0 %v330
    %1413 = vmatpush.msra.mxu0 %v326
    %1414 = vmatpush.msra.mxu0 %v322
    %1415 = vmatpush.msra.mxu0 %v318
    %1416 = vmatpush.msra.mxu0 %v314
    %1417 = vmatpush.msra.mxu0 %v310
    %1418 = vmatpush.msra.mxu0 %v306
    %1419 = vmatpush.msra.mxu0 %v302
    %1420 = vmatpush.msra.mxu0 %v298
    %1421 = vmatpush.msra.mxu0 %v294
    %1422 = vmatpush.msra.mxu0 %v290
    %1423 = vmatpush.msra.mxu0 %v286
    %1424 = vmatpush.msra.mxu0 %v282
    %1425 = vmatpush.msra.mxu0 %v278
    %1426 = vmatpush.msra.mxu0 %v274
    %1427 = vmatmul.f32.gmra.mxu0 %v1367
    %v1428 = vpop.f32.mrf.mxu0
    %v1429 = vadd.f32 0.0, %v1428
    %1430 = vdwg.mxu0
    %1431 = vmatpush.msra.mxu0 %v335
    %1432 = vmatpush.msra.mxu0 %v331
    %1433 = vmatpush.msra.mxu0 %v327
    %1434 = vmatpush.msra.mxu0 %v323
    %1435 = vmatpush.msra.mxu0 %v319
    %1436 = vmatpush.msra.mxu0 %v315
    %1437 = vmatpush.msra.mxu0 %v311
    %1438 = vmatpush.msra.mxu0 %v307
    %1439 = vmatpush.msra.mxu0 %v303
    %1440 = vmatpush.msra.mxu0 %v299
    %1441 = vmatpush.msra.mxu0 %v295
    %1442 = vmatpush.msra.mxu0 %v291
    %1443 = vmatpush.msra.mxu0 %v287
    %1444 = vmatpush.msra.mxu0 %v283
    %1445 = vmatpush.msra.mxu0 %v279
    %1446 = vmatpush.msra.mxu0 %v275
    %1447 = vmatmul.f32.gmra.mxu0 %v1367
    %v1448 = vpop.f32.mrf.mxu0
    %v1449 = vadd.f32 0.0, %v1448
    %1450 = vdwg.mxu0
    %v1455 = vrot.slane %v1409, 7
    %v1456 = vrot.slane %v1429, 6
    %v1457 = vrot.slane %v1449, 5
    %v1458 = vsel %vm426, %v1389, %v1455
    %v1459 = vsel %vm428, %v1456, %v1457
    %v1460 = vsel %vm430, %v1458, %v1459
    %v1462 = vadd.f32 %v1370, %v1460
    %v1463 = vxor.u32 %v1462, 2147483648
    %v1464 = vmul.f32 %v1463, 1.442695
    %v1465 = vpow.pop %v1464
    %v1466 = vadd.f32 %v1465, 1.0
    %v1467 = vrcp.pop %v1466
    %v1468 = vmul.f32 %v1466, %v1467
    %v1469 = vsub.f32 1.0, %v1468
    %v1470 = vmul.f32 %v1467, %v1469
    %v1471 = vadd.f32 %v1467, %v1470
    %vm1472 = vweird.f32 %v1466
    %vm1473 = vweird.f32 %v1467
    %vm1474 = vmor %vm1472, %vm1473
    %v1475 = vsel %vm1474, %v1467, %v1471
    %v1476 = vand.u32 2147483647, %v1466
    %vm1477 = vcmp.eq.f32.partialorder %v1476, 8.507059e+37
    %v1478 = vand.u32 %v1466, 2147483648
    %v1479 = vor.u32 1.1754944e-38, %v1478
    %v1480 = vsel %vm1477, %v1479, %v1475
    %v1481 = vmul.f32 1.0, %v1480
    %v1483 = vrot.slane %v1462, 2
    %v1485 = vtanh.pop %v1483
    %v1486 = vrot.slane %v1462, 3
    %v1488 = vxor.u32 %v1486, 2147483648
    %v1489 = vmul.f32 %v1488, 1.442695
    %v1490 = vpow.pop %v1489
    %v1491 = vadd.f32 %v1490, 1.0
    %v1492 = vrcp.pop %v1491
    %v1493 = vmul.f32 %v1491, %v1492
    %v1494 = vsub.f32 1.0, %v1493
    %v1495 = vmul.f32 %v1492, %v1494
    %v1496 = vadd.f32 %v1492, %v1495
    %vm1497 = vweird.f32 %v1491
    %vm1498 = vweird.f32 %v1492
    %vm1499 = vmor %vm1497, %vm1498
    %v1500 = vsel %vm1499, %v1492, %v1496
    %v1501 = vand.u32 2147483647, %v1491
    %vm1502 = vcmp.eq.f32.partialorder %v1501, 8.507059e+37
    %v1503 = vand.u32 %v1491, 2147483648
    %v1504 = vor.u32 1.1754944e-38, %v1503
    %v1505 = vsel %vm1502, %v1504, %v1500
    %v1506 = vmul.f32 1.0, %v1505
    %v1508 = vrot.slane %v1481, 1
    %v1510 = vmul.f32 %v1508, %v1365
    %v1511 = vmul.f32 %v1481, %v1485
    %v1512 = vadd.f32 %v1510, %v1511
    %v1513 = vtanh.pop %v1512
    %v1514 = vmul.f32 %v1506, %v1513
    %1515 = vst [vmem:[#allocation2 + $0x7] sm:$0x1] %v1514
    %1516 = vst [vmem:[#allocation10] sm:$0x1] %v1514
    %1517 = vst [vmem:[#allocation12] sm:$0x1] %v1512
    %v1518 = vld [vmem:[#allocation2] sm:$0xff]
    %s1519 = scalar_lea.vmem [#allocation4], 512
    %v1520 = vld [vmem:[%s1519] sm:$0xff]
    %v1521 = vld [vmem:[%s1519 + $0x8] sm:$0xff]
    %v1522 = vld [vmem:[%s1519 + $0x10] sm:$0xff]
    %v1523 = vld [vmem:[%s1519 + $0x18] sm:$0xff]
    %v1524 = vld [vmem:[%s1519 + $0x20] sm:$0xff]
    %v1525 = vld [vmem:[%s1519 + $0x28] sm:$0xff]
    %v1526 = vld [vmem:[%s1519 + $0x30] sm:$0xff]
    %v1527 = vld [vmem:[%s1519 + $0x38] sm:$0xff]
    %v1528 = vld [vmem:[%s1519 + $0x40] sm:$0xff]
    %v1529 = vld [vmem:[%s1519 + $0x48] sm:$0xff]
    %v1530 = vld [vmem:[%s1519 + $0x50] sm:$0xff]
    %v1531 = vld [vmem:[%s1519 + $0x58] sm:$0xff]
    %v1532 = vld [vmem:[%s1519 + $0x60] sm:$0xff]
    %v1533 = vld [vmem:[%s1519 + $0x68] sm:$0xff]
    %v1534 = vld [vmem:[%s1519 + $0x70] sm:$0xff]
    %v1535 = vld [vmem:[%s1519 + $0x78] sm:$0xff]
    %v1536 = vld [vmem:[%s1519 + $0x80] sm:$0xff]
    %v1537 = vld [vmem:[%s1519 + $0x88] sm:$0xff]
    %v1538 = vld [vmem:[%s1519 + $0x90] sm:$0xff]
    %v1539 = vld [vmem:[%s1519 + $0x98] sm:$0xff]
    %v1540 = vld [vmem:[%s1519 + $0xa0] sm:$0xff]
    %v1541 = vld [vmem:[%s1519 + $0xa8] sm:$0xff]
    %v1542 = vld [vmem:[%s1519 + $0xb0] sm:$0xff]
    %v1543 = vld [vmem:[%s1519 + $0xb8] sm:$0xff]
    %v1544 = vld [vmem:[%s1519 + $0xc0] sm:$0xff]
    %v1545 = vld [vmem:[%s1519 + $0xc8] sm:$0xff]
    %v1546 = vld [vmem:[%s1519 + $0xd0] sm:$0xff]
    %v1547 = vld [vmem:[%s1519 + $0xd8] sm:$0xff]
    %v1548 = vld [vmem:[%s1519 + $0xe0] sm:$0xff]
    %v1549 = vld [vmem:[%s1519 + $0xe8] sm:$0xff]
    %v1550 = vld [vmem:[%s1519 + $0xf0] sm:$0xff]
    %v1551 = vld [vmem:[%s1519 + $0xf8] sm:$0xff]
    %v1552 = vld [vmem:[%s1519 + $0x100] sm:$0xff]
    %v1553 = vld [vmem:[%s1519 + $0x108] sm:$0xff]
    %v1554 = vld [vmem:[%s1519 + $0x110] sm:$0xff]
    %v1555 = vld [vmem:[%s1519 + $0x118] sm:$0xff]
    %v1556 = vld [vmem:[%s1519 + $0x120] sm:$0xff]
    %v1557 = vld [vmem:[%s1519 + $0x128] sm:$0xff]
    %v1558 = vld [vmem:[%s1519 + $0x130] sm:$0xff]
    %v1559 = vld [vmem:[%s1519 + $0x138] sm:$0xff]
    %v1560 = vld [vmem:[%s1519 + $0x140] sm:$0xff]
    %v1561 = vld [vmem:[%s1519 + $0x148] sm:$0xff]
    %v1562 = vld [vmem:[%s1519 + $0x150] sm:$0xff]
    %v1563 = vld [vmem:[%s1519 + $0x158] sm:$0xff]
    %v1564 = vld [vmem:[%s1519 + $0x160] sm:$0xff]
    %v1565 = vld [vmem:[%s1519 + $0x168] sm:$0xff]
    %v1566 = vld [vmem:[%s1519 + $0x170] sm:$0xff]
    %v1567 = vld [vmem:[%s1519 + $0x178] sm:$0xff]
    %v1568 = vld [vmem:[%s1519 + $0x180] sm:$0xff]
    %v1569 = vld [vmem:[%s1519 + $0x188] sm:$0xff]
    %v1570 = vld [vmem:[%s1519 + $0x190] sm:$0xff]
    %v1571 = vld [vmem:[%s1519 + $0x198] sm:$0xff]
    %v1572 = vld [vmem:[%s1519 + $0x1a0] sm:$0xff]
    %v1573 = vld [vmem:[%s1519 + $0x1a8] sm:$0xff]
    %v1574 = vld [vmem:[%s1519 + $0x1b0] sm:$0xff]
    %v1575 = vld [vmem:[%s1519 + $0x1b8] sm:$0xff]
    %v1576 = vld [vmem:[%s1519 + $0x1c0] sm:$0xff]
    %v1577 = vld [vmem:[%s1519 + $0x1c8] sm:$0xff]
    %v1578 = vld [vmem:[%s1519 + $0x1d0] sm:$0xff]
    %v1579 = vld [vmem:[%s1519 + $0x1d8] sm:$0xff]
    %v1580 = vld [vmem:[%s1519 + $0x1e0] sm:$0xff]
    %v1581 = vld [vmem:[%s1519 + $0x1e8] sm:$0xff]
    %v1582 = vld [vmem:[%s1519 + $0x1f0] sm:$0xff]
    %v1583 = vld [vmem:[%s1519 + $0x1f8] sm:$0xff]
    %s1584 = scalar_lea.vmem %s5, 4
    %v1585 = vld [vmem:[%s1584] sm:$0xf]
    %v1587 = vperm.slane %v1585, 0
    %v1588 = vperm.slane %v1585, 1
    %v1589 = vperm.slane %v1585, 2
    %v1590 = vperm.slane %v1585, 3
    %1595 = vmatpush.msra.mxu0 %v1580
    %1596 = vmatpush.msra.mxu0 %v1576
    %1597 = vmatpush.msra.mxu0 %v1572
    %1598 = vmatpush.msra.mxu0 %v1568
    %1599 = vmatpush.msra.mxu0 %v1564
    %1600 = vmatpush.msra.mxu0 %v1560
    %1601 = vmatpush.msra.mxu0 %v1556
    %1602 = vmatpush.msra.mxu0 %v1552
    %1603 = vmatpush.msra.mxu0 %v1548
    %1604 = vmatpush.msra.mxu0 %v1544
    %1605 = vmatpush.msra.mxu0 %v1540
    %1606 = vmatpush.msra.mxu0 %v1536
    %1607 = vmatpush.msra.mxu0 %v1532
    %1608 = vmatpush.msra.mxu0 %v1528
    %1609 = vmatpush.msra.mxu0 %v1524
    %1610 = vmatpush.msra.mxu0 %v1520
    %1611 = vmatmul.f32.gmra.mxu0 %v1518
    %v1612 = vpop.f32.mrf.mxu0
    %v1613 = vadd.f32 %v1587, %v1612
    %1614 = vdwg.mxu0
    %1615 = vmatpush.msra.mxu0 %v1581
    %1616 = vmatpush.msra.mxu0 %v1577
    %1617 = vmatpush.msra.mxu0 %v1573
    %1618 = vmatpush.msra.mxu0 %v1569
    %1619 = vmatpush.msra.mxu0 %v1565
    %1620 = vmatpush.msra.mxu0 %v1561
    %1621 = vmatpush.msra.mxu0 %v1557
    %1622 = vmatpush.msra.mxu0 %v1553
    %1623 = vmatpush.msra.mxu0 %v1549
    %1624 = vmatpush.msra.mxu0 %v1545
    %1625 = vmatpush.msra.mxu0 %v1541
    %1626 = vmatpush.msra.mxu0 %v1537
    %1627 = vmatpush.msra.mxu0 %v1533
    %1628 = vmatpush.msra.mxu0 %v1529
    %1629 = vmatpush.msra.mxu0 %v1525
    %1630 = vmatpush.msra.mxu0 %v1521
    %1631 = vmatmul.f32.gmra.mxu0 %v1518
    %v1632 = vpop.f32.mrf.mxu0
    %v1633 = vadd.f32 %v1588, %v1632
    %1634 = vdwg.mxu0
    %1635 = vmatpush.msra.mxu0 %v1582
    %1636 = vmatpush.msra.mxu0 %v1578
    %1637 = vmatpush.msra.mxu0 %v1574
    %1638 = vmatpush.msra.mxu0 %v1570
    %1639 = vmatpush.msra.mxu0 %v1566
    %1640 = vmatpush.msra.mxu0 %v1562
    %1641 = vmatpush.msra.mxu0 %v1558
    %1642 = vmatpush.msra.mxu0 %v1554
    %1643 = vmatpush.msra.mxu0 %v1550
    %1644 = vmatpush.msra.mxu0 %v1546
    %1645 = vmatpush.msra.mxu0 %v1542
    %1646 = vmatpush.msra.mxu0 %v1538
    %1647 = vmatpush.msra.mxu0 %v1534
    %1648 = vmatpush.msra.mxu0 %v1530
    %1649 = vmatpush.msra.mxu0 %v1526
    %1650 = vmatpush.msra.mxu0 %v1522
    %1651 = vmatmul.f32.gmra.mxu0 %v1518
    %v1652 = vpop.f32.mrf.mxu0
    %v1653 = vadd.f32 %v1589, %v1652
    %1654 = vdwg.mxu0
    %1655 = vmatpush.msra.mxu0 %v1583
    %1656 = vmatpush.msra.mxu0 %v1579
    %1657 = vmatpush.msra.mxu0 %v1575
    %1658 = vmatpush.msra.mxu0 %v1571
    %1659 = vmatpush.msra.mxu0 %v1567
    %1660 = vmatpush.msra.mxu0 %v1563
    %1661 = vmatpush.msra.mxu0 %v1559
    %1662 = vmatpush.msra.mxu0 %v1555
    %1663 = vmatpush.msra.mxu0 %v1551
    %1664 = vmatpush.msra.mxu0 %v1547
    %1665 = vmatpush.msra.mxu0 %v1543
    %1666 = vmatpush.msra.mxu0 %v1539
    %1667 = vmatpush.msra.mxu0 %v1535
    %1668 = vmatpush.msra.mxu0 %v1531
    %1669 = vmatpush.msra.mxu0 %v1527
    %1670 = vmatpush.msra.mxu0 %v1523
    %1671 = vmatmul.f32.gmra.mxu0 %v1518
    %v1672 = vpop.f32.mrf.mxu0
    %v1673 = vadd.f32 %v1590, %v1672
    %1674 = vdwg.mxu0
    %1675 = vst [vmem:[#allocation3] sm:$0xff] %v1613
    %1676 = vst [vmem:[#allocation3 + $0x8] sm:$0xff] %v1633
    %1677 = vst [vmem:[#allocation3 + $0x10] sm:$0xff] %v1653
    %1678 = vst [vmem:[#allocation3 + $0x18] sm:$0xff] %v1673
    %s1679 = scalar_lea.vmem [#allocation7], 512
    %v1680 = vld [vmem:[%s1679] sm:$0xff]
    %v1681 = vld [vmem:[%s1679 + $0x8] sm:$0xff]
    %v1682 = vld [vmem:[%s1679 + $0x10] sm:$0xff]
    %v1683 = vld [vmem:[%s1679 + $0x18] sm:$0xff]
    %v1684 = vld [vmem:[%s1679 + $0x20] sm:$0xff]
    %v1685 = vld [vmem:[%s1679 + $0x28] sm:$0xff]
    %v1686 = vld [vmem:[%s1679 + $0x30] sm:$0xff]
    %v1687 = vld [vmem:[%s1679 + $0x38] sm:$0xff]
    %v1688 = vld [vmem:[%s1679 + $0x40] sm:$0xff]
    %v1689 = vld [vmem:[%s1679 + $0x48] sm:$0xff]
    %v1690 = vld [vmem:[%s1679 + $0x50] sm:$0xff]
    %v1691 = vld [vmem:[%s1679 + $0x58] sm:$0xff]
    %v1692 = vld [vmem:[%s1679 + $0x60] sm:$0xff]
    %v1693 = vld [vmem:[%s1679 + $0x68] sm:$0xff]
    %v1694 = vld [vmem:[%s1679 + $0x70] sm:$0xff]
    %v1695 = vld [vmem:[%s1679 + $0x78] sm:$0xff]
    %v1696 = vld [vmem:[%s1679 + $0x80] sm:$0xff]
    %v1697 = vld [vmem:[%s1679 + $0x88] sm:$0xff]
    %v1698 = vld [vmem:[%s1679 + $0x90] sm:$0xff]
    %v1699 = vld [vmem:[%s1679 + $0x98] sm:$0xff]
    %v1700 = vld [vmem:[%s1679 + $0xa0] sm:$0xff]
    %v1701 = vld [vmem:[%s1679 + $0xa8] sm:$0xff]
    %v1702 = vld [vmem:[%s1679 + $0xb0] sm:$0xff]
    %v1703 = vld [vmem:[%s1679 + $0xb8] sm:$0xff]
    %v1704 = vld [vmem:[%s1679 + $0xc0] sm:$0xff]
    %v1705 = vld [vmem:[%s1679 + $0xc8] sm:$0xff]
    %v1706 = vld [vmem:[%s1679 + $0xd0] sm:$0xff]
    %v1707 = vld [vmem:[%s1679 + $0xd8] sm:$0xff]
    %v1708 = vld [vmem:[%s1679 + $0xe0] sm:$0xff]
    %v1709 = vld [vmem:[%s1679 + $0xe8] sm:$0xff]
    %v1710 = vld [vmem:[%s1679 + $0xf0] sm:$0xff]
    %v1711 = vld [vmem:[%s1679 + $0xf8] sm:$0xff]
    %v1712 = vld [vmem:[%s1679 + $0x100] sm:$0xff]
    %v1713 = vld [vmem:[%s1679 + $0x108] sm:$0xff]
    %v1714 = vld [vmem:[%s1679 + $0x110] sm:$0xff]
    %v1715 = vld [vmem:[%s1679 + $0x118] sm:$0xff]
    %v1716 = vld [vmem:[%s1679 + $0x120] sm:$0xff]
    %v1717 = vld [vmem:[%s1679 + $0x128] sm:$0xff]
    %v1718 = vld [vmem:[%s1679 + $0x130] sm:$0xff]
    %v1719 = vld [vmem:[%s1679 + $0x138] sm:$0xff]
    %v1720 = vld [vmem:[%s1679 + $0x140] sm:$0xff]
    %v1721 = vld [vmem:[%s1679 + $0x148] sm:$0xff]
    %v1722 = vld [vmem:[%s1679 + $0x150] sm:$0xff]
    %v1723 = vld [vmem:[%s1679 + $0x158] sm:$0xff]
    %v1724 = vld [vmem:[%s1679 + $0x160] sm:$0xff]
    %v1725 = vld [vmem:[%s1679 + $0x168] sm:$0xff]
    %v1726 = vld [vmem:[%s1679 + $0x170] sm:$0xff]
    %v1727 = vld [vmem:[%s1679 + $0x178] sm:$0xff]
    %v1728 = vld [vmem:[%s1679 + $0x180] sm:$0xff]
    %v1729 = vld [vmem:[%s1679 + $0x188] sm:$0xff]
    %v1730 = vld [vmem:[%s1679 + $0x190] sm:$0xff]
    %v1731 = vld [vmem:[%s1679 + $0x198] sm:$0xff]
    %v1732 = vld [vmem:[%s1679 + $0x1a0] sm:$0xff]
    %v1733 = vld [vmem:[%s1679 + $0x1a8] sm:$0xff]
    %v1734 = vld [vmem:[%s1679 + $0x1b0] sm:$0xff]
    %v1735 = vld [vmem:[%s1679 + $0x1b8] sm:$0xff]
    %v1736 = vld [vmem:[%s1679 + $0x1c0] sm:$0xff]
    %v1737 = vld [vmem:[%s1679 + $0x1c8] sm:$0xff]
    %v1738 = vld [vmem:[%s1679 + $0x1d0] sm:$0xff]
    %v1739 = vld [vmem:[%s1679 + $0x1d8] sm:$0xff]
    %v1740 = vld [vmem:[%s1679 + $0x1e0] sm:$0xff]
    %v1741 = vld [vmem:[%s1679 + $0x1e8] sm:$0xff]
    %v1742 = vld [vmem:[%s1679 + $0x1f0] sm:$0xff]
    %v1743 = vld [vmem:[%s1679 + $0x1f8] sm:$0xff]
    %s1744 = scalar_lea.vmem %s8, 1
    %v1745 = vld [vmem:[%s1744] sm:$0x1]
    %s1746 = scalar_lea.vmem %s9, 1
    %v1747 = vld [vmem:[%s1746] sm:$0x1]
    %v1748 = vld [vmem:[#allocation3] ss:$8 sm:$0xf]
    %1749 = vmatpush.msra.mxu0 %v1740
    %1750 = vmatpush.msra.mxu0 %v1736
    %1751 = vmatpush.msra.mxu0 %v1732
    %1752 = vmatpush.msra.mxu0 %v1728
    %1753 = vmatpush.msra.mxu0 %v1724
    %1754 = vmatpush.msra.mxu0 %v1720
    %1755 = vmatpush.msra.mxu0 %v1716
    %1756 = vmatpush.msra.mxu0 %v1712
    %1757 = vmatpush.msra.mxu0 %v1708
    %1758 = vmatpush.msra.mxu0 %v1704
    %1759 = vmatpush.msra.mxu0 %v1700
    %1760 = vmatpush.msra.mxu0 %v1696
    %1761 = vmatpush.msra.mxu0 %v1692
    %1762 = vmatpush.msra.mxu0 %v1688
    %1763 = vmatpush.msra.mxu0 %v1684
    %1764 = vmatpush.msra.mxu0 %v1680
    %1765 = vmatmul.f32.gmra.mxu0 %v1745
    %v1766 = vpop.f32.mrf.mxu0
    %v1767 = vadd.f32 0.0, %v1766
    %1768 = vdwg.mxu0
    %1769 = vmatpush.msra.mxu0 %v1741
    %1770 = vmatpush.msra.mxu0 %v1737
    %1771 = vmatpush.msra.mxu0 %v1733
    %1772 = vmatpush.msra.mxu0 %v1729
    %1773 = vmatpush.msra.mxu0 %v1725
    %1774 = vmatpush.msra.mxu0 %v1721
    %1775 = vmatpush.msra.mxu0 %v1717
    %1776 = vmatpush.msra.mxu0 %v1713
    %1777 = vmatpush.msra.mxu0 %v1709
    %1778 = vmatpush.msra.mxu0 %v1705
    %1779 = vmatpush.msra.mxu0 %v1701
    %1780 = vmatpush.msra.mxu0 %v1697
    %1781 = vmatpush.msra.mxu0 %v1693
    %1782 = vmatpush.msra.mxu0 %v1689
    %1783 = vmatpush.msra.mxu0 %v1685
    %1784 = vmatpush.msra.mxu0 %v1681
    %1785 = vmatmul.f32.gmra.mxu0 %v1745
    %v1786 = vpop.f32.mrf.mxu0
    %v1787 = vadd.f32 0.0, %v1786
    %1788 = vdwg.mxu0
    %1789 = vmatpush.msra.mxu0 %v1742
    %1790 = vmatpush.msra.mxu0 %v1738
    %1791 = vmatpush.msra.mxu0 %v1734
    %1792 = vmatpush.msra.mxu0 %v1730
    %1793 = vmatpush.msra.mxu0 %v1726
    %1794 = vmatpush.msra.mxu0 %v1722
    %1795 = vmatpush.msra.mxu0 %v1718
    %1796 = vmatpush.msra.mxu0 %v1714
    %1797 = vmatpush.msra.mxu0 %v1710
    %1798 = vmatpush.msra.mxu0 %v1706
    %1799 = vmatpush.msra.mxu0 %v1702
    %1800 = vmatpush.msra.mxu0 %v1698
    %1801 = vmatpush.msra.mxu0 %v1694
    %1802 = vmatpush.msra.mxu0 %v1690
    %1803 = vmatpush.msra.mxu0 %v1686
    %1804 = vmatpush.msra.mxu0 %v1682
    %1805 = vmatmul.f32.gmra.mxu0 %v1745
    %v1806 = vpop.f32.mrf.mxu0
    %v1807 = vadd.f32 0.0, %v1806
    %1808 = vdwg.mxu0
    %1809 = vmatpush.msra.mxu0 %v1743
    %1810 = vmatpush.msra.mxu0 %v1739
    %1811 = vmatpush.msra.mxu0 %v1735
    %1812 = vmatpush.msra.mxu0 %v1731
    %1813 = vmatpush.msra.mxu0 %v1727
    %1814 = vmatpush.msra.mxu0 %v1723
    %1815 = vmatpush.msra.mxu0 %v1719
    %1816 = vmatpush.msra.mxu0 %v1715
    %1817 = vmatpush.msra.mxu0 %v1711
    %1818 = vmatpush.msra.mxu0 %v1707
    %1819 = vmatpush.msra.mxu0 %v1703
    %1820 = vmatpush.msra.mxu0 %v1699
    %1821 = vmatpush.msra.mxu0 %v1695
    %1822 = vmatpush.msra.mxu0 %v1691
    %1823 = vmatpush.msra.mxu0 %v1687
    %1824 = vmatpush.msra.mxu0 %v1683
    %1825 = vmatmul.f32.gmra.mxu0 %v1745
    %v1826 = vpop.f32.mrf.mxu0
    %v1827 = vadd.f32 0.0, %v1826
    %1828 = vdwg.mxu0
    %v1833 = vrot.slane %v1787, 7
    %v1834 = vrot.slane %v1807, 6
    %v1835 = vrot.slane %v1827, 5
    %v1836 = vsel %vm426, %v1767, %v1833
    %v1837 = vsel %vm428, %v1834, %v1835
    %v1838 = vsel %vm430, %v1836, %v1837
    %v1840 = vadd.f32 %v1748, %v1838
    %v1841 = vxor.u32 %v1840, 2147483648
    %v1842 = vmul.f32 %v1841, 1.442695
    %v1843 = vpow.pop %v1842
    %v1844 = vadd.f32 %v1843, 1.0
    %v1845 = vrcp.pop %v1844
    %v1846 = vmul.f32 %v1844, %v1845
    %v1847 = vsub.f32 1.0, %v1846
    %v1848 = vmul.f32 %v1845, %v1847
    %v1849 = vadd.f32 %v1845, %v1848
    %vm1850 = vweird.f32 %v1844
    %vm1851 = vweird.f32 %v1845
    %vm1852 = vmor %vm1850, %vm1851
    %v1853 = vsel %vm1852, %v1845, %v1849
    %v1854 = vand.u32 2147483647, %v1844
    %vm1855 = vcmp.eq.f32.partialorder %v1854, 8.507059e+37
    %v1856 = vand.u32 %v1844, 2147483648
    %v1857 = vor.u32 1.1754944e-38, %v1856
    %v1858 = vsel %vm1855, %v1857, %v1853
    %v1859 = vmul.f32 1.0, %v1858
    %v1861 = vrot.slane %v1840, 2
    %v1863 = vtanh.pop %v1861
    %v1864 = vrot.slane %v1840, 3
    %v1866 = vxor.u32 %v1864, 2147483648
    %v1867 = vmul.f32 %v1866, 1.442695
    %v1868 = vpow.pop %v1867
    %v1869 = vadd.f32 %v1868, 1.0
    %v1870 = vrcp.pop %v1869
    %v1871 = vmul.f32 %v1869, %v1870
    %v1872 = vsub.f32 1.0, %v1871
    %v1873 = vmul.f32 %v1870, %v1872
    %v1874 = vadd.f32 %v1870, %v1873
    %vm1875 = vweird.f32 %v1869
    %vm1876 = vweird.f32 %v1870
    %vm1877 = vmor %vm1875, %vm1876
    %v1878 = vsel %vm1877, %v1870, %v1874
    %v1879 = vand.u32 2147483647, %v1869
    %vm1880 = vcmp.eq.f32.partialorder %v1879, 8.507059e+37
    %v1881 = vand.u32 %v1869, 2147483648
    %v1882 = vor.u32 1.1754944e-38, %v1881
    %v1883 = vsel %vm1880, %v1882, %v1878
    %v1884 = vmul.f32 1.0, %v1883
    %v1886 = vrot.slane %v1859, 1
    %v1888 = vmul.f32 %v1886, %v1747
    %v1889 = vmul.f32 %v1859, %v1863
    %v1890 = vadd.f32 %v1888, %v1889
    %v1891 = vtanh.pop %v1890
    %v1892 = vmul.f32 %v1884, %v1891
    %1893 = vst [vmem:[#allocation2] sm:$0x1] %v1892
    %v1894 = vld [vmem:[%s487] ss:$8 sm:$0xf]
    %1895 = vmatpush.msra.mxu0 %v1740
    %1896 = vmatpush.msra.mxu0 %v1736
    %1897 = vmatpush.msra.mxu0 %v1732
    %1898 = vmatpush.msra.mxu0 %v1728
    %1899 = vmatpush.msra.mxu0 %v1724
    %1900 = vmatpush.msra.mxu0 %v1720
    %1901 = vmatpush.msra.mxu0 %v1716
    %1902 = vmatpush.msra.mxu0 %v1712
    %1903 = vmatpush.msra.mxu0 %v1708
    %1904 = vmatpush.msra.mxu0 %v1704
    %1905 = vmatpush.msra.mxu0 %v1700
    %1906 = vmatpush.msra.mxu0 %v1696
    %1907 = vmatpush.msra.mxu0 %v1692
    %1908 = vmatpush.msra.mxu0 %v1688
    %1909 = vmatpush.msra.mxu0 %v1684
    %1910 = vmatpush.msra.mxu0 %v1680
    %1911 = vmatmul.f32.gmra.mxu0 %v1892
    %v1912 = vpop.f32.mrf.mxu0
    %v1913 = vadd.f32 0.0, %v1912
    %1914 = vdwg.mxu0
    %1915 = vmatpush.msra.mxu0 %v1741
    %1916 = vmatpush.msra.mxu0 %v1737
    %1917 = vmatpush.msra.mxu0 %v1733
    %1918 = vmatpush.msra.mxu0 %v1729
    %1919 = vmatpush.msra.mxu0 %v1725
    %1920 = vmatpush.msra.mxu0 %v1721
    %1921 = vmatpush.msra.mxu0 %v1717
    %1922 = vmatpush.msra.mxu0 %v1713
    %1923 = vmatpush.msra.mxu0 %v1709
    %1924 = vmatpush.msra.mxu0 %v1705
    %1925 = vmatpush.msra.mxu0 %v1701
    %1926 = vmatpush.msra.mxu0 %v1697
    %1927 = vmatpush.msra.mxu0 %v1693
    %1928 = vmatpush.msra.mxu0 %v1689
    %1929 = vmatpush.msra.mxu0 %v1685
    %1930 = vmatpush.msra.mxu0 %v1681
    %1931 = vmatmul.f32.gmra.mxu0 %v1892
    %v1932 = vpop.f32.mrf.mxu0
    %v1933 = vadd.f32 0.0, %v1932
    %1934 = vdwg.mxu0
    %1935 = vmatpush.msra.mxu0 %v1742
    %1936 = vmatpush.msra.mxu0 %v1738
    %1937 = vmatpush.msra.mxu0 %v1734
    %1938 = vmatpush.msra.mxu0 %v1730
    %1939 = vmatpush.msra.mxu0 %v1726
    %1940 = vmatpush.msra.mxu0 %v1722
    %1941 = vmatpush.msra.mxu0 %v1718
    %1942 = vmatpush.msra.mxu0 %v1714
    %1943 = vmatpush.msra.mxu0 %v1710
    %1944 = vmatpush.msra.mxu0 %v1706
    %1945 = vmatpush.msra.mxu0 %v1702
    %1946 = vmatpush.msra.mxu0 %v1698
    %1947 = vmatpush.msra.mxu0 %v1694
    %1948 = vmatpush.msra.mxu0 %v1690
    %1949 = vmatpush.msra.mxu0 %v1686
    %1950 = vmatpush.msra.mxu0 %v1682
    %1951 = vmatmul.f32.gmra.mxu0 %v1892
    %v1952 = vpop.f32.mrf.mxu0
    %v1953 = vadd.f32 0.0, %v1952
    %1954 = vdwg.mxu0
    %1955 = vmatpush.msra.mxu0 %v1743
    %1956 = vmatpush.msra.mxu0 %v1739
    %1957 = vmatpush.msra.mxu0 %v1735
    %1958 = vmatpush.msra.mxu0 %v1731
    %1959 = vmatpush.msra.mxu0 %v1727
    %1960 = vmatpush.msra.mxu0 %v1723
    %1961 = vmatpush.msra.mxu0 %v1719
    %1962 = vmatpush.msra.mxu0 %v1715
    %1963 = vmatpush.msra.mxu0 %v1711
    %1964 = vmatpush.msra.mxu0 %v1707
    %1965 = vmatpush.msra.mxu0 %v1703
    %1966 = vmatpush.msra.mxu0 %v1699
    %1967 = vmatpush.msra.mxu0 %v1695
    %1968 = vmatpush.msra.mxu0 %v1691
    %1969 = vmatpush.msra.mxu0 %v1687
    %1970 = vmatpush.msra.mxu0 %v1683
    %1971 = vmatmul.f32.gmra.mxu0 %v1892
    %v1972 = vpop.f32.mrf.mxu0
    %v1973 = vadd.f32 0.0, %v1972
    %1974 = vdwg.mxu0
    %v1979 = vrot.slane %v1933, 7
    %v1980 = vrot.slane %v1953, 6
    %v1981 = vrot.slane %v1973, 5
    %v1982 = vsel %vm426, %v1913, %v1979
    %v1983 = vsel %vm428, %v1980, %v1981
    %v1984 = vsel %vm430, %v1982, %v1983
    %v1986 = vadd.f32 %v1894, %v1984
    %v1987 = vxor.u32 %v1986, 2147483648
    %v1988 = vmul.f32 %v1987, 1.442695
    %v1989 = vpow.pop %v1988
    %v1990 = vadd.f32 %v1989, 1.0
    %v1991 = vrcp.pop %v1990
    %v1992 = vmul.f32 %v1990, %v1991
    %v1993 = vsub.f32 1.0, %v1992
    %v1994 = vmul.f32 %v1991, %v1993
    %v1995 = vadd.f32 %v1991, %v1994
    %vm1996 = vweird.f32 %v1990
    %vm1997 = vweird.f32 %v1991
    %vm1998 = vmor %vm1996, %vm1997
    %v1999 = vsel %vm1998, %v1991, %v1995
    %v2000 = vand.u32 2147483647, %v1990
    %vm2001 = vcmp.eq.f32.partialorder %v2000, 8.507059e+37
    %v2002 = vand.u32 %v1990, 2147483648
    %v2003 = vor.u32 1.1754944e-38, %v2002
    %v2004 = vsel %vm2001, %v2003, %v1999
    %v2005 = vmul.f32 1.0, %v2004
    %v2007 = vrot.slane %v1986, 2
    %v2009 = vtanh.pop %v2007
    %v2010 = vrot.slane %v1986, 3
    %v2012 = vxor.u32 %v2010, 2147483648
    %v2013 = vmul.f32 %v2012, 1.442695
    %v2014 = vpow.pop %v2013
    %v2015 = vadd.f32 %v2014, 1.0
    %v2016 = vrcp.pop %v2015
    %v2017 = vmul.f32 %v2015, %v2016
    %v2018 = vsub.f32 1.0, %v2017
    %v2019 = vmul.f32 %v2016, %v2018
    %v2020 = vadd.f32 %v2016, %v2019
    %vm2021 = vweird.f32 %v2015
    %vm2022 = vweird.f32 %v2016
    %vm2023 = vmor %vm2021, %vm2022
    %v2024 = vsel %vm2023, %v2016, %v2020
    %v2025 = vand.u32 2147483647, %v2015
    %vm2026 = vcmp.eq.f32.partialorder %v2025, 8.507059e+37
    %v2027 = vand.u32 %v2015, 2147483648
    %v2028 = vor.u32 1.1754944e-38, %v2027
    %v2029 = vsel %vm2026, %v2028, %v2024
    %v2030 = vmul.f32 1.0, %v2029
    %v2032 = vrot.slane %v2005, 1
    %v2034 = vmul.f32 %v2032, %v1890
    %v2035 = vmul.f32 %v2005, %v2009
    %v2036 = vadd.f32 %v2034, %v2035
    %v2037 = vtanh.pop %v2036
    %v2038 = vmul.f32 %v2030, %v2037
    %2039 = vst [vmem:[#allocation2 + $0x1] sm:$0x1] %v2038
    %v2040 = vld [vmem:[%s634] ss:$8 sm:$0xf]
    %2041 = vmatpush.msra.mxu0 %v1740
    %2042 = vmatpush.msra.mxu0 %v1736
    %2043 = vmatpush.msra.mxu0 %v1732
    %2044 = vmatpush.msra.mxu0 %v1728
    %2045 = vmatpush.msra.mxu0 %v1724
    %2046 = vmatpush.msra.mxu0 %v1720
    %2047 = vmatpush.msra.mxu0 %v1716
    %2048 = vmatpush.msra.mxu0 %v1712
    %2049 = vmatpush.msra.mxu0 %v1708
    %2050 = vmatpush.msra.mxu0 %v1704
    %2051 = vmatpush.msra.mxu0 %v1700
    %2052 = vmatpush.msra.mxu0 %v1696
    %2053 = vmatpush.msra.mxu0 %v1692
    %2054 = vmatpush.msra.mxu0 %v1688
    %2055 = vmatpush.msra.mxu0 %v1684
    %2056 = vmatpush.msra.mxu0 %v1680
    %2057 = vmatmul.f32.gmra.mxu0 %v2038
    %v2058 = vpop.f32.mrf.mxu0
    %v2059 = vadd.f32 0.0, %v2058
    %2060 = vdwg.mxu0
    %2061 = vmatpush.msra.mxu0 %v1741
    %2062 = vmatpush.msra.mxu0 %v1737
    %2063 = vmatpush.msra.mxu0 %v1733
    %2064 = vmatpush.msra.mxu0 %v1729
    %2065 = vmatpush.msra.mxu0 %v1725
    %2066 = vmatpush.msra.mxu0 %v1721
    %2067 = vmatpush.msra.mxu0 %v1717
    %2068 = vmatpush.msra.mxu0 %v1713
    %2069 = vmatpush.msra.mxu0 %v1709
    %2070 = vmatpush.msra.mxu0 %v1705
    %2071 = vmatpush.msra.mxu0 %v1701
    %2072 = vmatpush.msra.mxu0 %v1697
    %2073 = vmatpush.msra.mxu0 %v1693
    %2074 = vmatpush.msra.mxu0 %v1689
    %2075 = vmatpush.msra.mxu0 %v1685
    %2076 = vmatpush.msra.mxu0 %v1681
    %2077 = vmatmul.f32.gmra.mxu0 %v2038
    %v2078 = vpop.f32.mrf.mxu0
    %v2079 = vadd.f32 0.0, %v2078
    %2080 = vdwg.mxu0
    %2081 = vmatpush.msra.mxu0 %v1742
    %2082 = vmatpush.msra.mxu0 %v1738
    %2083 = vmatpush.msra.mxu0 %v1734
    %2084 = vmatpush.msra.mxu0 %v1730
    %2085 = vmatpush.msra.mxu0 %v1726
    %2086 = vmatpush.msra.mxu0 %v1722
    %2087 = vmatpush.msra.mxu0 %v1718
    %2088 = vmatpush.msra.mxu0 %v1714
    %2089 = vmatpush.msra.mxu0 %v1710
    %2090 = vmatpush.msra.mxu0 %v1706
    %2091 = vmatpush.msra.mxu0 %v1702
    %2092 = vmatpush.msra.mxu0 %v1698
    %2093 = vmatpush.msra.mxu0 %v1694
    %2094 = vmatpush.msra.mxu0 %v1690
    %2095 = vmatpush.msra.mxu0 %v1686
    %2096 = vmatpush.msra.mxu0 %v1682
    %2097 = vmatmul.f32.gmra.mxu0 %v2038
    %v2098 = vpop.f32.mrf.mxu0
    %v2099 = vadd.f32 0.0, %v2098
    %2100 = vdwg.mxu0
    %2101 = vmatpush.msra.mxu0 %v1743
    %2102 = vmatpush.msra.mxu0 %v1739
    %2103 = vmatpush.msra.mxu0 %v1735
    %2104 = vmatpush.msra.mxu0 %v1731
    %2105 = vmatpush.msra.mxu0 %v1727
    %2106 = vmatpush.msra.mxu0 %v1723
    %2107 = vmatpush.msra.mxu0 %v1719
    %2108 = vmatpush.msra.mxu0 %v1715
    %2109 = vmatpush.msra.mxu0 %v1711
    %2110 = vmatpush.msra.mxu0 %v1707
    %2111 = vmatpush.msra.mxu0 %v1703
    %2112 = vmatpush.msra.mxu0 %v1699
    %2113 = vmatpush.msra.mxu0 %v1695
    %2114 = vmatpush.msra.mxu0 %v1691
    %2115 = vmatpush.msra.mxu0 %v1687
    %2116 = vmatpush.msra.mxu0 %v1683
    %2117 = vmatmul.f32.gmra.mxu0 %v2038
    %v2118 = vpop.f32.mrf.mxu0
    %v2119 = vadd.f32 0.0, %v2118
    %2120 = vdwg.mxu0
    %v2125 = vrot.slane %v2079, 7
    %v2126 = vrot.slane %v2099, 6
    %v2127 = vrot.slane %v2119, 5
    %v2128 = vsel %vm426, %v2059, %v2125
    %v2129 = vsel %vm428, %v2126, %v2127
    %v2130 = vsel %vm430, %v2128, %v2129
    %v2132 = vadd.f32 %v2040, %v2130
    %v2133 = vxor.u32 %v2132, 2147483648
    %v2134 = vmul.f32 %v2133, 1.442695
    %v2135 = vpow.pop %v2134
    %v2136 = vadd.f32 %v2135, 1.0
    %v2137 = vrcp.pop %v2136
    %v2138 = vmul.f32 %v2136, %v2137
    %v2139 = vsub.f32 1.0, %v2138
    %v2140 = vmul.f32 %v2137, %v2139
    %v2141 = vadd.f32 %v2137, %v2140
    %vm2142 = vweird.f32 %v2136
    %vm2143 = vweird.f32 %v2137
    %vm2144 = vmor %vm2142, %vm2143
    %v2145 = vsel %vm2144, %v2137, %v2141
    %v2146 = vand.u32 2147483647, %v2136
    %vm2147 = vcmp.eq.f32.partialorder %v2146, 8.507059e+37
    %v2148 = vand.u32 %v2136, 2147483648
    %v2149 = vor.u32 1.1754944e-38, %v2148
    %v2150 = vsel %vm2147, %v2149, %v2145
    %v2151 = vmul.f32 1.0, %v2150
    %v2153 = vrot.slane %v2132, 2
    %v2155 = vtanh.pop %v2153
    %v2156 = vrot.slane %v2132, 3
    %v2158 = vxor.u32 %v2156, 2147483648
    %v2159 = vmul.f32 %v2158, 1.442695
    %v2160 = vpow.pop %v2159
    %v2161 = vadd.f32 %v2160, 1.0
    %v2162 = vrcp.pop %v2161
    %v2163 = vmul.f32 %v2161, %v2162
    %v2164 = vsub.f32 1.0, %v2163
    %v2165 = vmul.f32 %v2162, %v2164
    %v2166 = vadd.f32 %v2162, %v2165
    %vm2167 = vweird.f32 %v2161
    %vm2168 = vweird.f32 %v2162
    %vm2169 = vmor %vm2167, %vm2168
    %v2170 = vsel %vm2169, %v2162, %v2166
    %v2171 = vand.u32 2147483647, %v2161
    %vm2172 = vcmp.eq.f32.partialorder %v2171, 8.507059e+37
    %v2173 = vand.u32 %v2161, 2147483648
    %v2174 = vor.u32 1.1754944e-38, %v2173
    %v2175 = vsel %vm2172, %v2174, %v2170
    %v2176 = vmul.f32 1.0, %v2175
    %v2178 = vrot.slane %v2151, 1
    %v2180 = vmul.f32 %v2178, %v2036
    %v2181 = vmul.f32 %v2151, %v2155
    %v2182 = vadd.f32 %v2180, %v2181
    %v2183 = vtanh.pop %v2182
    %v2184 = vmul.f32 %v2176, %v2183
    %2185 = vst [vmem:[#allocation2 + $0x2] sm:$0x1] %v2184
    %v2186 = vld [vmem:[%s781] ss:$8 sm:$0xf]
    %2187 = vmatpush.msra.mxu0 %v1740
    %2188 = vmatpush.msra.mxu0 %v1736
    %2189 = vmatpush.msra.mxu0 %v1732
    %2190 = vmatpush.msra.mxu0 %v1728
    %2191 = vmatpush.msra.mxu0 %v1724
    %2192 = vmatpush.msra.mxu0 %v1720
    %2193 = vmatpush.msra.mxu0 %v1716
    %2194 = vmatpush.msra.mxu0 %v1712
    %2195 = vmatpush.msra.mxu0 %v1708
    %2196 = vmatpush.msra.mxu0 %v1704
    %2197 = vmatpush.msra.mxu0 %v1700
    %2198 = vmatpush.msra.mxu0 %v1696
    %2199 = vmatpush.msra.mxu0 %v1692
    %2200 = vmatpush.msra.mxu0 %v1688
    %2201 = vmatpush.msra.mxu0 %v1684
    %2202 = vmatpush.msra.mxu0 %v1680
    %2203 = vmatmul.f32.gmra.mxu0 %v2184
    %v2204 = vpop.f32.mrf.mxu0
    %v2205 = vadd.f32 0.0, %v2204
    %2206 = vdwg.mxu0
    %2207 = vmatpush.msra.mxu0 %v1741
    %2208 = vmatpush.msra.mxu0 %v1737
    %2209 = vmatpush.msra.mxu0 %v1733
    %2210 = vmatpush.msra.mxu0 %v1729
    %2211 = vmatpush.msra.mxu0 %v1725
    %2212 = vmatpush.msra.mxu0 %v1721
    %2213 = vmatpush.msra.mxu0 %v1717
    %2214 = vmatpush.msra.mxu0 %v1713
    %2215 = vmatpush.msra.mxu0 %v1709
    %2216 = vmatpush.msra.mxu0 %v1705
    %2217 = vmatpush.msra.mxu0 %v1701
    %2218 = vmatpush.msra.mxu0 %v1697
    %2219 = vmatpush.msra.mxu0 %v1693
    %2220 = vmatpush.msra.mxu0 %v1689
    %2221 = vmatpush.msra.mxu0 %v1685
    %2222 = vmatpush.msra.mxu0 %v1681
    %2223 = vmatmul.f32.gmra.mxu0 %v2184
    %v2224 = vpop.f32.mrf.mxu0
    %v2225 = vadd.f32 0.0, %v2224
    %2226 = vdwg.mxu0
    %2227 = vmatpush.msra.mxu0 %v1742
    %2228 = vmatpush.msra.mxu0 %v1738
    %2229 = vmatpush.msra.mxu0 %v1734
    %2230 = vmatpush.msra.mxu0 %v1730
    %2231 = vmatpush.msra.mxu0 %v1726
    %2232 = vmatpush.msra.mxu0 %v1722
    %2233 = vmatpush.msra.mxu0 %v1718
    %2234 = vmatpush.msra.mxu0 %v1714
    %2235 = vmatpush.msra.mxu0 %v1710
    %2236 = vmatpush.msra.mxu0 %v1706
    %2237 = vmatpush.msra.mxu0 %v1702
    %2238 = vmatpush.msra.mxu0 %v1698
    %2239 = vmatpush.msra.mxu0 %v1694
    %2240 = vmatpush.msra.mxu0 %v1690
    %2241 = vmatpush.msra.mxu0 %v1686
    %2242 = vmatpush.msra.mxu0 %v1682
    %2243 = vmatmul.f32.gmra.mxu0 %v2184
    %v2244 = vpop.f32.mrf.mxu0
    %v2245 = vadd.f32 0.0, %v2244
    %2246 = vdwg.mxu0
    %2247 = vmatpush.msra.mxu0 %v1743
    %2248 = vmatpush.msra.mxu0 %v1739
    %2249 = vmatpush.msra.mxu0 %v1735
    %2250 = vmatpush.msra.mxu0 %v1731
    %2251 = vmatpush.msra.mxu0 %v1727
    %2252 = vmatpush.msra.mxu0 %v1723
    %2253 = vmatpush.msra.mxu0 %v1719
    %2254 = vmatpush.msra.mxu0 %v1715
    %2255 = vmatpush.msra.mxu0 %v1711
    %2256 = vmatpush.msra.mxu0 %v1707
    %2257 = vmatpush.msra.mxu0 %v1703
    %2258 = vmatpush.msra.mxu0 %v1699
    %2259 = vmatpush.msra.mxu0 %v1695
    %2260 = vmatpush.msra.mxu0 %v1691
    %2261 = vmatpush.msra.mxu0 %v1687
    %2262 = vmatpush.msra.mxu0 %v1683
    %2263 = vmatmul.f32.gmra.mxu0 %v2184
    %v2264 = vpop.f32.mrf.mxu0
    %v2265 = vadd.f32 0.0, %v2264
    %2266 = vdwg.mxu0
    %v2271 = vrot.slane %v2225, 7
    %v2272 = vrot.slane %v2245, 6
    %v2273 = vrot.slane %v2265, 5
    %v2274 = vsel %vm426, %v2205, %v2271
    %v2275 = vsel %vm428, %v2272, %v2273
    %v2276 = vsel %vm430, %v2274, %v2275
    %v2278 = vadd.f32 %v2186, %v2276
    %v2279 = vxor.u32 %v2278, 2147483648
    %v2280 = vmul.f32 %v2279, 1.442695
    %v2281 = vpow.pop %v2280
    %v2282 = vadd.f32 %v2281, 1.0
    %v2283 = vrcp.pop %v2282
    %v2284 = vmul.f32 %v2282, %v2283
    %v2285 = vsub.f32 1.0, %v2284
    %v2286 = vmul.f32 %v2283, %v2285
    %v2287 = vadd.f32 %v2283, %v2286
    %vm2288 = vweird.f32 %v2282
    %vm2289 = vweird.f32 %v2283
    %vm2290 = vmor %vm2288, %vm2289
    %v2291 = vsel %vm2290, %v2283, %v2287
    %v2292 = vand.u32 2147483647, %v2282
    %vm2293 = vcmp.eq.f32.partialorder %v2292, 8.507059e+37
    %v2294 = vand.u32 %v2282, 2147483648
    %v2295 = vor.u32 1.1754944e-38, %v2294
    %v2296 = vsel %vm2293, %v2295, %v2291
    %v2297 = vmul.f32 1.0, %v2296
    %v2299 = vrot.slane %v2278, 2
    %v2301 = vtanh.pop %v2299
    %v2302 = vrot.slane %v2278, 3
    %v2304 = vxor.u32 %v2302, 2147483648
    %v2305 = vmul.f32 %v2304, 1.442695
    %v2306 = vpow.pop %v2305
    %v2307 = vadd.f32 %v2306, 1.0
    %v2308 = vrcp.pop %v2307
    %v2309 = vmul.f32 %v2307, %v2308
    %v2310 = vsub.f32 1.0, %v2309
    %v2311 = vmul.f32 %v2308, %v2310
    %v2312 = vadd.f32 %v2308, %v2311
    %vm2313 = vweird.f32 %v2307
    %vm2314 = vweird.f32 %v2308
    %vm2315 = vmor %vm2313, %vm2314
    %v2316 = vsel %vm2315, %v2308, %v2312
    %v2317 = vand.u32 2147483647, %v2307
    %vm2318 = vcmp.eq.f32.partialorder %v2317, 8.507059e+37
    %v2319 = vand.u32 %v2307, 2147483648
    %v2320 = vor.u32 1.1754944e-38, %v2319
    %v2321 = vsel %vm2318, %v2320, %v2316
    %v2322 = vmul.f32 1.0, %v2321
    %v2324 = vrot.slane %v2297, 1
    %v2326 = vmul.f32 %v2324, %v2182
    %v2327 = vmul.f32 %v2297, %v2301
    %v2328 = vadd.f32 %v2326, %v2327
    %v2329 = vtanh.pop %v2328
    %v2330 = vmul.f32 %v2322, %v2329
    %2331 = vst [vmem:[#allocation2 + $0x3] sm:$0x1] %v2330
    %v2332 = vld [vmem:[%s928] ss:$8 sm:$0xf]
    %2333 = vmatpush.msra.mxu0 %v1740
    %2334 = vmatpush.msra.mxu0 %v1736
    %2335 = vmatpush.msra.mxu0 %v1732
    %2336 = vmatpush.msra.mxu0 %v1728
    %2337 = vmatpush.msra.mxu0 %v1724
    %2338 = vmatpush.msra.mxu0 %v1720
    %2339 = vmatpush.msra.mxu0 %v1716
    %2340 = vmatpush.msra.mxu0 %v1712
    %2341 = vmatpush.msra.mxu0 %v1708
    %2342 = vmatpush.msra.mxu0 %v1704
    %2343 = vmatpush.msra.mxu0 %v1700
    %2344 = vmatpush.msra.mxu0 %v1696
    %2345 = vmatpush.msra.mxu0 %v1692
    %2346 = vmatpush.msra.mxu0 %v1688
    %2347 = vmatpush.msra.mxu0 %v1684
    %2348 = vmatpush.msra.mxu0 %v1680
    %2349 = vmatmul.f32.gmra.mxu0 %v2330
    %v2350 = vpop.f32.mrf.mxu0
    %v2351 = vadd.f32 0.0, %v2350
    %2352 = vdwg.mxu0
    %2353 = vmatpush.msra.mxu0 %v1741
    %2354 = vmatpush.msra.mxu0 %v1737
    %2355 = vmatpush.msra.mxu0 %v1733
    %2356 = vmatpush.msra.mxu0 %v1729
    %2357 = vmatpush.msra.mxu0 %v1725
    %2358 = vmatpush.msra.mxu0 %v1721
    %2359 = vmatpush.msra.mxu0 %v1717
    %2360 = vmatpush.msra.mxu0 %v1713
    %2361 = vmatpush.msra.mxu0 %v1709
    %2362 = vmatpush.msra.mxu0 %v1705
    %2363 = vmatpush.msra.mxu0 %v1701
    %2364 = vmatpush.msra.mxu0 %v1697
    %2365 = vmatpush.msra.mxu0 %v1693
    %2366 = vmatpush.msra.mxu0 %v1689
    %2367 = vmatpush.msra.mxu0 %v1685
    %2368 = vmatpush.msra.mxu0 %v1681
    %2369 = vmatmul.f32.gmra.mxu0 %v2330
    %v2370 = vpop.f32.mrf.mxu0
    %v2371 = vadd.f32 0.0, %v2370
    %2372 = vdwg.mxu0
    %2373 = vmatpush.msra.mxu0 %v1742
    %2374 = vmatpush.msra.mxu0 %v1738
    %2375 = vmatpush.msra.mxu0 %v1734
    %2376 = vmatpush.msra.mxu0 %v1730
    %2377 = vmatpush.msra.mxu0 %v1726
    %2378 = vmatpush.msra.mxu0 %v1722
    %2379 = vmatpush.msra.mxu0 %v1718
    %2380 = vmatpush.msra.mxu0 %v1714
    %2381 = vmatpush.msra.mxu0 %v1710
    %2382 = vmatpush.msra.mxu0 %v1706
    %2383 = vmatpush.msra.mxu0 %v1702
    %2384 = vmatpush.msra.mxu0 %v1698
    %2385 = vmatpush.msra.mxu0 %v1694
    %2386 = vmatpush.msra.mxu0 %v1690
    %2387 = vmatpush.msra.mxu0 %v1686
    %2388 = vmatpush.msra.mxu0 %v1682
    %2389 = vmatmul.f32.gmra.mxu0 %v2330
    %v2390 = vpop.f32.mrf.mxu0
    %v2391 = vadd.f32 0.0, %v2390
    %2392 = vdwg.mxu0
    %2393 = vmatpush.msra.mxu0 %v1743
    %2394 = vmatpush.msra.mxu0 %v1739
    %2395 = vmatpush.msra.mxu0 %v1735
    %2396 = vmatpush.msra.mxu0 %v1731
    %2397 = vmatpush.msra.mxu0 %v1727
    %2398 = vmatpush.msra.mxu0 %v1723
    %2399 = vmatpush.msra.mxu0 %v1719
    %2400 = vmatpush.msra.mxu0 %v1715
    %2401 = vmatpush.msra.mxu0 %v1711
    %2402 = vmatpush.msra.mxu0 %v1707
    %2403 = vmatpush.msra.mxu0 %v1703
    %2404 = vmatpush.msra.mxu0 %v1699
    %2405 = vmatpush.msra.mxu0 %v1695
    %2406 = vmatpush.msra.mxu0 %v1691
    %2407 = vmatpush.msra.mxu0 %v1687
    %2408 = vmatpush.msra.mxu0 %v1683
    %2409 = vmatmul.f32.gmra.mxu0 %v2330
    %v2410 = vpop.f32.mrf.mxu0
    %v2411 = vadd.f32 0.0, %v2410
    %2412 = vdwg.mxu0
    %v2417 = vrot.slane %v2371, 7
    %v2418 = vrot.slane %v2391, 6
    %v2419 = vrot.slane %v2411, 5
    %v2420 = vsel %vm426, %v2351, %v2417
    %v2421 = vsel %vm428, %v2418, %v2419
    %v2422 = vsel %vm430, %v2420, %v2421
    %v2424 = vadd.f32 %v2332, %v2422
    %v2425 = vxor.u32 %v2424, 2147483648
    %v2426 = vmul.f32 %v2425, 1.442695
    %v2427 = vpow.pop %v2426
    %v2428 = vadd.f32 %v2427, 1.0
    %v2429 = vrcp.pop %v2428
    %v2430 = vmul.f32 %v2428, %v2429
    %v2431 = vsub.f32 1.0, %v2430
    %v2432 = vmul.f32 %v2429, %v2431
    %v2433 = vadd.f32 %v2429, %v2432
    %vm2434 = vweird.f32 %v2428
    %vm2435 = vweird.f32 %v2429
    %vm2436 = vmor %vm2434, %vm2435
    %v2437 = vsel %vm2436, %v2429, %v2433
    %v2438 = vand.u32 2147483647, %v2428
    %vm2439 = vcmp.eq.f32.partialorder %v2438, 8.507059e+37
    %v2440 = vand.u32 %v2428, 2147483648
    %v2441 = vor.u32 1.1754944e-38, %v2440
    %v2442 = vsel %vm2439, %v2441, %v2437
    %v2443 = vmul.f32 1.0, %v2442
    %v2445 = vrot.slane %v2424, 2
    %v2447 = vtanh.pop %v2445
    %v2448 = vrot.slane %v2424, 3
    %v2450 = vxor.u32 %v2448, 2147483648
    %v2451 = vmul.f32 %v2450, 1.442695
    %v2452 = vpow.pop %v2451
    %v2453 = vadd.f32 %v2452, 1.0
    %v2454 = vrcp.pop %v2453
    %v2455 = vmul.f32 %v2453, %v2454
    %v2456 = vsub.f32 1.0, %v2455
    %v2457 = vmul.f32 %v2454, %v2456
    %v2458 = vadd.f32 %v2454, %v2457
    %vm2459 = vweird.f32 %v2453
    %vm2460 = vweird.f32 %v2454
    %vm2461 = vmor %vm2459, %vm2460
    %v2462 = vsel %vm2461, %v2454, %v2458
    %v2463 = vand.u32 2147483647, %v2453
    %vm2464 = vcmp.eq.f32.partialorder %v2463, 8.507059e+37
    %v2465 = vand.u32 %v2453, 2147483648
    %v2466 = vor.u32 1.1754944e-38, %v2465
    %v2467 = vsel %vm2464, %v2466, %v2462
    %v2468 = vmul.f32 1.0, %v2467
    %v2470 = vrot.slane %v2443, 1
    %v2472 = vmul.f32 %v2470, %v2328
    %v2473 = vmul.f32 %v2443, %v2447
    %v2474 = vadd.f32 %v2472, %v2473
    %v2475 = vtanh.pop %v2474
    %v2476 = vmul.f32 %v2468, %v2475
    %2477 = vst [vmem:[#allocation2 + $0x4] sm:$0x1] %v2476
    %v2478 = vld [vmem:[%s1075] ss:$8 sm:$0xf]
    %2479 = vmatpush.msra.mxu0 %v1740
    %2480 = vmatpush.msra.mxu0 %v1736
    %2481 = vmatpush.msra.mxu0 %v1732
    %2482 = vmatpush.msra.mxu0 %v1728
    %2483 = vmatpush.msra.mxu0 %v1724
    %2484 = vmatpush.msra.mxu0 %v1720
    %2485 = vmatpush.msra.mxu0 %v1716
    %2486 = vmatpush.msra.mxu0 %v1712
    %2487 = vmatpush.msra.mxu0 %v1708
    %2488 = vmatpush.msra.mxu0 %v1704
    %2489 = vmatpush.msra.mxu0 %v1700
    %2490 = vmatpush.msra.mxu0 %v1696
    %2491 = vmatpush.msra.mxu0 %v1692
    %2492 = vmatpush.msra.mxu0 %v1688
    %2493 = vmatpush.msra.mxu0 %v1684
    %2494 = vmatpush.msra.mxu0 %v1680
    %2495 = vmatmul.f32.gmra.mxu0 %v2476
    %v2496 = vpop.f32.mrf.mxu0
    %v2497 = vadd.f32 0.0, %v2496
    %2498 = vdwg.mxu0
    %2499 = vmatpush.msra.mxu0 %v1741
    %2500 = vmatpush.msra.mxu0 %v1737
    %2501 = vmatpush.msra.mxu0 %v1733
    %2502 = vmatpush.msra.mxu0 %v1729
    %2503 = vmatpush.msra.mxu0 %v1725
    %2504 = vmatpush.msra.mxu0 %v1721
    %2505 = vmatpush.msra.mxu0 %v1717
    %2506 = vmatpush.msra.mxu0 %v1713
    %2507 = vmatpush.msra.mxu0 %v1709
    %2508 = vmatpush.msra.mxu0 %v1705
    %2509 = vmatpush.msra.mxu0 %v1701
    %2510 = vmatpush.msra.mxu0 %v1697
    %2511 = vmatpush.msra.mxu0 %v1693
    %2512 = vmatpush.msra.mxu0 %v1689
    %2513 = vmatpush.msra.mxu0 %v1685
    %2514 = vmatpush.msra.mxu0 %v1681
    %2515 = vmatmul.f32.gmra.mxu0 %v2476
    %v2516 = vpop.f32.mrf.mxu0
    %v2517 = vadd.f32 0.0, %v2516
    %2518 = vdwg.mxu0
    %2519 = vmatpush.msra.mxu0 %v1742
    %2520 = vmatpush.msra.mxu0 %v1738
    %2521 = vmatpush.msra.mxu0 %v1734
    %2522 = vmatpush.msra.mxu0 %v1730
    %2523 = vmatpush.msra.mxu0 %v1726
    %2524 = vmatpush.msra.mxu0 %v1722
    %2525 = vmatpush.msra.mxu0 %v1718
    %2526 = vmatpush.msra.mxu0 %v1714
    %2527 = vmatpush.msra.mxu0 %v1710
    %2528 = vmatpush.msra.mxu0 %v1706
    %2529 = vmatpush.msra.mxu0 %v1702
    %2530 = vmatpush.msra.mxu0 %v1698
    %2531 = vmatpush.msra.mxu0 %v1694
    %2532 = vmatpush.msra.mxu0 %v1690
    %2533 = vmatpush.msra.mxu0 %v1686
    %2534 = vmatpush.msra.mxu0 %v1682
    %2535 = vmatmul.f32.gmra.mxu0 %v2476
    %v2536 = vpop.f32.mrf.mxu0
    %v2537 = vadd.f32 0.0, %v2536
    %2538 = vdwg.mxu0
    %2539 = vmatpush.msra.mxu0 %v1743
    %2540 = vmatpush.msra.mxu0 %v1739
    %2541 = vmatpush.msra.mxu0 %v1735
    %2542 = vmatpush.msra.mxu0 %v1731
    %2543 = vmatpush.msra.mxu0 %v1727
    %2544 = vmatpush.msra.mxu0 %v1723
    %2545 = vmatpush.msra.mxu0 %v1719
    %2546 = vmatpush.msra.mxu0 %v1715
    %2547 = vmatpush.msra.mxu0 %v1711
    %2548 = vmatpush.msra.mxu0 %v1707
    %2549 = vmatpush.msra.mxu0 %v1703
    %2550 = vmatpush.msra.mxu0 %v1699
    %2551 = vmatpush.msra.mxu0 %v1695
    %2552 = vmatpush.msra.mxu0 %v1691
    %2553 = vmatpush.msra.mxu0 %v1687
    %2554 = vmatpush.msra.mxu0 %v1683
    %2555 = vmatmul.f32.gmra.mxu0 %v2476
    %v2556 = vpop.f32.mrf.mxu0
    %v2557 = vadd.f32 0.0, %v2556
    %2558 = vdwg.mxu0
    %v2563 = vrot.slane %v2517, 7
    %v2564 = vrot.slane %v2537, 6
    %v2565 = vrot.slane %v2557, 5
    %v2566 = vsel %vm426, %v2497, %v2563
    %v2567 = vsel %vm428, %v2564, %v2565
    %v2568 = vsel %vm430, %v2566, %v2567
    %v2570 = vadd.f32 %v2478, %v2568
    %v2571 = vxor.u32 %v2570, 2147483648
    %v2572 = vmul.f32 %v2571, 1.442695
    %v2573 = vpow.pop %v2572
    %v2574 = vadd.f32 %v2573, 1.0
    %v2575 = vrcp.pop %v2574
    %v2576 = vmul.f32 %v2574, %v2575
    %v2577 = vsub.f32 1.0, %v2576
    %v2578 = vmul.f32 %v2575, %v2577
    %v2579 = vadd.f32 %v2575, %v2578
    %vm2580 = vweird.f32 %v2574
    %vm2581 = vweird.f32 %v2575
    %vm2582 = vmor %vm2580, %vm2581
    %v2583 = vsel %vm2582, %v2575, %v2579
    %v2584 = vand.u32 2147483647, %v2574
    %vm2585 = vcmp.eq.f32.partialorder %v2584, 8.507059e+37
    %v2586 = vand.u32 %v2574, 2147483648
    %v2587 = vor.u32 1.1754944e-38, %v2586
    %v2588 = vsel %vm2585, %v2587, %v2583
    %v2589 = vmul.f32 1.0, %v2588
    %v2591 = vrot.slane %v2570, 2
    %v2593 = vtanh.pop %v2591
    %v2594 = vrot.slane %v2570, 3
    %v2596 = vxor.u32 %v2594, 2147483648
    %v2597 = vmul.f32 %v2596, 1.442695
    %v2598 = vpow.pop %v2597
    %v2599 = vadd.f32 %v2598, 1.0
    %v2600 = vrcp.pop %v2599
    %v2601 = vmul.f32 %v2599, %v2600
    %v2602 = vsub.f32 1.0, %v2601
    %v2603 = vmul.f32 %v2600, %v2602
    %v2604 = vadd.f32 %v2600, %v2603
    %vm2605 = vweird.f32 %v2599
    %vm2606 = vweird.f32 %v2600
    %vm2607 = vmor %vm2605, %vm2606
    %v2608 = vsel %vm2607, %v2600, %v2604
    %v2609 = vand.u32 2147483647, %v2599
    %vm2610 = vcmp.eq.f32.partialorder %v2609, 8.507059e+37
    %v2611 = vand.u32 %v2599, 2147483648
    %v2612 = vor.u32 1.1754944e-38, %v2611
    %v2613 = vsel %vm2610, %v2612, %v2608
    %v2614 = vmul.f32 1.0, %v2613
    %v2616 = vrot.slane %v2589, 1
    %v2618 = vmul.f32 %v2616, %v2474
    %v2619 = vmul.f32 %v2589, %v2593
    %v2620 = vadd.f32 %v2618, %v2619
    %v2621 = vtanh.pop %v2620
    %v2622 = vmul.f32 %v2614, %v2621
    %2623 = vst [vmem:[#allocation2 + $0x5] sm:$0x1] %v2622
    %v2624 = vld [vmem:[%s1222] ss:$8 sm:$0xf]
    %2625 = vmatpush.msra.mxu0 %v1740
    %2626 = vmatpush.msra.mxu0 %v1736
    %2627 = vmatpush.msra.mxu0 %v1732
    %2628 = vmatpush.msra.mxu0 %v1728
    %2629 = vmatpush.msra.mxu0 %v1724
    %2630 = vmatpush.msra.mxu0 %v1720
    %2631 = vmatpush.msra.mxu0 %v1716
    %2632 = vmatpush.msra.mxu0 %v1712
    %2633 = vmatpush.msra.mxu0 %v1708
    %2634 = vmatpush.msra.mxu0 %v1704
    %2635 = vmatpush.msra.mxu0 %v1700
    %2636 = vmatpush.msra.mxu0 %v1696
    %2637 = vmatpush.msra.mxu0 %v1692
    %2638 = vmatpush.msra.mxu0 %v1688
    %2639 = vmatpush.msra.mxu0 %v1684
    %2640 = vmatpush.msra.mxu0 %v1680
    %2641 = vmatmul.f32.gmra.mxu0 %v2622
    %v2642 = vpop.f32.mrf.mxu0
    %v2643 = vadd.f32 0.0, %v2642
    %2644 = vdwg.mxu0
    %2645 = vmatpush.msra.mxu0 %v1741
    %2646 = vmatpush.msra.mxu0 %v1737
    %2647 = vmatpush.msra.mxu0 %v1733
    %2648 = vmatpush.msra.mxu0 %v1729
    %2649 = vmatpush.msra.mxu0 %v1725
    %2650 = vmatpush.msra.mxu0 %v1721
    %2651 = vmatpush.msra.mxu0 %v1717
    %2652 = vmatpush.msra.mxu0 %v1713
    %2653 = vmatpush.msra.mxu0 %v1709
    %2654 = vmatpush.msra.mxu0 %v1705
    %2655 = vmatpush.msra.mxu0 %v1701
    %2656 = vmatpush.msra.mxu0 %v1697
    %2657 = vmatpush.msra.mxu0 %v1693
    %2658 = vmatpush.msra.mxu0 %v1689
    %2659 = vmatpush.msra.mxu0 %v1685
    %2660 = vmatpush.msra.mxu0 %v1681
    %2661 = vmatmul.f32.gmra.mxu0 %v2622
    %v2662 = vpop.f32.mrf.mxu0
    %v2663 = vadd.f32 0.0, %v2662
    %2664 = vdwg.mxu0
    %2665 = vmatpush.msra.mxu0 %v1742
    %2666 = vmatpush.msra.mxu0 %v1738
    %2667 = vmatpush.msra.mxu0 %v1734
    %2668 = vmatpush.msra.mxu0 %v1730
    %2669 = vmatpush.msra.mxu0 %v1726
    %2670 = vmatpush.msra.mxu0 %v1722
    %2671 = vmatpush.msra.mxu0 %v1718
    %2672 = vmatpush.msra.mxu0 %v1714
    %2673 = vmatpush.msra.mxu0 %v1710
    %2674 = vmatpush.msra.mxu0 %v1706
    %2675 = vmatpush.msra.mxu0 %v1702
    %2676 = vmatpush.msra.mxu0 %v1698
    %2677 = vmatpush.msra.mxu0 %v1694
    %2678 = vmatpush.msra.mxu0 %v1690
    %2679 = vmatpush.msra.mxu0 %v1686
    %2680 = vmatpush.msra.mxu0 %v1682
    %2681 = vmatmul.f32.gmra.mxu0 %v2622
    %v2682 = vpop.f32.mrf.mxu0
    %v2683 = vadd.f32 0.0, %v2682
    %2684 = vdwg.mxu0
    %2685 = vmatpush.msra.mxu0 %v1743
    %2686 = vmatpush.msra.mxu0 %v1739
    %2687 = vmatpush.msra.mxu0 %v1735
    %2688 = vmatpush.msra.mxu0 %v1731
    %2689 = vmatpush.msra.mxu0 %v1727
    %2690 = vmatpush.msra.mxu0 %v1723
    %2691 = vmatpush.msra.mxu0 %v1719
    %2692 = vmatpush.msra.mxu0 %v1715
    %2693 = vmatpush.msra.mxu0 %v1711
    %2694 = vmatpush.msra.mxu0 %v1707
    %2695 = vmatpush.msra.mxu0 %v1703
    %2696 = vmatpush.msra.mxu0 %v1699
    %2697 = vmatpush.msra.mxu0 %v1695
    %2698 = vmatpush.msra.mxu0 %v1691
    %2699 = vmatpush.msra.mxu0 %v1687
    %2700 = vmatpush.msra.mxu0 %v1683
    %2701 = vmatmul.f32.gmra.mxu0 %v2622
    %v2702 = vpop.f32.mrf.mxu0
    %v2703 = vadd.f32 0.0, %v2702
    %2704 = vdwg.mxu0
    %v2709 = vrot.slane %v2663, 7
    %v2710 = vrot.slane %v2683, 6
    %v2711 = vrot.slane %v2703, 5
    %v2712 = vsel %vm426, %v2643, %v2709
    %v2713 = vsel %vm428, %v2710, %v2711
    %v2714 = vsel %vm430, %v2712, %v2713
    %v2716 = vadd.f32 %v2624, %v2714
    %v2717 = vxor.u32 %v2716, 2147483648
    %v2718 = vmul.f32 %v2717, 1.442695
    %v2719 = vpow.pop %v2718
    %v2720 = vadd.f32 %v2719, 1.0
    %v2721 = vrcp.pop %v2720
    %v2722 = vmul.f32 %v2720, %v2721
    %v2723 = vsub.f32 1.0, %v2722
    %v2724 = vmul.f32 %v2721, %v2723
    %v2725 = vadd.f32 %v2721, %v2724
    %vm2726 = vweird.f32 %v2720
    %vm2727 = vweird.f32 %v2721
    %vm2728 = vmor %vm2726, %vm2727
    %v2729 = vsel %vm2728, %v2721, %v2725
    %v2730 = vand.u32 2147483647, %v2720
    %vm2731 = vcmp.eq.f32.partialorder %v2730, 8.507059e+37
    %v2732 = vand.u32 %v2720, 2147483648
    %v2733 = vor.u32 1.1754944e-38, %v2732
    %v2734 = vsel %vm2731, %v2733, %v2729
    %v2735 = vmul.f32 1.0, %v2734
    %v2737 = vrot.slane %v2716, 2
    %v2739 = vtanh.pop %v2737
    %v2740 = vrot.slane %v2716, 3
    %v2742 = vxor.u32 %v2740, 2147483648
    %v2743 = vmul.f32 %v2742, 1.442695
    %v2744 = vpow.pop %v2743
    %v2745 = vadd.f32 %v2744, 1.0
    %v2746 = vrcp.pop %v2745
    %v2747 = vmul.f32 %v2745, %v2746
    %v2748 = vsub.f32 1.0, %v2747
    %v2749 = vmul.f32 %v2746, %v2748
    %v2750 = vadd.f32 %v2746, %v2749
    %vm2751 = vweird.f32 %v2745
    %vm2752 = vweird.f32 %v2746
    %vm2753 = vmor %vm2751, %vm2752
    %v2754 = vsel %vm2753, %v2746, %v2750
    %v2755 = vand.u32 2147483647, %v2745
    %vm2756 = vcmp.eq.f32.partialorder %v2755, 8.507059e+37
    %v2757 = vand.u32 %v2745, 2147483648
    %v2758 = vor.u32 1.1754944e-38, %v2757
    %v2759 = vsel %vm2756, %v2758, %v2754
    %v2760 = vmul.f32 1.0, %v2759
    %v2762 = vrot.slane %v2735, 1
    %v2764 = vmul.f32 %v2762, %v2620
    %v2765 = vmul.f32 %v2735, %v2739
    %v2766 = vadd.f32 %v2764, %v2765
    %v2767 = vtanh.pop %v2766
    %v2768 = vmul.f32 %v2760, %v2767
    %2769 = vst [vmem:[#allocation2 + $0x6] sm:$0x1] %v2768
    %v2770 = vld [vmem:[%s1369] ss:$8 sm:$0xf]
    %2771 = vmatpush.msra.mxu0 %v1740
    %2772 = vmatpush.msra.mxu0 %v1736
    %2773 = vmatpush.msra.mxu0 %v1732
    %2774 = vmatpush.msra.mxu0 %v1728
    %2775 = vmatpush.msra.mxu0 %v1724
    %2776 = vmatpush.msra.mxu0 %v1720
    %2777 = vmatpush.msra.mxu0 %v1716
    %2778 = vmatpush.msra.mxu0 %v1712
    %2779 = vmatpush.msra.mxu0 %v1708
    %2780 = vmatpush.msra.mxu0 %v1704
    %2781 = vmatpush.msra.mxu0 %v1700
    %2782 = vmatpush.msra.mxu0 %v1696
    %2783 = vmatpush.msra.mxu0 %v1692
    %2784 = vmatpush.msra.mxu0 %v1688
    %2785 = vmatpush.msra.mxu0 %v1684
    %2786 = vmatpush.msra.mxu0 %v1680
    %2787 = vmatmul.f32.gmra.mxu0 %v2768
    %v2788 = vpop.f32.mrf.mxu0
    %v2789 = vadd.f32 0.0, %v2788
    %2790 = vdwg.mxu0
    %2791 = vmatpush.msra.mxu0 %v1741
    %2792 = vmatpush.msra.mxu0 %v1737
    %2793 = vmatpush.msra.mxu0 %v1733
    %2794 = vmatpush.msra.mxu0 %v1729
    %2795 = vmatpush.msra.mxu0 %v1725
    %2796 = vmatpush.msra.mxu0 %v1721
    %2797 = vmatpush.msra.mxu0 %v1717
    %2798 = vmatpush.msra.mxu0 %v1713
    %2799 = vmatpush.msra.mxu0 %v1709
    %2800 = vmatpush.msra.mxu0 %v1705
    %2801 = vmatpush.msra.mxu0 %v1701
    %2802 = vmatpush.msra.mxu0 %v1697
    %2803 = vmatpush.msra.mxu0 %v1693
    %2804 = vmatpush.msra.mxu0 %v1689
    %2805 = vmatpush.msra.mxu0 %v1685
    %2806 = vmatpush.msra.mxu0 %v1681
    %2807 = vmatmul.f32.gmra.mxu0 %v2768
    %v2808 = vpop.f32.mrf.mxu0
    %v2809 = vadd.f32 0.0, %v2808
    %2810 = vdwg.mxu0
    %2811 = vmatpush.msra.mxu0 %v1742
    %2812 = vmatpush.msra.mxu0 %v1738
    %2813 = vmatpush.msra.mxu0 %v1734
    %2814 = vmatpush.msra.mxu0 %v1730
    %2815 = vmatpush.msra.mxu0 %v1726
    %2816 = vmatpush.msra.mxu0 %v1722
    %2817 = vmatpush.msra.mxu0 %v1718
    %2818 = vmatpush.msra.mxu0 %v1714
    %2819 = vmatpush.msra.mxu0 %v1710
    %2820 = vmatpush.msra.mxu0 %v1706
    %2821 = vmatpush.msra.mxu0 %v1702
    %2822 = vmatpush.msra.mxu0 %v1698
    %2823 = vmatpush.msra.mxu0 %v1694
    %2824 = vmatpush.msra.mxu0 %v1690
    %2825 = vmatpush.msra.mxu0 %v1686
    %2826 = vmatpush.msra.mxu0 %v1682
    %2827 = vmatmul.f32.gmra.mxu0 %v2768
    %v2828 = vpop.f32.mrf.mxu0
    %v2829 = vadd.f32 0.0, %v2828
    %2830 = vdwg.mxu0
    %2831 = vmatpush.msra.mxu0 %v1743
    %2832 = vmatpush.msra.mxu0 %v1739
    %2833 = vmatpush.msra.mxu0 %v1735
    %2834 = vmatpush.msra.mxu0 %v1731
    %2835 = vmatpush.msra.mxu0 %v1727
    %2836 = vmatpush.msra.mxu0 %v1723
    %2837 = vmatpush.msra.mxu0 %v1719
    %2838 = vmatpush.msra.mxu0 %v1715
    %2839 = vmatpush.msra.mxu0 %v1711
    %2840 = vmatpush.msra.mxu0 %v1707
    %2841 = vmatpush.msra.mxu0 %v1703
    %2842 = vmatpush.msra.mxu0 %v1699
    %2843 = vmatpush.msra.mxu0 %v1695
    %2844 = vmatpush.msra.mxu0 %v1691
    %2845 = vmatpush.msra.mxu0 %v1687
    %2846 = vmatpush.msra.mxu0 %v1683
    %2847 = vmatmul.f32.gmra.mxu0 %v2768
    %v2848 = vpop.f32.mrf.mxu0
    %v2849 = vadd.f32 0.0, %v2848
    %2850 = vdwg.mxu0
    %v2855 = vrot.slane %v2809, 7
    %v2856 = vrot.slane %v2829, 6
    %v2857 = vrot.slane %v2849, 5
    %v2858 = vsel %vm426, %v2789, %v2855
    %v2859 = vsel %vm428, %v2856, %v2857
    %v2860 = vsel %vm430, %v2858, %v2859
    %v2862 = vadd.f32 %v2770, %v2860
    %v2863 = vxor.u32 %v2862, 2147483648
    %v2864 = vmul.f32 %v2863, 1.442695
    %v2865 = vpow.pop %v2864
    %v2866 = vadd.f32 %v2865, 1.0
    %v2867 = vrcp.pop %v2866
    %v2868 = vmul.f32 %v2866, %v2867
    %v2869 = vsub.f32 1.0, %v2868
    %v2870 = vmul.f32 %v2867, %v2869
    %v2871 = vadd.f32 %v2867, %v2870
    %vm2872 = vweird.f32 %v2866
    %vm2873 = vweird.f32 %v2867
    %vm2874 = vmor %vm2872, %vm2873
    %v2875 = vsel %vm2874, %v2867, %v2871
    %v2876 = vand.u32 2147483647, %v2866
    %vm2877 = vcmp.eq.f32.partialorder %v2876, 8.507059e+37
    %v2878 = vand.u32 %v2866, 2147483648
    %v2879 = vor.u32 1.1754944e-38, %v2878
    %v2880 = vsel %vm2877, %v2879, %v2875
    %v2881 = vmul.f32 1.0, %v2880
    %v2883 = vrot.slane %v2862, 2
    %v2885 = vtanh.pop %v2883
    %v2886 = vrot.slane %v2862, 3
    %v2888 = vxor.u32 %v2886, 2147483648
    %v2889 = vmul.f32 %v2888, 1.442695
    %v2890 = vpow.pop %v2889
    %v2891 = vadd.f32 %v2890, 1.0
    %v2892 = vrcp.pop %v2891
    %v2893 = vmul.f32 %v2891, %v2892
    %v2894 = vsub.f32 1.0, %v2893
    %v2895 = vmul.f32 %v2892, %v2894
    %v2896 = vadd.f32 %v2892, %v2895
    %vm2897 = vweird.f32 %v2891
    %vm2898 = vweird.f32 %v2892
    %vm2899 = vmor %vm2897, %vm2898
    %v2900 = vsel %vm2899, %v2892, %v2896
    %v2901 = vand.u32 2147483647, %v2891
    %vm2902 = vcmp.eq.f32.partialorder %v2901, 8.507059e+37
    %v2903 = vand.u32 %v2891, 2147483648
    %v2904 = vor.u32 1.1754944e-38, %v2903
    %v2905 = vsel %vm2902, %v2904, %v2900
    %v2906 = vmul.f32 1.0, %v2905
    %v2908 = vrot.slane %v2881, 1
    %v2910 = vmul.f32 %v2908, %v2766
    %v2911 = vmul.f32 %v2881, %v2885
    %v2912 = vadd.f32 %v2910, %v2911
    %v2913 = vtanh.pop %v2912
    %v2914 = vmul.f32 %v2906, %v2913
    %2915 = vst [vmem:[#allocation2 + $0x7] sm:$0x1] %v2914
    %s2916 = scalar_lea.vmem [#allocation10], 1
    %2917 = vst [vmem:[%s2916] sm:$0x1] %v2914
    %s2918 = scalar_lea.vmem [#allocation12], 1
    %2919 = vst [vmem:[%s2918] sm:$0x1] %v2912
    %v2920 = vld [vmem:[#allocation2] sm:$0xff]
    %s2921 = scalar_lea.vmem [#allocation4], 1024
    %v2922 = vld [vmem:[%s2921] sm:$0xff]
    %v2923 = vld [vmem:[%s2921 + $0x8] sm:$0xff]
    %v2924 = vld [vmem:[%s2921 + $0x10] sm:$0xff]
    %v2925 = vld [vmem:[%s2921 + $0x18] sm:$0xff]
    %v2926 = vld [vmem:[%s2921 + $0x20] sm:$0xff]
    %v2927 = vld [vmem:[%s2921 + $0x28] sm:$0xff]
    %v2928 = vld [vmem:[%s2921 + $0x30] sm:$0xff]
    %v2929 = vld [vmem:[%s2921 + $0x38] sm:$0xff]
    %v2930 = vld [vmem:[%s2921 + $0x40] sm:$0xff]
    %v2931 = vld [vmem:[%s2921 + $0x48] sm:$0xff]
    %v2932 = vld [vmem:[%s2921 + $0x50] sm:$0xff]
    %v2933 = vld [vmem:[%s2921 + $0x58] sm:$0xff]
    %v2934 = vld [vmem:[%s2921 + $0x60] sm:$0xff]
    %v2935 = vld [vmem:[%s2921 + $0x68] sm:$0xff]
    %v2936 = vld [vmem:[%s2921 + $0x70] sm:$0xff]
    %v2937 = vld [vmem:[%s2921 + $0x78] sm:$0xff]
    %v2938 = vld [vmem:[%s2921 + $0x80] sm:$0xff]
    %v2939 = vld [vmem:[%s2921 + $0x88] sm:$0xff]
    %v2940 = vld [vmem:[%s2921 + $0x90] sm:$0xff]
    %v2941 = vld [vmem:[%s2921 + $0x98] sm:$0xff]
    %v2942 = vld [vmem:[%s2921 + $0xa0] sm:$0xff]
    %v2943 = vld [vmem:[%s2921 + $0xa8] sm:$0xff]
    %v2944 = vld [vmem:[%s2921 + $0xb0] sm:$0xff]
    %v2945 = vld [vmem:[%s2921 + $0xb8] sm:$0xff]
    %v2946 = vld [vmem:[%s2921 + $0xc0] sm:$0xff]
    %v2947 = vld [vmem:[%s2921 + $0xc8] sm:$0xff]
    %v2948 = vld [vmem:[%s2921 + $0xd0] sm:$0xff]
    %v2949 = vld [vmem:[%s2921 + $0xd8] sm:$0xff]
    %v2950 = vld [vmem:[%s2921 + $0xe0] sm:$0xff]
    %v2951 = vld [vmem:[%s2921 + $0xe8] sm:$0xff]
    %v2952 = vld [vmem:[%s2921 + $0xf0] sm:$0xff]
    %v2953 = vld [vmem:[%s2921 + $0xf8] sm:$0xff]
    %v2954 = vld [vmem:[%s2921 + $0x100] sm:$0xff]
    %v2955 = vld [vmem:[%s2921 + $0x108] sm:$0xff]
    %v2956 = vld [vmem:[%s2921 + $0x110] sm:$0xff]
    %v2957 = vld [vmem:[%s2921 + $0x118] sm:$0xff]
    %v2958 = vld [vmem:[%s2921 + $0x120] sm:$0xff]
    %v2959 = vld [vmem:[%s2921 + $0x128] sm:$0xff]
    %v2960 = vld [vmem:[%s2921 + $0x130] sm:$0xff]
    %v2961 = vld [vmem:[%s2921 + $0x138] sm:$0xff]
    %v2962 = vld [vmem:[%s2921 + $0x140] sm:$0xff]
    %v2963 = vld [vmem:[%s2921 + $0x148] sm:$0xff]
    %v2964 = vld [vmem:[%s2921 + $0x150] sm:$0xff]
    %v2965 = vld [vmem:[%s2921 + $0x158] sm:$0xff]
    %v2966 = vld [vmem:[%s2921 + $0x160] sm:$0xff]
    %v2967 = vld [vmem:[%s2921 + $0x168] sm:$0xff]
    %v2968 = vld [vmem:[%s2921 + $0x170] sm:$0xff]
    %v2969 = vld [vmem:[%s2921 + $0x178] sm:$0xff]
    %v2970 = vld [vmem:[%s2921 + $0x180] sm:$0xff]
    %v2971 = vld [vmem:[%s2921 + $0x188] sm:$0xff]
    %v2972 = vld [vmem:[%s2921 + $0x190] sm:$0xff]
    %v2973 = vld [vmem:[%s2921 + $0x198] sm:$0xff]
    %v2974 = vld [vmem:[%s2921 + $0x1a0] sm:$0xff]
    %v2975 = vld [vmem:[%s2921 + $0x1a8] sm:$0xff]
    %v2976 = vld [vmem:[%s2921 + $0x1b0] sm:$0xff]
    %v2977 = vld [vmem:[%s2921 + $0x1b8] sm:$0xff]
    %v2978 = vld [vmem:[%s2921 + $0x1c0] sm:$0xff]
    %v2979 = vld [vmem:[%s2921 + $0x1c8] sm:$0xff]
    %v2980 = vld [vmem:[%s2921 + $0x1d0] sm:$0xff]
    %v2981 = vld [vmem:[%s2921 + $0x1d8] sm:$0xff]
    %v2982 = vld [vmem:[%s2921 + $0x1e0] sm:$0xff]
    %v2983 = vld [vmem:[%s2921 + $0x1e8] sm:$0xff]
    %v2984 = vld [vmem:[%s2921 + $0x1f0] sm:$0xff]
    %v2985 = vld [vmem:[%s2921 + $0x1f8] sm:$0xff]
    %s2986 = scalar_lea.vmem %s5, 8
    %v2987 = vld [vmem:[%s2986] sm:$0xf]
    %v2989 = vperm.slane %v2987, 0
    %v2990 = vperm.slane %v2987, 1
    %v2991 = vperm.slane %v2987, 2
    %v2992 = vperm.slane %v2987, 3
    %2997 = vmatpush.msra.mxu0 %v2982
    %2998 = vmatpush.msra.mxu0 %v2978
    %2999 = vmatpush.msra.mxu0 %v2974
    %3000 = vmatpush.msra.mxu0 %v2970
    %3001 = vmatpush.msra.mxu0 %v2966
    %3002 = vmatpush.msra.mxu0 %v2962
    %3003 = vmatpush.msra.mxu0 %v2958
    %3004 = vmatpush.msra.mxu0 %v2954
    %3005 = vmatpush.msra.mxu0 %v2950
    %3006 = vmatpush.msra.mxu0 %v2946
    %3007 = vmatpush.msra.mxu0 %v2942
    %3008 = vmatpush.msra.mxu0 %v2938
    %3009 = vmatpush.msra.mxu0 %v2934
    %3010 = vmatpush.msra.mxu0 %v2930
    %3011 = vmatpush.msra.mxu0 %v2926
    %3012 = vmatpush.msra.mxu0 %v2922
    %3013 = vmatmul.f32.gmra.mxu0 %v2920
    %v3014 = vpop.f32.mrf.mxu0
    %v3015 = vadd.f32 %v2989, %v3014
    %3016 = vdwg.mxu0
    %3017 = vmatpush.msra.mxu0 %v2983
    %3018 = vmatpush.msra.mxu0 %v2979
    %3019 = vmatpush.msra.mxu0 %v2975
    %3020 = vmatpush.msra.mxu0 %v2971
    %3021 = vmatpush.msra.mxu0 %v2967
    %3022 = vmatpush.msra.mxu0 %v2963
    %3023 = vmatpush.msra.mxu0 %v2959
    %3024 = vmatpush.msra.mxu0 %v2955
    %3025 = vmatpush.msra.mxu0 %v2951
    %3026 = vmatpush.msra.mxu0 %v2947
    %3027 = vmatpush.msra.mxu0 %v2943
    %3028 = vmatpush.msra.mxu0 %v2939
    %3029 = vmatpush.msra.mxu0 %v2935
    %3030 = vmatpush.msra.mxu0 %v2931
    %3031 = vmatpush.msra.mxu0 %v2927
    %3032 = vmatpush.msra.mxu0 %v2923
    %3033 = vmatmul.f32.gmra.mxu0 %v2920
    %v3034 = vpop.f32.mrf.mxu0
    %v3035 = vadd.f32 %v2990, %v3034
    %3036 = vdwg.mxu0
    %3037 = vmatpush.msra.mxu0 %v2984
    %3038 = vmatpush.msra.mxu0 %v2980
    %3039 = vmatpush.msra.mxu0 %v2976
    %3040 = vmatpush.msra.mxu0 %v2972
    %3041 = vmatpush.msra.mxu0 %v2968
    %3042 = vmatpush.msra.mxu0 %v2964
    %3043 = vmatpush.msra.mxu0 %v2960
    %3044 = vmatpush.msra.mxu0 %v2956
    %3045 = vmatpush.msra.mxu0 %v2952
    %3046 = vmatpush.msra.mxu0 %v2948
    %3047 = vmatpush.msra.mxu0 %v2944
    %3048 = vmatpush.msra.mxu0 %v2940
    %3049 = vmatpush.msra.mxu0 %v2936
    %3050 = vmatpush.msra.mxu0 %v2932
    %3051 = vmatpush.msra.mxu0 %v2928
    %3052 = vmatpush.msra.mxu0 %v2924
    %3053 = vmatmul.f32.gmra.mxu0 %v2920
    %v3054 = vpop.f32.mrf.mxu0
    %v3055 = vadd.f32 %v2991, %v3054
    %3056 = vdwg.mxu0
    %3057 = vmatpush.msra.mxu0 %v2985
    %3058 = vmatpush.msra.mxu0 %v2981
    %3059 = vmatpush.msra.mxu0 %v2977
    %3060 = vmatpush.msra.mxu0 %v2973
    %3061 = vmatpush.msra.mxu0 %v2969
    %3062 = vmatpush.msra.mxu0 %v2965
    %3063 = vmatpush.msra.mxu0 %v2961
    %3064 = vmatpush.msra.mxu0 %v2957
    %3065 = vmatpush.msra.mxu0 %v2953
    %3066 = vmatpush.msra.mxu0 %v2949
    %3067 = vmatpush.msra.mxu0 %v2945
    %3068 = vmatpush.msra.mxu0 %v2941
    %3069 = vmatpush.msra.mxu0 %v2937
    %3070 = vmatpush.msra.mxu0 %v2933
    %3071 = vmatpush.msra.mxu0 %v2929
    %3072 = vmatpush.msra.mxu0 %v2925
    %3073 = vmatmul.f32.gmra.mxu0 %v2920
    %v3074 = vpop.f32.mrf.mxu0
    %v3075 = vadd.f32 %v2992, %v3074
    %3076 = vdwg.mxu0
    %3077 = vst [vmem:[#allocation3] sm:$0xff] %v3015
    %3078 = vst [vmem:[#allocation3 + $0x8] sm:$0xff] %v3035
    %3079 = vst [vmem:[#allocation3 + $0x10] sm:$0xff] %v3055
    %3080 = vst [vmem:[#allocation3 + $0x18] sm:$0xff] %v3075
    %s3081 = scalar_lea.vmem [#allocation7], 1024
    %v3082 = vld [vmem:[%s3081] sm:$0xff]
    %v3083 = vld [vmem:[%s3081 + $0x8] sm:$0xff]
    %v3084 = vld [vmem:[%s3081 + $0x10] sm:$0xff]
    %v3085 = vld [vmem:[%s3081 + $0x18] sm:$0xff]
    %v3086 = vld [vmem:[%s3081 + $0x20] sm:$0xff]
    %v3087 = vld [vmem:[%s3081 + $0x28] sm:$0xff]
    %v3088 = vld [vmem:[%s3081 + $0x30] sm:$0xff]
    %v3089 = vld [vmem:[%s3081 + $0x38] sm:$0xff]
    %v3090 = vld [vmem:[%s3081 + $0x40] sm:$0xff]
    %v3091 = vld [vmem:[%s3081 + $0x48] sm:$0xff]
    %v3092 = vld [vmem:[%s3081 + $0x50] sm:$0xff]
    %v3093 = vld [vmem:[%s3081 + $0x58] sm:$0xff]
    %v3094 = vld [vmem:[%s3081 + $0x60] sm:$0xff]
    %v3095 = vld [vmem:[%s3081 + $0x68] sm:$0xff]
    %v3096 = vld [vmem:[%s3081 + $0x70] sm:$0xff]
    %v3097 = vld [vmem:[%s3081 + $0x78] sm:$0xff]
    %v3098 = vld [vmem:[%s3081 + $0x80] sm:$0xff]
    %v3099 = vld [vmem:[%s3081 + $0x88] sm:$0xff]
    %v3100 = vld [vmem:[%s3081 + $0x90] sm:$0xff]
    %v3101 = vld [vmem:[%s3081 + $0x98] sm:$0xff]
    %v3102 = vld [vmem:[%s3081 + $0xa0] sm:$0xff]
    %v3103 = vld [vmem:[%s3081 + $0xa8] sm:$0xff]
    %v3104 = vld [vmem:[%s3081 + $0xb0] sm:$0xff]
    %v3105 = vld [vmem:[%s3081 + $0xb8] sm:$0xff]
    %v3106 = vld [vmem:[%s3081 + $0xc0] sm:$0xff]
    %v3107 = vld [vmem:[%s3081 + $0xc8] sm:$0xff]
    %v3108 = vld [vmem:[%s3081 + $0xd0] sm:$0xff]
    %v3109 = vld [vmem:[%s3081 + $0xd8] sm:$0xff]
    %v3110 = vld [vmem:[%s3081 + $0xe0] sm:$0xff]
    %v3111 = vld [vmem:[%s3081 + $0xe8] sm:$0xff]
    %v3112 = vld [vmem:[%s3081 + $0xf0] sm:$0xff]
    %v3113 = vld [vmem:[%s3081 + $0xf8] sm:$0xff]
    %v3114 = vld [vmem:[%s3081 + $0x100] sm:$0xff]
    %v3115 = vld [vmem:[%s3081 + $0x108] sm:$0xff]
    %v3116 = vld [vmem:[%s3081 + $0x110] sm:$0xff]
    %v3117 = vld [vmem:[%s3081 + $0x118] sm:$0xff]
    %v3118 = vld [vmem:[%s3081 + $0x120] sm:$0xff]
    %v3119 = vld [vmem:[%s3081 + $0x128] sm:$0xff]
    %v3120 = vld [vmem:[%s3081 + $0x130] sm:$0xff]
    %v3121 = vld [vmem:[%s3081 + $0x138] sm:$0xff]
    %v3122 = vld [vmem:[%s3081 + $0x140] sm:$0xff]
    %v3123 = vld [vmem:[%s3081 + $0x148] sm:$0xff]
    %v3124 = vld [vmem:[%s3081 + $0x150] sm:$0xff]
    %v3125 = vld [vmem:[%s3081 + $0x158] sm:$0xff]
    %v3126 = vld [vmem:[%s3081 + $0x160] sm:$0xff]
    %v3127 = vld [vmem:[%s3081 + $0x168] sm:$0xff]
    %v3128 = vld [vmem:[%s3081 + $0x170] sm:$0xff]
    %v3129 = vld [vmem:[%s3081 + $0x178] sm:$0xff]
    %v3130 = vld [vmem:[%s3081 + $0x180] sm:$0xff]
    %v3131 = vld [vmem:[%s3081 + $0x188] sm:$0xff]
    %v3132 = vld [vmem:[%s3081 + $0x190] sm:$0xff]
    %v3133 = vld [vmem:[%s3081 + $0x198] sm:$0xff]
    %v3134 = vld [vmem:[%s3081 + $0x1a0] sm:$0xff]
    %v3135 = vld [vmem:[%s3081 + $0x1a8] sm:$0xff]
    %v3136 = vld [vmem:[%s3081 + $0x1b0] sm:$0xff]
    %v3137 = vld [vmem:[%s3081 + $0x1b8] sm:$0xff]
    %v3138 = vld [vmem:[%s3081 + $0x1c0] sm:$0xff]
    %v3139 = vld [vmem:[%s3081 + $0x1c8] sm:$0xff]
    %v3140 = vld [vmem:[%s3081 + $0x1d0] sm:$0xff]
    %v3141 = vld [vmem:[%s3081 + $0x1d8] sm:$0xff]
    %v3142 = vld [vmem:[%s3081 + $0x1e0] sm:$0xff]
    %v3143 = vld [vmem:[%s3081 + $0x1e8] sm:$0xff]
    %v3144 = vld [vmem:[%s3081 + $0x1f0] sm:$0xff]
    %v3145 = vld [vmem:[%s3081 + $0x1f8] sm:$0xff]
    %s3146 = scalar_lea.vmem %s8, 2
    %v3147 = vld [vmem:[%s3146] sm:$0x1]
    %s3148 = scalar_lea.vmem %s9, 2
    %v3149 = vld [vmem:[%s3148] sm:$0x1]
    %v3150 = vld [vmem:[#allocation3] ss:$8 sm:$0xf]
    %3151 = vmatpush.msra.mxu0 %v3142
    %3152 = vmatpush.msra.mxu0 %v3138
    %3153 = vmatpush.msra.mxu0 %v3134
    %3154 = vmatpush.msra.mxu0 %v3130
    %3155 = vmatpush.msra.mxu0 %v3126
    %3156 = vmatpush.msra.mxu0 %v3122
    %3157 = vmatpush.msra.mxu0 %v3118
    %3158 = vmatpush.msra.mxu0 %v3114
    %3159 = vmatpush.msra.mxu0 %v3110
    %3160 = vmatpush.msra.mxu0 %v3106
    %3161 = vmatpush.msra.mxu0 %v3102
    %3162 = vmatpush.msra.mxu0 %v3098
    %3163 = vmatpush.msra.mxu0 %v3094
    %3164 = vmatpush.msra.mxu0 %v3090
    %3165 = vmatpush.msra.mxu0 %v3086
    %3166 = vmatpush.msra.mxu0 %v3082
    %3167 = vmatmul.f32.gmra.mxu0 %v3147
    %v3168 = vpop.f32.mrf.mxu0
    %v3169 = vadd.f32 0.0, %v3168
    %3170 = vdwg.mxu0
    %3171 = vmatpush.msra.mxu0 %v3143
    %3172 = vmatpush.msra.mxu0 %v3139
    %3173 = vmatpush.msra.mxu0 %v3135
    %3174 = vmatpush.msra.mxu0 %v3131
    %3175 = vmatpush.msra.mxu0 %v3127
    %3176 = vmatpush.msra.mxu0 %v3123
    %3177 = vmatpush.msra.mxu0 %v3119
    %3178 = vmatpush.msra.mxu0 %v3115
    %3179 = vmatpush.msra.mxu0 %v3111
    %3180 = vmatpush.msra.mxu0 %v3107
    %3181 = vmatpush.msra.mxu0 %v3103
    %3182 = vmatpush.msra.mxu0 %v3099
    %3183 = vmatpush.msra.mxu0 %v3095
    %3184 = vmatpush.msra.mxu0 %v3091
    %3185 = vmatpush.msra.mxu0 %v3087
    %3186 = vmatpush.msra.mxu0 %v3083
    %3187 = vmatmul.f32.gmra.mxu0 %v3147
    %v3188 = vpop.f32.mrf.mxu0
    %v3189 = vadd.f32 0.0, %v3188
    %3190 = vdwg.mxu0
    %3191 = vmatpush.msra.mxu0 %v3144
    %3192 = vmatpush.msra.mxu0 %v3140
    %3193 = vmatpush.msra.mxu0 %v3136
    %3194 = vmatpush.msra.mxu0 %v3132
    %3195 = vmatpush.msra.mxu0 %v3128
    %3196 = vmatpush.msra.mxu0 %v3124
    %3197 = vmatpush.msra.mxu0 %v3120
    %3198 = vmatpush.msra.mxu0 %v3116
    %3199 = vmatpush.msra.mxu0 %v3112
    %3200 = vmatpush.msra.mxu0 %v3108
    %3201 = vmatpush.msra.mxu0 %v3104
    %3202 = vmatpush.msra.mxu0 %v3100
    %3203 = vmatpush.msra.mxu0 %v3096
    %3204 = vmatpush.msra.mxu0 %v3092
    %3205 = vmatpush.msra.mxu0 %v3088
    %3206 = vmatpush.msra.mxu0 %v3084
    %3207 = vmatmul.f32.gmra.mxu0 %v3147
    %v3208 = vpop.f32.mrf.mxu0
    %v3209 = vadd.f32 0.0, %v3208
    %3210 = vdwg.mxu0
    %3211 = vmatpush.msra.mxu0 %v3145
    %3212 = vmatpush.msra.mxu0 %v3141
    %3213 = vmatpush.msra.mxu0 %v3137
    %3214 = vmatpush.msra.mxu0 %v3133
    %3215 = vmatpush.msra.mxu0 %v3129
    %3216 = vmatpush.msra.mxu0 %v3125
    %3217 = vmatpush.msra.mxu0 %v3121
    %3218 = vmatpush.msra.mxu0 %v3117
    %3219 = vmatpush.msra.mxu0 %v3113
    %3220 = vmatpush.msra.mxu0 %v3109
    %3221 = vmatpush.msra.mxu0 %v3105
    %3222 = vmatpush.msra.mxu0 %v3101
    %3223 = vmatpush.msra.mxu0 %v3097
    %3224 = vmatpush.msra.mxu0 %v3093
    %3225 = vmatpush.msra.mxu0 %v3089
    %3226 = vmatpush.msra.mxu0 %v3085
    %3227 = vmatmul.f32.gmra.mxu0 %v3147
    %v3228 = vpop.f32.mrf.mxu0
    %v3229 = vadd.f32 0.0, %v3228
    %3230 = vdwg.mxu0
    %v3235 = vrot.slane %v3189, 7
    %v3236 = vrot.slane %v3209, 6
    %v3237 = vrot.slane %v3229, 5
    %v3238 = vsel %vm426, %v3169, %v3235
    %v3239 = vsel %vm428, %v3236, %v3237
    %v3240 = vsel %vm430, %v3238, %v3239
    %v3242 = vadd.f32 %v3150, %v3240
    %v3243 = vxor.u32 %v3242, 2147483648
    %v3244 = vmul.f32 %v3243, 1.442695
    %v3245 = vpow.pop %v3244
    %v3246 = vadd.f32 %v3245, 1.0
    %v3247 = vrcp.pop %v3246
    %v3248 = vmul.f32 %v3246, %v3247
    %v3249 = vsub.f32 1.0, %v3248
    %v3250 = vmul.f32 %v3247, %v3249
    %v3251 = vadd.f32 %v3247, %v3250
    %vm3252 = vweird.f32 %v3246
    %vm3253 = vweird.f32 %v3247
    %vm3254 = vmor %vm3252, %vm3253
    %v3255 = vsel %vm3254, %v3247, %v3251
    %v3256 = vand.u32 2147483647, %v3246
    %vm3257 = vcmp.eq.f32.partialorder %v3256, 8.507059e+37
    %v3258 = vand.u32 %v3246, 2147483648
    %v3259 = vor.u32 1.1754944e-38, %v3258
    %v3260 = vsel %vm3257, %v3259, %v3255
    %v3261 = vmul.f32 1.0, %v3260
    %v3263 = vrot.slane %v3242, 2
    %v3265 = vtanh.pop %v3263
    %v3266 = vrot.slane %v3242, 3
    %v3268 = vxor.u32 %v3266, 2147483648
    %v3269 = vmul.f32 %v3268, 1.442695
    %v3270 = vpow.pop %v3269
    %v3271 = vadd.f32 %v3270, 1.0
    %v3272 = vrcp.pop %v3271
    %v3273 = vmul.f32 %v3271, %v3272
    %v3274 = vsub.f32 1.0, %v3273
    %v3275 = vmul.f32 %v3272, %v3274
    %v3276 = vadd.f32 %v3272, %v3275
    %vm3277 = vweird.f32 %v3271
    %vm3278 = vweird.f32 %v3272
    %vm3279 = vmor %vm3277, %vm3278
    %v3280 = vsel %vm3279, %v3272, %v3276
    %v3281 = vand.u32 2147483647, %v3271
    %vm3282 = vcmp.eq.f32.partialorder %v3281, 8.507059e+37
    %v3283 = vand.u32 %v3271, 2147483648
    %v3284 = vor.u32 1.1754944e-38, %v3283
    %v3285 = vsel %vm3282, %v3284, %v3280
    %v3286 = vmul.f32 1.0, %v3285
    %v3288 = vrot.slane %v3261, 1
    %v3290 = vmul.f32 %v3288, %v3149
    %v3291 = vmul.f32 %v3261, %v3265
    %v3292 = vadd.f32 %v3290, %v3291
    %v3293 = vtanh.pop %v3292
    %v3294 = vmul.f32 %v3286, %v3293
    %3295 = vst [vmem:[#allocation2] sm:$0x1] %v3294
    %v3296 = vld [vmem:[%s487] ss:$8 sm:$0xf]
    %3297 = vmatpush.msra.mxu0 %v3142
    %3298 = vmatpush.msra.mxu0 %v3138
    %3299 = vmatpush.msra.mxu0 %v3134
    %3300 = vmatpush.msra.mxu0 %v3130
    %3301 = vmatpush.msra.mxu0 %v3126
    %3302 = vmatpush.msra.mxu0 %v3122
    %3303 = vmatpush.msra.mxu0 %v3118
    %3304 = vmatpush.msra.mxu0 %v3114
    %3305 = vmatpush.msra.mxu0 %v3110
    %3306 = vmatpush.msra.mxu0 %v3106
    %3307 = vmatpush.msra.mxu0 %v3102
    %3308 = vmatpush.msra.mxu0 %v3098
    %3309 = vmatpush.msra.mxu0 %v3094
    %3310 = vmatpush.msra.mxu0 %v3090
    %3311 = vmatpush.msra.mxu0 %v3086
    %3312 = vmatpush.msra.mxu0 %v3082
    %3313 = vmatmul.f32.gmra.mxu0 %v3294
    %v3314 = vpop.f32.mrf.mxu0
    %v3315 = vadd.f32 0.0, %v3314
    %3316 = vdwg.mxu0
    %3317 = vmatpush.msra.mxu0 %v3143
    %3318 = vmatpush.msra.mxu0 %v3139
    %3319 = vmatpush.msra.mxu0 %v3135
    %3320 = vmatpush.msra.mxu0 %v3131
    %3321 = vmatpush.msra.mxu0 %v3127
    %3322 = vmatpush.msra.mxu0 %v3123
    %3323 = vmatpush.msra.mxu0 %v3119
    %3324 = vmatpush.msra.mxu0 %v3115
    %3325 = vmatpush.msra.mxu0 %v3111
    %3326 = vmatpush.msra.mxu0 %v3107
    %3327 = vmatpush.msra.mxu0 %v3103
    %3328 = vmatpush.msra.mxu0 %v3099
    %3329 = vmatpush.msra.mxu0 %v3095
    %3330 = vmatpush.msra.mxu0 %v3091
    %3331 = vmatpush.msra.mxu0 %v3087
    %3332 = vmatpush.msra.mxu0 %v3083
    %3333 = vmatmul.f32.gmra.mxu0 %v3294
    %v3334 = vpop.f32.mrf.mxu0
    %v3335 = vadd.f32 0.0, %v3334
    %3336 = vdwg.mxu0
    %3337 = vmatpush.msra.mxu0 %v3144
    %3338 = vmatpush.msra.mxu0 %v3140
    %3339 = vmatpush.msra.mxu0 %v3136
    %3340 = vmatpush.msra.mxu0 %v3132
    %3341 = vmatpush.msra.mxu0 %v3128
    %3342 = vmatpush.msra.mxu0 %v3124
    %3343 = vmatpush.msra.mxu0 %v3120
    %3344 = vmatpush.msra.mxu0 %v3116
    %3345 = vmatpush.msra.mxu0 %v3112
    %3346 = vmatpush.msra.mxu0 %v3108
    %3347 = vmatpush.msra.mxu0 %v3104
    %3348 = vmatpush.msra.mxu0 %v3100
    %3349 = vmatpush.msra.mxu0 %v3096
    %3350 = vmatpush.msra.mxu0 %v3092
    %3351 = vmatpush.msra.mxu0 %v3088
    %3352 = vmatpush.msra.mxu0 %v3084
    %3353 = vmatmul.f32.gmra.mxu0 %v3294
    %v3354 = vpop.f32.mrf.mxu0
    %v3355 = vadd.f32 0.0, %v3354
    %3356 = vdwg.mxu0
    %3357 = vmatpush.msra.mxu0 %v3145
    %3358 = vmatpush.msra.mxu0 %v3141
    %3359 = vmatpush.msra.mxu0 %v3137
    %3360 = vmatpush.msra.mxu0 %v3133
    %3361 = vmatpush.msra.mxu0 %v3129
    %3362 = vmatpush.msra.mxu0 %v3125
    %3363 = vmatpush.msra.mxu0 %v3121
    %3364 = vmatpush.msra.mxu0 %v3117
    %3365 = vmatpush.msra.mxu0 %v3113
    %3366 = vmatpush.msra.mxu0 %v3109
    %3367 = vmatpush.msra.mxu0 %v3105
    %3368 = vmatpush.msra.mxu0 %v3101
    %3369 = vmatpush.msra.mxu0 %v3097
    %3370 = vmatpush.msra.mxu0 %v3093
    %3371 = vmatpush.msra.mxu0 %v3089
    %3372 = vmatpush.msra.mxu0 %v3085
    %3373 = vmatmul.f32.gmra.mxu0 %v3294
    %v3374 = vpop.f32.mrf.mxu0
    %v3375 = vadd.f32 0.0, %v3374
    %3376 = vdwg.mxu0
    %v3381 = vrot.slane %v3335, 7
    %v3382 = vrot.slane %v3355, 6
    %v3383 = vrot.slane %v3375, 5
    %v3384 = vsel %vm426, %v3315, %v3381
    %v3385 = vsel %vm428, %v3382, %v3383
    %v3386 = vsel %vm430, %v3384, %v3385
    %v3388 = vadd.f32 %v3296, %v3386
    %v3389 = vxor.u32 %v3388, 2147483648
    %v3390 = vmul.f32 %v3389, 1.442695
    %v3391 = vpow.pop %v3390
    %v3392 = vadd.f32 %v3391, 1.0
    %v3393 = vrcp.pop %v3392
    %v3394 = vmul.f32 %v3392, %v3393
    %v3395 = vsub.f32 1.0, %v3394
    %v3396 = vmul.f32 %v3393, %v3395
    %v3397 = vadd.f32 %v3393, %v3396
    %vm3398 = vweird.f32 %v3392
    %vm3399 = vweird.f32 %v3393
    %vm3400 = vmor %vm3398, %vm3399
    %v3401 = vsel %vm3400, %v3393, %v3397
    %v3402 = vand.u32 2147483647, %v3392
    %vm3403 = vcmp.eq.f32.partialorder %v3402, 8.507059e+37
    %v3404 = vand.u32 %v3392, 2147483648
    %v3405 = vor.u32 1.1754944e-38, %v3404
    %v3406 = vsel %vm3403, %v3405, %v3401
    %v3407 = vmul.f32 1.0, %v3406
    %v3409 = vrot.slane %v3388, 2
    %v3411 = vtanh.pop %v3409
    %v3412 = vrot.slane %v3388, 3
    %v3414 = vxor.u32 %v3412, 2147483648
    %v3415 = vmul.f32 %v3414, 1.442695
    %v3416 = vpow.pop %v3415
    %v3417 = vadd.f32 %v3416, 1.0
    %v3418 = vrcp.pop %v3417
    %v3419 = vmul.f32 %v3417, %v3418
    %v3420 = vsub.f32 1.0, %v3419
    %v3421 = vmul.f32 %v3418, %v3420
    %v3422 = vadd.f32 %v3418, %v3421
    %vm3423 = vweird.f32 %v3417
    %vm3424 = vweird.f32 %v3418
    %vm3425 = vmor %vm3423, %vm3424
    %v3426 = vsel %vm3425, %v3418, %v3422
    %v3427 = vand.u32 2147483647, %v3417
    %vm3428 = vcmp.eq.f32.partialorder %v3427, 8.507059e+37
    %v3429 = vand.u32 %v3417, 2147483648
    %v3430 = vor.u32 1.1754944e-38, %v3429
    %v3431 = vsel %vm3428, %v3430, %v3426
    %v3432 = vmul.f32 1.0, %v3431
    %v3434 = vrot.slane %v3407, 1
    %v3436 = vmul.f32 %v3434, %v3292
    %v3437 = vmul.f32 %v3407, %v3411
    %v3438 = vadd.f32 %v3436, %v3437
    %v3439 = vtanh.pop %v3438
    %v3440 = vmul.f32 %v3432, %v3439
    %3441 = vst [vmem:[#allocation2 + $0x1] sm:$0x1] %v3440
    %v3442 = vld [vmem:[%s634] ss:$8 sm:$0xf]
    %3443 = vmatpush.msra.mxu0 %v3142
    %3444 = vmatpush.msra.mxu0 %v3138
    %3445 = vmatpush.msra.mxu0 %v3134
    %3446 = vmatpush.msra.mxu0 %v3130
    %3447 = vmatpush.msra.mxu0 %v3126
    %3448 = vmatpush.msra.mxu0 %v3122
    %3449 = vmatpush.msra.mxu0 %v3118
    %3450 = vmatpush.msra.mxu0 %v3114
    %3451 = vmatpush.msra.mxu0 %v3110
    %3452 = vmatpush.msra.mxu0 %v3106
    %3453 = vmatpush.msra.mxu0 %v3102
    %3454 = vmatpush.msra.mxu0 %v3098
    %3455 = vmatpush.msra.mxu0 %v3094
    %3456 = vmatpush.msra.mxu0 %v3090
    %3457 = vmatpush.msra.mxu0 %v3086
    %3458 = vmatpush.msra.mxu0 %v3082
    %3459 = vmatmul.f32.gmra.mxu0 %v3440
    %v3460 = vpop.f32.mrf.mxu0
    %v3461 = vadd.f32 0.0, %v3460
    %3462 = vdwg.mxu0
    %3463 = vmatpush.msra.mxu0 %v3143
    %3464 = vmatpush.msra.mxu0 %v3139
    %3465 = vmatpush.msra.mxu0 %v3135
    %3466 = vmatpush.msra.mxu0 %v3131
    %3467 = vmatpush.msra.mxu0 %v3127
    %3468 = vmatpush.msra.mxu0 %v3123
    %3469 = vmatpush.msra.mxu0 %v3119
    %3470 = vmatpush.msra.mxu0 %v3115
    %3471 = vmatpush.msra.mxu0 %v3111
    %3472 = vmatpush.msra.mxu0 %v3107
    %3473 = vmatpush.msra.mxu0 %v3103
    %3474 = vmatpush.msra.mxu0 %v3099
    %3475 = vmatpush.msra.mxu0 %v3095
    %3476 = vmatpush.msra.mxu0 %v3091
    %3477 = vmatpush.msra.mxu0 %v3087
    %3478 = vmatpush.msra.mxu0 %v3083
    %3479 = vmatmul.f32.gmra.mxu0 %v3440
    %v3480 = vpop.f32.mrf.mxu0
    %v3481 = vadd.f32 0.0, %v3480
    %3482 = vdwg.mxu0
    %3483 = vmatpush.msra.mxu0 %v3144
    %3484 = vmatpush.msra.mxu0 %v3140
    %3485 = vmatpush.msra.mxu0 %v3136
    %3486 = vmatpush.msra.mxu0 %v3132
    %3487 = vmatpush.msra.mxu0 %v3128
    %3488 = vmatpush.msra.mxu0 %v3124
    %3489 = vmatpush.msra.mxu0 %v3120
    %3490 = vmatpush.msra.mxu0 %v3116
    %3491 = vmatpush.msra.mxu0 %v3112
    %3492 = vmatpush.msra.mxu0 %v3108
    %3493 = vmatpush.msra.mxu0 %v3104
    %3494 = vmatpush.msra.mxu0 %v3100
    %3495 = vmatpush.msra.mxu0 %v3096
    %3496 = vmatpush.msra.mxu0 %v3092
    %3497 = vmatpush.msra.mxu0 %v3088
    %3498 = vmatpush.msra.mxu0 %v3084
    %3499 = vmatmul.f32.gmra.mxu0 %v3440
    %v3500 = vpop.f32.mrf.mxu0
    %v3501 = vadd.f32 0.0, %v3500
    %3502 = vdwg.mxu0
    %3503 = vmatpush.msra.mxu0 %v3145
    %3504 = vmatpush.msra.mxu0 %v3141
    %3505 = vmatpush.msra.mxu0 %v3137
    %3506 = vmatpush.msra.mxu0 %v3133
    %3507 = vmatpush.msra.mxu0 %v3129
    %3508 = vmatpush.msra.mxu0 %v3125
    %3509 = vmatpush.msra.mxu0 %v3121
    %3510 = vmatpush.msra.mxu0 %v3117
    %3511 = vmatpush.msra.mxu0 %v3113
    %3512 = vmatpush.msra.mxu0 %v3109
    %3513 = vmatpush.msra.mxu0 %v3105
    %3514 = vmatpush.msra.mxu0 %v3101
    %3515 = vmatpush.msra.mxu0 %v3097
    %3516 = vmatpush.msra.mxu0 %v3093
    %3517 = vmatpush.msra.mxu0 %v3089
    %3518 = vmatpush.msra.mxu0 %v3085
    %3519 = vmatmul.f32.gmra.mxu0 %v3440
    %v3520 = vpop.f32.mrf.mxu0
    %v3521 = vadd.f32 0.0, %v3520
    %3522 = vdwg.mxu0
    %v3527 = vrot.slane %v3481, 7
    %v3528 = vrot.slane %v3501, 6
    %v3529 = vrot.slane %v3521, 5
    %v3530 = vsel %vm426, %v3461, %v3527
    %v3531 = vsel %vm428, %v3528, %v3529
    %v3532 = vsel %vm430, %v3530, %v3531
    %v3534 = vadd.f32 %v3442, %v3532
    %v3535 = vxor.u32 %v3534, 2147483648
    %v3536 = vmul.f32 %v3535, 1.442695
    %v3537 = vpow.pop %v3536
    %v3538 = vadd.f32 %v3537, 1.0
    %v3539 = vrcp.pop %v3538
    %v3540 = vmul.f32 %v3538, %v3539
    %v3541 = vsub.f32 1.0, %v3540
    %v3542 = vmul.f32 %v3539, %v3541
    %v3543 = vadd.f32 %v3539, %v3542
    %vm3544 = vweird.f32 %v3538
    %vm3545 = vweird.f32 %v3539
    %vm3546 = vmor %vm3544, %vm3545
    %v3547 = vsel %vm3546, %v3539, %v3543
    %v3548 = vand.u32 2147483647, %v3538
    %vm3549 = vcmp.eq.f32.partialorder %v3548, 8.507059e+37
    %v3550 = vand.u32 %v3538, 2147483648
    %v3551 = vor.u32 1.1754944e-38, %v3550
    %v3552 = vsel %vm3549, %v3551, %v3547
    %v3553 = vmul.f32 1.0, %v3552
    %v3555 = vrot.slane %v3534, 2
    %v3557 = vtanh.pop %v3555
    %v3558 = vrot.slane %v3534, 3
    %v3560 = vxor.u32 %v3558, 2147483648
    %v3561 = vmul.f32 %v3560, 1.442695
    %v3562 = vpow.pop %v3561
    %v3563 = vadd.f32 %v3562, 1.0
    %v3564 = vrcp.pop %v3563
    %v3565 = vmul.f32 %v3563, %v3564
    %v3566 = vsub.f32 1.0, %v3565
    %v3567 = vmul.f32 %v3564, %v3566
    %v3568 = vadd.f32 %v3564, %v3567
    %vm3569 = vweird.f32 %v3563
    %vm3570 = vweird.f32 %v3564
    %vm3571 = vmor %vm3569, %vm3570
    %v3572 = vsel %vm3571, %v3564, %v3568
    %v3573 = vand.u32 2147483647, %v3563
    %vm3574 = vcmp.eq.f32.partialorder %v3573, 8.507059e+37
    %v3575 = vand.u32 %v3563, 2147483648
    %v3576 = vor.u32 1.1754944e-38, %v3575
    %v3577 = vsel %vm3574, %v3576, %v3572
    %v3578 = vmul.f32 1.0, %v3577
    %v3580 = vrot.slane %v3553, 1
    %v3582 = vmul.f32 %v3580, %v3438
    %v3583 = vmul.f32 %v3553, %v3557
    %v3584 = vadd.f32 %v3582, %v3583
    %v3585 = vtanh.pop %v3584
    %v3586 = vmul.f32 %v3578, %v3585
    %3587 = vst [vmem:[#allocation2 + $0x2] sm:$0x1] %v3586
    %v3588 = vld [vmem:[%s781] ss:$8 sm:$0xf]
    %3589 = vmatpush.msra.mxu0 %v3142
    %3590 = vmatpush.msra.mxu0 %v3138
    %3591 = vmatpush.msra.mxu0 %v3134
    %3592 = vmatpush.msra.mxu0 %v3130
    %3593 = vmatpush.msra.mxu0 %v3126
    %3594 = vmatpush.msra.mxu0 %v3122
    %3595 = vmatpush.msra.mxu0 %v3118
    %3596 = vmatpush.msra.mxu0 %v3114
    %3597 = vmatpush.msra.mxu0 %v3110
    %3598 = vmatpush.msra.mxu0 %v3106
    %3599 = vmatpush.msra.mxu0 %v3102
    %3600 = vmatpush.msra.mxu0 %v3098
    %3601 = vmatpush.msra.mxu0 %v3094
    %3602 = vmatpush.msra.mxu0 %v3090
    %3603 = vmatpush.msra.mxu0 %v3086
    %3604 = vmatpush.msra.mxu0 %v3082
    %3605 = vmatmul.f32.gmra.mxu0 %v3586
    %v3606 = vpop.f32.mrf.mxu0
    %v3607 = vadd.f32 0.0, %v3606
    %3608 = vdwg.mxu0
    %3609 = vmatpush.msra.mxu0 %v3143
    %3610 = vmatpush.msra.mxu0 %v3139
    %3611 = vmatpush.msra.mxu0 %v3135
    %3612 = vmatpush.msra.mxu0 %v3131
    %3613 = vmatpush.msra.mxu0 %v3127
    %3614 = vmatpush.msra.mxu0 %v3123
    %3615 = vmatpush.msra.mxu0 %v3119
    %3616 = vmatpush.msra.mxu0 %v3115
    %3617 = vmatpush.msra.mxu0 %v3111
    %3618 = vmatpush.msra.mxu0 %v3107
    %3619 = vmatpush.msra.mxu0 %v3103
    %3620 = vmatpush.msra.mxu0 %v3099
    %3621 = vmatpush.msra.mxu0 %v3095
    %3622 = vmatpush.msra.mxu0 %v3091
    %3623 = vmatpush.msra.mxu0 %v3087
    %3624 = vmatpush.msra.mxu0 %v3083
    %3625 = vmatmul.f32.gmra.mxu0 %v3586
    %v3626 = vpop.f32.mrf.mxu0
    %v3627 = vadd.f32 0.0, %v3626
    %3628 = vdwg.mxu0
    %3629 = vmatpush.msra.mxu0 %v3144
    %3630 = vmatpush.msra.mxu0 %v3140
    %3631 = vmatpush.msra.mxu0 %v3136
    %3632 = vmatpush.msra.mxu0 %v3132
    %3633 = vmatpush.msra.mxu0 %v3128
    %3634 = vmatpush.msra.mxu0 %v3124
    %3635 = vmatpush.msra.mxu0 %v3120
    %3636 = vmatpush.msra.mxu0 %v3116
    %3637 = vmatpush.msra.mxu0 %v3112
    %3638 = vmatpush.msra.mxu0 %v3108
    %3639 = vmatpush.msra.mxu0 %v3104
    %3640 = vmatpush.msra.mxu0 %v3100
    %3641 = vmatpush.msra.mxu0 %v3096
    %3642 = vmatpush.msra.mxu0 %v3092
    %3643 = vmatpush.msra.mxu0 %v3088
    %3644 = vmatpush.msra.mxu0 %v3084
    %3645 = vmatmul.f32.gmra.mxu0 %v3586
    %v3646 = vpop.f32.mrf.mxu0
    %v3647 = vadd.f32 0.0, %v3646
    %3648 = vdwg.mxu0
    %3649 = vmatpush.msra.mxu0 %v3145
    %3650 = vmatpush.msra.mxu0 %v3141
    %3651 = vmatpush.msra.mxu0 %v3137
    %3652 = vmatpush.msra.mxu0 %v3133
    %3653 = vmatpush.msra.mxu0 %v3129
    %3654 = vmatpush.msra.mxu0 %v3125
    %3655 = vmatpush.msra.mxu0 %v3121
    %3656 = vmatpush.msra.mxu0 %v3117
    %3657 = vmatpush.msra.mxu0 %v3113
    %3658 = vmatpush.msra.mxu0 %v3109
    %3659 = vmatpush.msra.mxu0 %v3105
    %3660 = vmatpush.msra.mxu0 %v3101
    %3661 = vmatpush.msra.mxu0 %v3097
    %3662 = vmatpush.msra.mxu0 %v3093
    %3663 = vmatpush.msra.mxu0 %v3089
    %3664 = vmatpush.msra.mxu0 %v3085
    %3665 = vmatmul.f32.gmra.mxu0 %v3586
    %v3666 = vpop.f32.mrf.mxu0
    %v3667 = vadd.f32 0.0, %v3666
    %3668 = vdwg.mxu0
    %v3673 = vrot.slane %v3627, 7
    %v3674 = vrot.slane %v3647, 6
    %v3675 = vrot.slane %v3667, 5
    %v3676 = vsel %vm426, %v3607, %v3673
    %v3677 = vsel %vm428, %v3674, %v3675
    %v3678 = vsel %vm430, %v3676, %v3677
    %v3680 = vadd.f32 %v3588, %v3678
    %v3681 = vxor.u32 %v3680, 2147483648
    %v3682 = vmul.f32 %v3681, 1.442695
    %v3683 = vpow.pop %v3682
    %v3684 = vadd.f32 %v3683, 1.0
    %v3685 = vrcp.pop %v3684
    %v3686 = vmul.f32 %v3684, %v3685
    %v3687 = vsub.f32 1.0, %v3686
    %v3688 = vmul.f32 %v3685, %v3687
    %v3689 = vadd.f32 %v3685, %v3688
    %vm3690 = vweird.f32 %v3684
    %vm3691 = vweird.f32 %v3685
    %vm3692 = vmor %vm3690, %vm3691
    %v3693 = vsel %vm3692, %v3685, %v3689
    %v3694 = vand.u32 2147483647, %v3684
    %vm3695 = vcmp.eq.f32.partialorder %v3694, 8.507059e+37
    %v3696 = vand.u32 %v3684, 2147483648
    %v3697 = vor.u32 1.1754944e-38, %v3696
    %v3698 = vsel %vm3695, %v3697, %v3693
    %v3699 = vmul.f32 1.0, %v3698
    %v3701 = vrot.slane %v3680, 2
    %v3703 = vtanh.pop %v3701
    %v3704 = vrot.slane %v3680, 3
    %v3706 = vxor.u32 %v3704, 2147483648
    %v3707 = vmul.f32 %v3706, 1.442695
    %v3708 = vpow.pop %v3707
    %v3709 = vadd.f32 %v3708, 1.0
    %v3710 = vrcp.pop %v3709
    %v3711 = vmul.f32 %v3709, %v3710
    %v3712 = vsub.f32 1.0, %v3711
    %v3713 = vmul.f32 %v3710, %v3712
    %v3714 = vadd.f32 %v3710, %v3713
    %vm3715 = vweird.f32 %v3709
    %vm3716 = vweird.f32 %v3710
    %vm3717 = vmor %vm3715, %vm3716
    %v3718 = vsel %vm3717, %v3710, %v3714
    %v3719 = vand.u32 2147483647, %v3709
    %vm3720 = vcmp.eq.f32.partialorder %v3719, 8.507059e+37
    %v3721 = vand.u32 %v3709, 2147483648
    %v3722 = vor.u32 1.1754944e-38, %v3721
    %v3723 = vsel %vm3720, %v3722, %v3718
    %v3724 = vmul.f32 1.0, %v3723
    %v3726 = vrot.slane %v3699, 1
    %v3728 = vmul.f32 %v3726, %v3584
    %v3729 = vmul.f32 %v3699, %v3703
    %v3730 = vadd.f32 %v3728, %v3729
    %v3731 = vtanh.pop %v3730
    %v3732 = vmul.f32 %v3724, %v3731
    %3733 = vst [vmem:[#allocation2 + $0x3] sm:$0x1] %v3732
    %v3734 = vld [vmem:[%s928] ss:$8 sm:$0xf]
    %3735 = vmatpush.msra.mxu0 %v3142
    %3736 = vmatpush.msra.mxu0 %v3138
    %3737 = vmatpush.msra.mxu0 %v3134
    %3738 = vmatpush.msra.mxu0 %v3130
    %3739 = vmatpush.msra.mxu0 %v3126
    %3740 = vmatpush.msra.mxu0 %v3122
    %3741 = vmatpush.msra.mxu0 %v3118
    %3742 = vmatpush.msra.mxu0 %v3114
    %3743 = vmatpush.msra.mxu0 %v3110
    %3744 = vmatpush.msra.mxu0 %v3106
    %3745 = vmatpush.msra.mxu0 %v3102
    %3746 = vmatpush.msra.mxu0 %v3098
    %3747 = vmatpush.msra.mxu0 %v3094
    %3748 = vmatpush.msra.mxu0 %v3090
    %3749 = vmatpush.msra.mxu0 %v3086
    %3750 = vmatpush.msra.mxu0 %v3082
    %3751 = vmatmul.f32.gmra.mxu0 %v3732
    %v3752 = vpop.f32.mrf.mxu0
    %v3753 = vadd.f32 0.0, %v3752
    %3754 = vdwg.mxu0
    %3755 = vmatpush.msra.mxu0 %v3143
    %3756 = vmatpush.msra.mxu0 %v3139
    %3757 = vmatpush.msra.mxu0 %v3135
    %3758 = vmatpush.msra.mxu0 %v3131
    %3759 = vmatpush.msra.mxu0 %v3127
    %3760 = vmatpush.msra.mxu0 %v3123
    %3761 = vmatpush.msra.mxu0 %v3119
    %3762 = vmatpush.msra.mxu0 %v3115
    %3763 = vmatpush.msra.mxu0 %v3111
    %3764 = vmatpush.msra.mxu0 %v3107
    %3765 = vmatpush.msra.mxu0 %v3103
    %3766 = vmatpush.msra.mxu0 %v3099
    %3767 = vmatpush.msra.mxu0 %v3095
    %3768 = vmatpush.msra.mxu0 %v3091
    %3769 = vmatpush.msra.mxu0 %v3087
    %3770 = vmatpush.msra.mxu0 %v3083
    %3771 = vmatmul.f32.gmra.mxu0 %v3732
    %v3772 = vpop.f32.mrf.mxu0
    %v3773 = vadd.f32 0.0, %v3772
    %3774 = vdwg.mxu0
    %3775 = vmatpush.msra.mxu0 %v3144
    %3776 = vmatpush.msra.mxu0 %v3140
    %3777 = vmatpush.msra.mxu0 %v3136
    %3778 = vmatpush.msra.mxu0 %v3132
    %3779 = vmatpush.msra.mxu0 %v3128
    %3780 = vmatpush.msra.mxu0 %v3124
    %3781 = vmatpush.msra.mxu0 %v3120
    %3782 = vmatpush.msra.mxu0 %v3116
    %3783 = vmatpush.msra.mxu0 %v3112
    %3784 = vmatpush.msra.mxu0 %v3108
    %3785 = vmatpush.msra.mxu0 %v3104
    %3786 = vmatpush.msra.mxu0 %v3100
    %3787 = vmatpush.msra.mxu0 %v3096
    %3788 = vmatpush.msra.mxu0 %v3092
    %3789 = vmatpush.msra.mxu0 %v3088
    %3790 = vmatpush.msra.mxu0 %v3084
    %3791 = vmatmul.f32.gmra.mxu0 %v3732
    %v3792 = vpop.f32.mrf.mxu0
    %v3793 = vadd.f32 0.0, %v3792
    %3794 = vdwg.mxu0
    %3795 = vmatpush.msra.mxu0 %v3145
    %3796 = vmatpush.msra.mxu0 %v3141
    %3797 = vmatpush.msra.mxu0 %v3137
    %3798 = vmatpush.msra.mxu0 %v3133
    %3799 = vmatpush.msra.mxu0 %v3129
    %3800 = vmatpush.msra.mxu0 %v3125
    %3801 = vmatpush.msra.mxu0 %v3121
    %3802 = vmatpush.msra.mxu0 %v3117
    %3803 = vmatpush.msra.mxu0 %v3113
    %3804 = vmatpush.msra.mxu0 %v3109
    %3805 = vmatpush.msra.mxu0 %v3105
    %3806 = vmatpush.msra.mxu0 %v3101
    %3807 = vmatpush.msra.mxu0 %v3097
    %3808 = vmatpush.msra.mxu0 %v3093
    %3809 = vmatpush.msra.mxu0 %v3089
    %3810 = vmatpush.msra.mxu0 %v3085
    %3811 = vmatmul.f32.gmra.mxu0 %v3732
    %v3812 = vpop.f32.mrf.mxu0
    %v3813 = vadd.f32 0.0, %v3812
    %3814 = vdwg.mxu0
    %v3819 = vrot.slane %v3773, 7
    %v3820 = vrot.slane %v3793, 6
    %v3821 = vrot.slane %v3813, 5
    %v3822 = vsel %vm426, %v3753, %v3819
    %v3823 = vsel %vm428, %v3820, %v3821
    %v3824 = vsel %vm430, %v3822, %v3823
    %v3826 = vadd.f32 %v3734, %v3824
    %v3827 = vxor.u32 %v3826, 2147483648
    %v3828 = vmul.f32 %v3827, 1.442695
    %v3829 = vpow.pop %v3828
    %v3830 = vadd.f32 %v3829, 1.0
    %v3831 = vrcp.pop %v3830
    %v3832 = vmul.f32 %v3830, %v3831
    %v3833 = vsub.f32 1.0, %v3832
    %v3834 = vmul.f32 %v3831, %v3833
    %v3835 = vadd.f32 %v3831, %v3834
    %vm3836 = vweird.f32 %v3830
    %vm3837 = vweird.f32 %v3831
    %vm3838 = vmor %vm3836, %vm3837
    %v3839 = vsel %vm3838, %v3831, %v3835
    %v3840 = vand.u32 2147483647, %v3830
    %vm3841 = vcmp.eq.f32.partialorder %v3840, 8.507059e+37
    %v3842 = vand.u32 %v3830, 2147483648
    %v3843 = vor.u32 1.1754944e-38, %v3842
    %v3844 = vsel %vm3841, %v3843, %v3839
    %v3845 = vmul.f32 1.0, %v3844
    %v3847 = vrot.slane %v3826, 2
    %v3849 = vtanh.pop %v3847
    %v3850 = vrot.slane %v3826, 3
    %v3852 = vxor.u32 %v3850, 2147483648
    %v3853 = vmul.f32 %v3852, 1.442695
    %v3854 = vpow.pop %v3853
    %v3855 = vadd.f32 %v3854, 1.0
    %v3856 = vrcp.pop %v3855
    %v3857 = vmul.f32 %v3855, %v3856
    %v3858 = vsub.f32 1.0, %v3857
    %v3859 = vmul.f32 %v3856, %v3858
    %v3860 = vadd.f32 %v3856, %v3859
    %vm3861 = vweird.f32 %v3855
    %vm3862 = vweird.f32 %v3856
    %vm3863 = vmor %vm3861, %vm3862
    %v3864 = vsel %vm3863, %v3856, %v3860
    %v3865 = vand.u32 2147483647, %v3855
    %vm3866 = vcmp.eq.f32.partialorder %v3865, 8.507059e+37
    %v3867 = vand.u32 %v3855, 2147483648
    %v3868 = vor.u32 1.1754944e-38, %v3867
    %v3869 = vsel %vm3866, %v3868, %v3864
    %v3870 = vmul.f32 1.0, %v3869
    %v3872 = vrot.slane %v3845, 1
    %v3874 = vmul.f32 %v3872, %v3730
    %v3875 = vmul.f32 %v3845, %v3849
    %v3876 = vadd.f32 %v3874, %v3875
    %v3877 = vtanh.pop %v3876
    %v3878 = vmul.f32 %v3870, %v3877
    %3879 = vst [vmem:[#allocation2 + $0x4] sm:$0x1] %v3878
    %v3880 = vld [vmem:[%s1075] ss:$8 sm:$0xf]
    %3881 = vmatpush.msra.mxu0 %v3142
    %3882 = vmatpush.msra.mxu0 %v3138
    %3883 = vmatpush.msra.mxu0 %v3134
    %3884 = vmatpush.msra.mxu0 %v3130
    %3885 = vmatpush.msra.mxu0 %v3126
    %3886 = vmatpush.msra.mxu0 %v3122
    %3887 = vmatpush.msra.mxu0 %v3118
    %3888 = vmatpush.msra.mxu0 %v3114
    %3889 = vmatpush.msra.mxu0 %v3110
    %3890 = vmatpush.msra.mxu0 %v3106
    %3891 = vmatpush.msra.mxu0 %v3102
    %3892 = vmatpush.msra.mxu0 %v3098
    %3893 = vmatpush.msra.mxu0 %v3094
    %3894 = vmatpush.msra.mxu0 %v3090
    %3895 = vmatpush.msra.mxu0 %v3086
    %3896 = vmatpush.msra.mxu0 %v3082
    %3897 = vmatmul.f32.gmra.mxu0 %v3878
    %v3898 = vpop.f32.mrf.mxu0
    %v3899 = vadd.f32 0.0, %v3898
    %3900 = vdwg.mxu0
    %3901 = vmatpush.msra.mxu0 %v3143
    %3902 = vmatpush.msra.mxu0 %v3139
    %3903 = vmatpush.msra.mxu0 %v3135
    %3904 = vmatpush.msra.mxu0 %v3131
    %3905 = vmatpush.msra.mxu0 %v3127
    %3906 = vmatpush.msra.mxu0 %v3123
    %3907 = vmatpush.msra.mxu0 %v3119
    %3908 = vmatpush.msra.mxu0 %v3115
    %3909 = vmatpush.msra.mxu0 %v3111
    %3910 = vmatpush.msra.mxu0 %v3107
    %3911 = vmatpush.msra.mxu0 %v3103
    %3912 = vmatpush.msra.mxu0 %v3099
    %3913 = vmatpush.msra.mxu0 %v3095
    %3914 = vmatpush.msra.mxu0 %v3091
    %3915 = vmatpush.msra.mxu0 %v3087
    %3916 = vmatpush.msra.mxu0 %v3083
    %3917 = vmatmul.f32.gmra.mxu0 %v3878
    %v3918 = vpop.f32.mrf.mxu0
    %v3919 = vadd.f32 0.0, %v3918
    %3920 = vdwg.mxu0
    %3921 = vmatpush.msra.mxu0 %v3144
    %3922 = vmatpush.msra.mxu0 %v3140
    %3923 = vmatpush.msra.mxu0 %v3136
    %3924 = vmatpush.msra.mxu0 %v3132
    %3925 = vmatpush.msra.mxu0 %v3128
    %3926 = vmatpush.msra.mxu0 %v3124
    %3927 = vmatpush.msra.mxu0 %v3120
    %3928 = vmatpush.msra.mxu0 %v3116
    %3929 = vmatpush.msra.mxu0 %v3112
    %3930 = vmatpush.msra.mxu0 %v3108
    %3931 = vmatpush.msra.mxu0 %v3104
    %3932 = vmatpush.msra.mxu0 %v3100
    %3933 = vmatpush.msra.mxu0 %v3096
    %3934 = vmatpush.msra.mxu0 %v3092
    %3935 = vmatpush.msra.mxu0 %v3088
    %3936 = vmatpush.msra.mxu0 %v3084
    %3937 = vmatmul.f32.gmra.mxu0 %v3878
    %v3938 = vpop.f32.mrf.mxu0
    %v3939 = vadd.f32 0.0, %v3938
    %3940 = vdwg.mxu0
    %3941 = vmatpush.msra.mxu0 %v3145
    %3942 = vmatpush.msra.mxu0 %v3141
    %3943 = vmatpush.msra.mxu0 %v3137
    %3944 = vmatpush.msra.mxu0 %v3133
    %3945 = vmatpush.msra.mxu0 %v3129
    %3946 = vmatpush.msra.mxu0 %v3125
    %3947 = vmatpush.msra.mxu0 %v3121
    %3948 = vmatpush.msra.mxu0 %v3117
    %3949 = vmatpush.msra.mxu0 %v3113
    %3950 = vmatpush.msra.mxu0 %v3109
    %3951 = vmatpush.msra.mxu0 %v3105
    %3952 = vmatpush.msra.mxu0 %v3101
    %3953 = vmatpush.msra.mxu0 %v3097
    %3954 = vmatpush.msra.mxu0 %v3093
    %3955 = vmatpush.msra.mxu0 %v3089
    %3956 = vmatpush.msra.mxu0 %v3085
    %3957 = vmatmul.f32.gmra.mxu0 %v3878
    %v3958 = vpop.f32.mrf.mxu0
    %v3959 = vadd.f32 0.0, %v3958
    %3960 = vdwg.mxu0
    %v3965 = vrot.slane %v3919, 7
    %v3966 = vrot.slane %v3939, 6
    %v3967 = vrot.slane %v3959, 5
    %v3968 = vsel %vm426, %v3899, %v3965
    %v3969 = vsel %vm428, %v3966, %v3967
    %v3970 = vsel %vm430, %v3968, %v3969
    %v3972 = vadd.f32 %v3880, %v3970
    %v3973 = vxor.u32 %v3972, 2147483648
    %v3974 = vmul.f32 %v3973, 1.442695
    %v3975 = vpow.pop %v3974
    %v3976 = vadd.f32 %v3975, 1.0
    %v3977 = vrcp.pop %v3976
    %v3978 = vmul.f32 %v3976, %v3977
    %v3979 = vsub.f32 1.0, %v3978
    %v3980 = vmul.f32 %v3977, %v3979
    %v3981 = vadd.f32 %v3977, %v3980
    %vm3982 = vweird.f32 %v3976
    %vm3983 = vweird.f32 %v3977
    %vm3984 = vmor %vm3982, %vm3983
    %v3985 = vsel %vm3984, %v3977, %v3981
    %v3986 = vand.u32 2147483647, %v3976
    %vm3987 = vcmp.eq.f32.partialorder %v3986, 8.507059e+37
    %v3988 = vand.u32 %v3976, 2147483648
    %v3989 = vor.u32 1.1754944e-38, %v3988
    %v3990 = vsel %vm3987, %v3989, %v3985
    %v3991 = vmul.f32 1.0, %v3990
    %v3993 = vrot.slane %v3972, 2
    %v3995 = vtanh.pop %v3993
    %v3996 = vrot.slane %v3972, 3
    %v3998 = vxor.u32 %v3996, 2147483648
    %v3999 = vmul.f32 %v3998, 1.442695
    %v4000 = vpow.pop %v3999
    %v4001 = vadd.f32 %v4000, 1.0
    %v4002 = vrcp.pop %v4001
    %v4003 = vmul.f32 %v4001, %v4002
    %v4004 = vsub.f32 1.0, %v4003
    %v4005 = vmul.f32 %v4002, %v4004
    %v4006 = vadd.f32 %v4002, %v4005
    %vm4007 = vweird.f32 %v4001
    %vm4008 = vweird.f32 %v4002
    %vm4009 = vmor %vm4007, %vm4008
    %v4010 = vsel %vm4009, %v4002, %v4006
    %v4011 = vand.u32 2147483647, %v4001
    %vm4012 = vcmp.eq.f32.partialorder %v4011, 8.507059e+37
    %v4013 = vand.u32 %v4001, 2147483648
    %v4014 = vor.u32 1.1754944e-38, %v4013
    %v4015 = vsel %vm4012, %v4014, %v4010
    %v4016 = vmul.f32 1.0, %v4015
    %v4018 = vrot.slane %v3991, 1
    %v4020 = vmul.f32 %v4018, %v3876
    %v4021 = vmul.f32 %v3991, %v3995
    %v4022 = vadd.f32 %v4020, %v4021
    %v4023 = vtanh.pop %v4022
    %v4024 = vmul.f32 %v4016, %v4023
    %4025 = vst [vmem:[#allocation2 + $0x5] sm:$0x1] %v4024
    %v4026 = vld [vmem:[%s1222] ss:$8 sm:$0xf]
    %4027 = vmatpush.msra.mxu0 %v3142
    %4028 = vmatpush.msra.mxu0 %v3138
    %4029 = vmatpush.msra.mxu0 %v3134
    %4030 = vmatpush.msra.mxu0 %v3130
    %4031 = vmatpush.msra.mxu0 %v3126
    %4032 = vmatpush.msra.mxu0 %v3122
    %4033 = vmatpush.msra.mxu0 %v3118
    %4034 = vmatpush.msra.mxu0 %v3114
    %4035 = vmatpush.msra.mxu0 %v3110
    %4036 = vmatpush.msra.mxu0 %v3106
    %4037 = vmatpush.msra.mxu0 %v3102
    %4038 = vmatpush.msra.mxu0 %v3098
    %4039 = vmatpush.msra.mxu0 %v3094
    %4040 = vmatpush.msra.mxu0 %v3090
    %4041 = vmatpush.msra.mxu0 %v3086
    %4042 = vmatpush.msra.mxu0 %v3082
    %4043 = vmatmul.f32.gmra.mxu0 %v4024
    %v4044 = vpop.f32.mrf.mxu0
    %v4045 = vadd.f32 0.0, %v4044
    %4046 = vdwg.mxu0
    %4047 = vmatpush.msra.mxu0 %v3143
    %4048 = vmatpush.msra.mxu0 %v3139
    %4049 = vmatpush.msra.mxu0 %v3135
    %4050 = vmatpush.msra.mxu0 %v3131
    %4051 = vmatpush.msra.mxu0 %v3127
    %4052 = vmatpush.msra.mxu0 %v3123
    %4053 = vmatpush.msra.mxu0 %v3119
    %4054 = vmatpush.msra.mxu0 %v3115
    %4055 = vmatpush.msra.mxu0 %v3111
    %4056 = vmatpush.msra.mxu0 %v3107
    %4057 = vmatpush.msra.mxu0 %v3103
    %4058 = vmatpush.msra.mxu0 %v3099
    %4059 = vmatpush.msra.mxu0 %v3095
    %4060 = vmatpush.msra.mxu0 %v3091
    %4061 = vmatpush.msra.mxu0 %v3087
    %4062 = vmatpush.msra.mxu0 %v3083
    %4063 = vmatmul.f32.gmra.mxu0 %v4024
    %v4064 = vpop.f32.mrf.mxu0
    %v4065 = vadd.f32 0.0, %v4064
    %4066 = vdwg.mxu0
    %4067 = vmatpush.msra.mxu0 %v3144
    %4068 = vmatpush.msra.mxu0 %v3140
    %4069 = vmatpush.msra.mxu0 %v3136
    %4070 = vmatpush.msra.mxu0 %v3132
    %4071 = vmatpush.msra.mxu0 %v3128
    %4072 = vmatpush.msra.mxu0 %v3124
    %4073 = vmatpush.msra.mxu0 %v3120
    %4074 = vmatpush.msra.mxu0 %v3116
    %4075 = vmatpush.msra.mxu0 %v3112
    %4076 = vmatpush.msra.mxu0 %v3108
    %4077 = vmatpush.msra.mxu0 %v3104
    %4078 = vmatpush.msra.mxu0 %v3100
    %4079 = vmatpush.msra.mxu0 %v3096
    %4080 = vmatpush.msra.mxu0 %v3092
    %4081 = vmatpush.msra.mxu0 %v3088
    %4082 = vmatpush.msra.mxu0 %v3084
    %4083 = vmatmul.f32.gmra.mxu0 %v4024
    %v4084 = vpop.f32.mrf.mxu0
    %v4085 = vadd.f32 0.0, %v4084
    %4086 = vdwg.mxu0
    %4087 = vmatpush.msra.mxu0 %v3145
    %4088 = vmatpush.msra.mxu0 %v3141
    %4089 = vmatpush.msra.mxu0 %v3137
    %4090 = vmatpush.msra.mxu0 %v3133
    %4091 = vmatpush.msra.mxu0 %v3129
    %4092 = vmatpush.msra.mxu0 %v3125
    %4093 = vmatpush.msra.mxu0 %v3121
    %4094 = vmatpush.msra.mxu0 %v3117
    %4095 = vmatpush.msra.mxu0 %v3113
    %4096 = vmatpush.msra.mxu0 %v3109
    %4097 = vmatpush.msra.mxu0 %v3105
    %4098 = vmatpush.msra.mxu0 %v3101
    %4099 = vmatpush.msra.mxu0 %v3097
    %4100 = vmatpush.msra.mxu0 %v3093
    %4101 = vmatpush.msra.mxu0 %v3089
    %4102 = vmatpush.msra.mxu0 %v3085
    %4103 = vmatmul.f32.gmra.mxu0 %v4024
    %v4104 = vpop.f32.mrf.mxu0
    %v4105 = vadd.f32 0.0, %v4104
    %4106 = vdwg.mxu0
    %v4111 = vrot.slane %v4065, 7
    %v4112 = vrot.slane %v4085, 6
    %v4113 = vrot.slane %v4105, 5
    %v4114 = vsel %vm426, %v4045, %v4111
    %v4115 = vsel %vm428, %v4112, %v4113
    %v4116 = vsel %vm430, %v4114, %v4115
    %v4118 = vadd.f32 %v4026, %v4116
    %v4119 = vxor.u32 %v4118, 2147483648
    %v4120 = vmul.f32 %v4119, 1.442695
    %v4121 = vpow.pop %v4120
    %v4122 = vadd.f32 %v4121, 1.0
    %v4123 = vrcp.pop %v4122
    %v4124 = vmul.f32 %v4122, %v4123
    %v4125 = vsub.f32 1.0, %v4124
    %v4126 = vmul.f32 %v4123, %v4125
    %v4127 = vadd.f32 %v4123, %v4126
    %vm4128 = vweird.f32 %v4122
    %vm4129 = vweird.f32 %v4123
    %vm4130 = vmor %vm4128, %vm4129
    %v4131 = vsel %vm4130, %v4123, %v4127
    %v4132 = vand.u32 2147483647, %v4122
    %vm4133 = vcmp.eq.f32.partialorder %v4132, 8.507059e+37
    %v4134 = vand.u32 %v4122, 2147483648
    %v4135 = vor.u32 1.1754944e-38, %v4134
    %v4136 = vsel %vm4133, %v4135, %v4131
    %v4137 = vmul.f32 1.0, %v4136
    %v4139 = vrot.slane %v4118, 2
    %v4141 = vtanh.pop %v4139
    %v4142 = vrot.slane %v4118, 3
    %v4144 = vxor.u32 %v4142, 2147483648
    %v4145 = vmul.f32 %v4144, 1.442695
    %v4146 = vpow.pop %v4145
    %v4147 = vadd.f32 %v4146, 1.0
    %v4148 = vrcp.pop %v4147
    %v4149 = vmul.f32 %v4147, %v4148
    %v4150 = vsub.f32 1.0, %v4149
    %v4151 = vmul.f32 %v4148, %v4150
    %v4152 = vadd.f32 %v4148, %v4151
    %vm4153 = vweird.f32 %v4147
    %vm4154 = vweird.f32 %v4148
    %vm4155 = vmor %vm4153, %vm4154
    %v4156 = vsel %vm4155, %v4148, %v4152
    %v4157 = vand.u32 2147483647, %v4147
    %vm4158 = vcmp.eq.f32.partialorder %v4157, 8.507059e+37
    %v4159 = vand.u32 %v4147, 2147483648
    %v4160 = vor.u32 1.1754944e-38, %v4159
    %v4161 = vsel %vm4158, %v4160, %v4156
    %v4162 = vmul.f32 1.0, %v4161
    %v4164 = vrot.slane %v4137, 1
    %v4166 = vmul.f32 %v4164, %v4022
    %v4167 = vmul.f32 %v4137, %v4141
    %v4168 = vadd.f32 %v4166, %v4167
    %v4169 = vtanh.pop %v4168
    %v4170 = vmul.f32 %v4162, %v4169
    %4171 = vst [vmem:[#allocation2 + $0x6] sm:$0x1] %v4170
    %v4172 = vld [vmem:[%s1369] ss:$8 sm:$0xf]
    %4173 = vmatpush.msra.mxu0 %v3142
    %4174 = vmatpush.msra.mxu0 %v3138
    %4175 = vmatpush.msra.mxu0 %v3134
    %4176 = vmatpush.msra.mxu0 %v3130
    %4177 = vmatpush.msra.mxu0 %v3126
    %4178 = vmatpush.msra.mxu0 %v3122
    %4179 = vmatpush.msra.mxu0 %v3118
    %4180 = vmatpush.msra.mxu0 %v3114
    %4181 = vmatpush.msra.mxu0 %v3110
    %4182 = vmatpush.msra.mxu0 %v3106
    %4183 = vmatpush.msra.mxu0 %v3102
    %4184 = vmatpush.msra.mxu0 %v3098
    %4185 = vmatpush.msra.mxu0 %v3094
    %4186 = vmatpush.msra.mxu0 %v3090
    %4187 = vmatpush.msra.mxu0 %v3086
    %4188 = vmatpush.msra.mxu0 %v3082
    %4189 = vmatmul.f32.gmra.mxu0 %v4170
    %v4190 = vpop.f32.mrf.mxu0
    %v4191 = vadd.f32 0.0, %v4190
    %4192 = vdwg.mxu0
    %4193 = vmatpush.msra.mxu0 %v3143
    %4194 = vmatpush.msra.mxu0 %v3139
    %4195 = vmatpush.msra.mxu0 %v3135
    %4196 = vmatpush.msra.mxu0 %v3131
    %4197 = vmatpush.msra.mxu0 %v3127
    %4198 = vmatpush.msra.mxu0 %v3123
    %4199 = vmatpush.msra.mxu0 %v3119
    %4200 = vmatpush.msra.mxu0 %v3115
    %4201 = vmatpush.msra.mxu0 %v3111
    %4202 = vmatpush.msra.mxu0 %v3107
    %4203 = vmatpush.msra.mxu0 %v3103
    %4204 = vmatpush.msra.mxu0 %v3099
    %4205 = vmatpush.msra.mxu0 %v3095
    %4206 = vmatpush.msra.mxu0 %v3091
    %4207 = vmatpush.msra.mxu0 %v3087
    %4208 = vmatpush.msra.mxu0 %v3083
    %4209 = vmatmul.f32.gmra.mxu0 %v4170
    %v4210 = vpop.f32.mrf.mxu0
    %v4211 = vadd.f32 0.0, %v4210
    %4212 = vdwg.mxu0
    %4213 = vmatpush.msra.mxu0 %v3144
    %4214 = vmatpush.msra.mxu0 %v3140
    %4215 = vmatpush.msra.mxu0 %v3136
    %4216 = vmatpush.msra.mxu0 %v3132
    %4217 = vmatpush.msra.mxu0 %v3128
    %4218 = vmatpush.msra.mxu0 %v3124
    %4219 = vmatpush.msra.mxu0 %v3120
    %4220 = vmatpush.msra.mxu0 %v3116
    %4221 = vmatpush.msra.mxu0 %v3112
    %4222 = vmatpush.msra.mxu0 %v3108
    %4223 = vmatpush.msra.mxu0 %v3104
    %4224 = vmatpush.msra.mxu0 %v3100
    %4225 = vmatpush.msra.mxu0 %v3096
    %4226 = vmatpush.msra.mxu0 %v3092
    %4227 = vmatpush.msra.mxu0 %v3088
    %4228 = vmatpush.msra.mxu0 %v3084
    %4229 = vmatmul.f32.gmra.mxu0 %v4170
    %v4230 = vpop.f32.mrf.mxu0
    %v4231 = vadd.f32 0.0, %v4230
    %4232 = vdwg.mxu0
    %4233 = vmatpush.msra.mxu0 %v3145
    %4234 = vmatpush.msra.mxu0 %v3141
    %4235 = vmatpush.msra.mxu0 %v3137
    %4236 = vmatpush.msra.mxu0 %v3133
    %4237 = vmatpush.msra.mxu0 %v3129
    %4238 = vmatpush.msra.mxu0 %v3125
    %4239 = vmatpush.msra.mxu0 %v3121
    %4240 = vmatpush.msra.mxu0 %v3117
    %4241 = vmatpush.msra.mxu0 %v3113
    %4242 = vmatpush.msra.mxu0 %v3109
    %4243 = vmatpush.msra.mxu0 %v3105
    %4244 = vmatpush.msra.mxu0 %v3101
    %4245 = vmatpush.msra.mxu0 %v3097
    %4246 = vmatpush.msra.mxu0 %v3093
    %4247 = vmatpush.msra.mxu0 %v3089
    %4248 = vmatpush.msra.mxu0 %v3085
    %4249 = vmatmul.f32.gmra.mxu0 %v4170
    %v4250 = vpop.f32.mrf.mxu0
    %v4251 = vadd.f32 0.0, %v4250
    %4252 = vdwg.mxu0
    %v4257 = vrot.slane %v4211, 7
    %v4258 = vrot.slane %v4231, 6
    %v4259 = vrot.slane %v4251, 5
    %v4260 = vsel %vm426, %v4191, %v4257
    %v4261 = vsel %vm428, %v4258, %v4259
    %v4262 = vsel %vm430, %v4260, %v4261
    %v4264 = vadd.f32 %v4172, %v4262
    %v4265 = vxor.u32 %v4264, 2147483648
    %v4266 = vmul.f32 %v4265, 1.442695
    %v4267 = vpow.pop %v4266
    %v4268 = vadd.f32 %v4267, 1.0
    %v4269 = vrcp.pop %v4268
    %v4270 = vmul.f32 %v4268, %v4269
    %v4271 = vsub.f32 1.0, %v4270
    %v4272 = vmul.f32 %v4269, %v4271
    %v4273 = vadd.f32 %v4269, %v4272
    %vm4274 = vweird.f32 %v4268
    %vm4275 = vweird.f32 %v4269
    %vm4276 = vmor %vm4274, %vm4275
    %v4277 = vsel %vm4276, %v4269, %v4273
    %v4278 = vand.u32 2147483647, %v4268
    %vm4279 = vcmp.eq.f32.partialorder %v4278, 8.507059e+37
    %v4280 = vand.u32 %v4268, 2147483648
    %v4281 = vor.u32 1.1754944e-38, %v4280
    %v4282 = vsel %vm4279, %v4281, %v4277
    %v4283 = vmul.f32 1.0, %v4282
    %v4285 = vrot.slane %v4264, 2
    %v4287 = vtanh.pop %v4285
    %v4288 = vrot.slane %v4264, 3
    %v4290 = vxor.u32 %v4288, 2147483648
    %v4291 = vmul.f32 %v4290, 1.442695
    %v4292 = vpow.pop %v4291
    %v4293 = vadd.f32 %v4292, 1.0
    %v4294 = vrcp.pop %v4293
    %v4295 = vmul.f32 %v4293, %v4294
    %v4296 = vsub.f32 1.0, %v4295
    %v4297 = vmul.f32 %v4294, %v4296
    %v4298 = vadd.f32 %v4294, %v4297
    %vm4299 = vweird.f32 %v4293
    %vm4300 = vweird.f32 %v4294
    %vm4301 = vmor %vm4299, %vm4300
    %v4302 = vsel %vm4301, %v4294, %v4298
    %v4303 = vand.u32 2147483647, %v4293
    %vm4304 = vcmp.eq.f32.partialorder %v4303, 8.507059e+37
    %v4305 = vand.u32 %v4293, 2147483648
    %v4306 = vor.u32 1.1754944e-38, %v4305
    %v4307 = vsel %vm4304, %v4306, %v4302
    %v4308 = vmul.f32 1.0, %v4307
    %v4310 = vrot.slane %v4283, 1
    %v4312 = vmul.f32 %v4310, %v4168
    %v4313 = vmul.f32 %v4283, %v4287
    %v4314 = vadd.f32 %v4312, %v4313
    %v4315 = vtanh.pop %v4314
    %v4316 = vmul.f32 %v4308, %v4315
    %4317 = vst [vmem:[#allocation2 + $0x7] sm:$0x1] %v4316
    %s4318 = scalar_lea.vmem [#allocation10], 2
    %4319 = vst [vmem:[%s4318] sm:$0x1] %v4316
    %s4320 = scalar_lea.vmem [#allocation12], 2
    %4321 = vst [vmem:[%s4320] sm:$0x1] %v4314
    %v4322 = vld [vmem:[#allocation2] sm:$0xff]
    %vm4323 = vcmp.ge.f32.partialorder %v4322, 0.0
    %v4324 = vmul.f32 %v4322, 0.01
    %v4325 = vsel %vm4323, %v4322, %v4324
    %v4326 = vld [vmem:[%s6] sm:$0xff]
    %v4327 = vld [vmem:[%s6 + $0x8] sm:$0xff]
    %v4328 = vld [vmem:[%s6 + $0x10] sm:$0xff]
    %v4329 = vld [vmem:[%s6 + $0x18] sm:$0xff]
    %v4330 = vld [vmem:[%s6 + $0x20] sm:$0xff]
    %v4331 = vld [vmem:[%s6 + $0x28] sm:$0xff]
    %v4332 = vld [vmem:[%s6 + $0x30] sm:$0xff]
    %v4333 = vld [vmem:[%s6 + $0x38] sm:$0xff]
    %v4334 = vld [vmem:[%s6 + $0x40] sm:$0xff]
    %v4335 = vld [vmem:[%s6 + $0x48] sm:$0xff]
    %v4336 = vld [vmem:[%s6 + $0x50] sm:$0xff]
    %v4337 = vld [vmem:[%s6 + $0x58] sm:$0xff]
    %v4338 = vld [vmem:[%s6 + $0x60] sm:$0xff]
    %v4339 = vld [vmem:[%s6 + $0x68] sm:$0xff]
    %v4340 = vld [vmem:[%s6 + $0x70] sm:$0xff]
    %v4341 = vld [vmem:[%s6 + $0x78] sm:$0xff]
    %v4342 = vld [vmem:[%s7] sm:$0x1]
    %v4344 = vperm.slane %v4342, 0
    %4346 = vmatpush.msra.mxu0 %v4341
    %4347 = vmatpush.msra.mxu0 %v4340
    %4348 = vmatpush.msra.mxu0 %v4339
    %4349 = vmatpush.msra.mxu0 %v4338
    %4350 = vmatpush.msra.mxu0 %v4337
    %4351 = vmatpush.msra.mxu0 %v4336
    %4352 = vmatpush.msra.mxu0 %v4335
    %4353 = vmatpush.msra.mxu0 %v4334
    %4354 = vmatpush.msra.mxu0 %v4333
    %4355 = vmatpush.msra.mxu0 %v4332
    %4356 = vmatpush.msra.mxu0 %v4331
    %4357 = vmatpush.msra.mxu0 %v4330
    %4358 = vmatpush.msra.mxu0 %v4329
    %4359 = vmatpush.msra.mxu0 %v4328
    %4360 = vmatpush.msra.mxu0 %v4327
    %4361 = vmatpush.msra.mxu0 %v4326
    %4362 = vmatmul.f32.gmra.mxu0 %v4325
    %v4363 = vpop.f32.mrf.mxu0
    %v4364 = vadd.f32 %v4344, %v4363
    %4365 = vdwg.mxu0
    %v4366 = vtanh.pop %v4364
    %v4367 = vmul.f32 %v4366, 2.0
    %vm4368 = vcmask 97280
    %4369 = vst.msk [vmem:[#allocation9] sm:$0xff] %vm4368, %v4367
    // Predicated region
    $region50: #{lstm_net_forward.1} parent=1 // pred_check
      _
    $region51: #{lstm_net_forward.1} parent=1 // pred_check_branch
      %4371 = sbr.rel (0) target = $region53
    $region52: #{lstm_net_forward.1} parent=1 // pred_region
      %4373 = vsyncadd [#allocation6], 0
      %s4375 = sshll.u32 [#allocation9], 4
      %s4376 = int_to_ptr.vmem [resolvable:$true] %s4375
      %s4377 = sshll.u32 %s10, 4
      %s4378 = int_to_ptr.hbm [resolvable:$true] %s4377
      %4380 = dma.vmem_to_hbm [thread:$0]  %s4376, 128, %s4378, [#allocation6]
    $region53: #{lstm_net_forward.1} parent=1 // pred_fallthru
      _
    // Predicated region
    $region54: #{lstm_net_forward.1} parent=1 // pred_check
      _
    $region55: #{lstm_net_forward.1} parent=1 // pred_check_branch
      %4382 = sbr.rel (0) target = $region57
    $region56: #{lstm_net_forward.1} parent=1 // pred_region
      %4384 = vsyncadd [#allocation11], 0
      %s4385 = sshll.u32 [#allocation10], 4
      %s4386 = int_to_ptr.vmem [resolvable:$true] %s4385
      %s4387 = sshll.u32 %s11, 4
      %s4388 = int_to_ptr.hbm [resolvable:$true] %s4387
      %4393 = dma.vmem_to_hbm [thread:$0]  %s4386, 48, %s4388, [#allocation11], 16, 16, 1
    $region57: #{lstm_net_forward.1} parent=1 // pred_fallthru
      _
    // Predicated region
    $region58: #{lstm_net_forward.1} parent=1 // pred_check
      _
    $region59: #{lstm_net_forward.1} parent=1 // pred_check_branch
      %4395 = sbr.rel (0) target = $region61
    $region60: #{lstm_net_forward.1} parent=1 // pred_region
      %4397 = vsyncadd [#allocation11], 0
      %s4398 = sshll.u32 [#allocation12], 4
      %s4399 = int_to_ptr.vmem [resolvable:$true] %s4398
      %s4400 = sshll.u32 %s12, 4
      %s4401 = int_to_ptr.hbm [resolvable:$true] %s4400
      %4406 = dma.vmem_to_hbm [thread:$0]  %s4399, 48, %s4401, [#allocation11], 16, 16, 1
    $region61: #{lstm_net_forward.1} parent=1 // pred_fallthru
      _
    // Predicated region
    $region62: #{lstm_net_forward.1} parent=1 // pred_check
      _
    $region63: #{lstm_net_forward.1} parent=1 // pred_check_branch
      %4408 = sbr.rel (0) target = $region65
    $region64: #{lstm_net_forward.1} parent=1 // pred_region
      %4410 = dma.done [#allocation6], 128
    $region65: #{lstm_net_forward.1} parent=1 // pred_fallthru
      _
    // Predicated region
    $region66: #{lstm_net_forward.1} parent=1 // pred_check
      _
    $region67: #{lstm_net_forward.1} parent=1 // pred_check_branch
      %4412 = sbr.rel (0) target = $region69
    $region68: #{lstm_net_forward.1} parent=1 // pred_region
      %4414 = dma.done [#allocation11], 48
    $region69: #{lstm_net_forward.1} parent=1 // pred_fallthru
      _
    // Predicated region
    $region70: #{lstm_net_forward.1} parent=1 // pred_check
      _
    $region71: #{lstm_net_forward.1} parent=1 // pred_check_branch
      %4416 = sbr.rel (0) target = $region73
    $region72: #{lstm_net_forward.1} parent=1 // pred_region
      %4418 = dma.done [#allocation11], 48
    $region73: #{lstm_net_forward.1} parent=1 // pred_fallthru
      _
    %4419 = vsyncpa [#allocation5], 1
    %4420 = vsyncpa [#allocation8], 1
    %4421 = vsyncpa [#allocation6], 1
    %4422 = vsyncpa [#allocation11], 1

</llo_original>
